<compile_context>
chip_gen: v7x
topology: tpu7x:2x2x1
jax: 0.10.0
libtpu: 0.0.40
codegen_flags: <defaults>
</compile_context>

<pallas_src>
import functools

import numpy as np
import jax
import jax.numpy as jnp
from jax.experimental import pallas as pl
from jax.experimental.pallas import tpu as pltpu


# ----------------------------------------------------------------------------
# Fused Pallas kernel: whole MergeHead eval forward for one batch element.
# ----------------------------------------------------------------------------
def _merge_head_kernel(x_ref, m_ref, km_ref,
                       wc0_ref, bc0_ref, wc1_ref, bc1_ref,
                       w0_ref, b0_ref,
                       w1_ref, b1_ref,
                       w2_ref, b2_ref,
                       w3_ref, b3_ref,
                       o_ref, *, H, W):
    """x_ref : (Cp,  H*W)   feats, channel-padded, spatial flattened (lane-dense)
       m_ref : (1,   H*W)   validity mask (1.0 = keep)
       km_ref: (2, 1, H*W)  source-column keep masks for the ow = -1 / +1 taps
       w*_ref: (kh*kw, Cout_pad, Cin_pad) conv tap matrices ; b*_ref: (Cout_pad, 1)
       o_ref : (Sop, H*W)   segment logits (padded output channels)."""
    HW = H * W
    keep_m = km_ref[0]       # zeros source column W-1  (feeds only invalid ow=-1 dests)
    keep_p = km_ref[1]       # zeros source column 0    (feeds only invalid ow=+1 dests)

    def shift_cols(x, s):
        # y[:, p] = x[:, p + s], zero fill outside [0, HW)  (static s)
        if s == 0:
            return x
        z = jnp.zeros((x.shape[0], abs(s)), x.dtype)
        if s > 0:
            return jnp.concatenate([x[:, s:], z], axis=1)
        return jnp.concatenate([z, x[:, :HW + s]], axis=1)

    def conv3x3(x, w_ref, b_ref):
        # "same" 3x3 conv as a sum of 9 shifted (Cout, Cin) @ (Cin, HW) MXU matmuls.
        # Row out-of-range taps are handled by the zero fill in shift_cols; column
        # wrap of the +/-1 taps is handled by pre-masking the source columns once.
        x_by_ow = (x * keep_m, x, x * keep_p)       # indexed by ow + 1
        acc = None
        for oh in (-1, 0, 1):
            for ow in (-1, 0, 1):
                t = (oh + 1) * 3 + (ow + 1)
                xs = shift_cols(x_by_ow[ow + 1], oh * W + ow)
                part = jnp.dot(w_ref[t], xs, preferred_element_type=jnp.float32)
                acc = part if acc is None else acc + part
        return acc + b_ref[...]

    def conv1x1(x, w_ref, b_ref):
        return jnp.dot(w_ref[0], x, preferred_element_type=jnp.float32) + b_ref[...]

    def relu(v):
        return jnp.maximum(v, 0.0)

    feats = x_ref[...]                                           # (Cp, HW)

    # merge_center: Conv3x3(C->C)+ReLU, Conv1x1(C->C/2)+ReLU
    # (merge_center_pred is dead in eval mode -> skipped entirely)
    t = relu(conv3x3(feats, wc0_ref, bc0_ref))                   # (Cp, HW)
    cf = relu(conv1x1(t, wc1_ref, bc1_ref))                      # (Chp, HW)

    # merge on cat([feats, cf]): sublane concat in VMEM + combined tap matrices,
    # so the first merge conv is 9 matmuls (not 18) and never touches HBM.
    xcat = jnp.concatenate([feats, cf], axis=0)                  # (Cp+Chp, HW)
    a = relu(conv3x3(xcat, w0_ref, b0_ref))                      # (Cp, HW)
    a = relu(conv3x3(a, w1_ref, b1_ref))                         # (Cp, HW)
    a = relu(conv1x1(a, w2_ref, b2_ref))                         # (Chp, HW)
    logits = conv1x1(a, w3_ref, b3_ref)                          # (Sop, HW)

    # fused masked_fill(mask == 0, -1e8)
    o_ref[...] = jnp.where(m_ref[...] != 0.0, logits, -1e8)


# ----------------------------------------------------------------------------
# Parameter packing helpers
# ----------------------------------------------------------------------------
def _round_up(x, m):
    return ((x + m - 1) // m) * m


def _prep_conv(w, b, cin_pad, cout_pad):
    """PyTorch OIHW conv params -> ((kh*kw, cout_pad, cin_pad) taps, (cout_pad, 1) bias)."""
    cout, cin, kh, kw = w.shape
    wp = jnp.pad(w.astype(jnp.float32),
                 ((0, cout_pad - cout), (0, cin_pad - cin), (0, 0), (0, 0)))
    taps = jnp.transpose(wp, (2, 3, 0, 1)).reshape(kh * kw, cout_pad, cin_pad)
    bp = jnp.pad(b.astype(jnp.float32), (0, cout_pad - cout)).reshape(cout_pad, 1)
    return taps, bp


def _bcast_spec(arr):
    nd = arr.ndim
    return pl.BlockSpec(arr.shape, lambda b, _nd=nd: (0,) * _nd)


# ----------------------------------------------------------------------------
# Module port
# ----------------------------------------------------------------------------
class MergeHeadNewTokenV1:
    """JAX/Pallas port of MergeHead_new_token_v1 (eval-mode forward)."""

    def __init__(self, in_channels, key, loss_factor=1.0):
        C = in_channels
        Ch = C // 2
        ks = jax.random.split(key, 7)

        def init_conv(k, cout, cin, kh, kw):
            k1, k2 = jax.random.split(k)
            bound = 1.0 / np.sqrt(cin * kh * kw)  # PyTorch default Conv2d init range
            w = jax.random.uniform(k1, (cout, cin, kh, kw), jnp.float32, -bound, bound)
            bb = jax.random.uniform(k2, (cout,), jnp.float32, -bound, bound)
            return w, bb

        # merge_center: Conv3x3(C->C)+ReLU, Conv1x1(C->C/2)+ReLU
        self.mc0 = init_conv(ks[0], C, C, 3, 3)
        self.mc1 = init_conv(ks[1], Ch, C, 1, 1)
        # merge_center_pred: Conv1x1(C/2 -> 2)  (parameter parity only; dead in eval)
        self.cp = init_conv(ks[2], 2, Ch, 1, 1)
        # merge: Conv3x3(C+C/2->C)+ReLU, Conv3x3(C->C)+ReLU, Conv1x1(C->C/2)+ReLU, Conv1x1(C/2->4)
        self.m0 = init_conv(ks[3], C, C + Ch, 3, 3)
        self.m1 = init_conv(ks[4], C, C, 3, 3)
        self.m2 = init_conv(ks[5], Ch, C, 1, 1)
        self.m3 = init_conv(ks[6], 4, Ch, 1, 1)
        self.loss_factor = loss_factor

        # ---- pack parameters for the fused Pallas kernel (MXU tap-matmul form) ----
        self.C, self.Ch = C, Ch
        self.Cp = _round_up(C, 8)       # sublane-aligned channel counts
        self.Chp = _round_up(Ch, 8)
        self.Sop = _round_up(4, 8)      # padded output channels (sliced back to 4)

        self.k_wc0, self.k_bc0 = _prep_conv(*self.mc0, self.Cp, self.Cp)
        self.k_wc1, self.k_bc1 = _prep_conv(*self.mc1, self.Cp, self.Chp)
        w_m0, b_m0 = self.m0
        w0f, self.k_b0 = _prep_conv(w_m0[:, :C], b_m0, self.Cp, self.Cp)
        w0c, _ = _prep_conv(w_m0[:, C:], b_m0, self.Chp, self.Cp)
        # combined tap matrices for the concatenated [feats ; center_feature] input
        self.k_w0 = jnp.concatenate([w0f, w0c], axis=2)           # (9, Cp, Cp+Chp)
        self.k_w1, self.k_b1 = _prep_conv(*self.m1, self.Cp, self.Cp)
        self.k_w2, self.k_b2 = _prep_conv(*self.m2, self.Cp, self.Chp)
        self.k_w3, self.k_b3 = _prep_conv(*self.m3, self.Chp, self.Sop)

    def __call__(self, feats, masks, layouts=None):
        # feats: (B, C, H, W) f32; masks: (B, H, W) with 1 = valid
        B, C, H, W = feats.shape
        HW = H * W

        # lane-dense activations: flatten spatial, pad channels once to sublane multiple
        x = feats.reshape(B, C, HW).astype(jnp.float32)
        if self.Cp > C:
            x = jnp.pad(x, ((0, 0), (0, self.Cp - C), (0, 0)))
        m = masks.reshape(B, 1, HW).astype(jnp.float32)

        # source-column keep masks for the +/-1-column taps of the in-kernel 3x3 convs
        col = np.arange(HW) % W
        km = np.stack([(col != W - 1).astype(np.float32),          # for ow = -1 taps
                       (col != 0).astype(np.float32)])[:, None, :]  # for ow = +1 taps
        km = jnp.asarray(km)                                        # (2, 1, HW)

        weight_args = (self.k_wc0, self.k_bc0, self.k_wc1, self.k_bc1,
                       self.k_w0, self.k_b0,
                       self.k_w1, self.k_b1, self.k_w2, self.k_b2,
                       self.k_w3, self.k_b3)

        out = pl.pallas_call(
            functools.partial(_merge_head_kernel, H=H, W=W),
            out_shape=jax.ShapeDtypeStruct((B, self.Sop, HW), jnp.float32),
            grid=(B,),
            in_specs=[
                pl.BlockSpec((None, self.Cp, HW), lambda b: (b, 0, 0)),   # feats
                pl.BlockSpec((None, 1, HW), lambda b: (b, 0, 0)),         # mask
                _bcast_spec(km),                                          # col keep masks
            ] + [_bcast_spec(a) for a in weight_args],
            out_specs=pl.BlockSpec((None, self.Sop, HW), lambda b: (b, 0, 0)),
            compiler_params=pltpu.CompilerParams(
                dimension_semantics=("parallel",),       # batch across TensorCores
                vmem_limit_bytes=32 * 1024 * 1024,       # safe on v5e/v6e/v7x
            ),
        )(x, m, km, *weight_args)

        segments_logits = out[:, :4, :].reshape(B, 4, H, W)
        # TODO(synk): training branch (sigmoid focal losses + cal_token_cm confusion
        # matrix) is not ported; eval-mode forward returns an empty result_info dict,
        # matching the torch module's non-training behavior.
        result_info = {}
        return result_info, segments_logits


# ----------------------------------------------------------------------------
# Pure-JAX reference (for correctness check of the Pallas path)
# ----------------------------------------------------------------------------
def _ref_conv(x, w, b, relu=False):
    out = jax.lax.conv_general_dilated(
        x, w, (1, 1), "SAME", dimension_numbers=("NCHW", "OIHW", "NCHW"),
        precision=jax.lax.Precision.HIGHEST)
    out = out + b[None, :, None, None]
    if relu:
        out = jnp.maximum(out, 0.0)
    return out


def ref_forward(model, feats, masks):
    cf = _ref_conv(feats, *model.mc0, relu=True)
    cf = _ref_conv(cf, *model.mc1, relu=True)
    x = jnp.concatenate([feats, cf], axis=1)
    m = _ref_conv(x, *model.m0, relu=True)
    m = _ref_conv(m, *model.m1, relu=True)
    m = _ref_conv(m, *model.m2, relu=True)
    seg = _ref_conv(m, *model.m3)
    seg = jnp.where(masks[:, None, :, :] != 0, seg, -1e8)
    return seg


if __name__ == "__main__":
    key = jax.random.PRNGKey(0)
    k_feat, k_param = jax.random.split(key)

    B, C, H, W = 2, 4, 16, 16
    feats = jax.random.normal(k_feat, (B, C, H, W), jnp.float32)

    # masks: valid top-left rectangles (0/1), like padded grid layouts
    rows = jnp.arange(H)[:, None]
    cols = jnp.arange(W)[None, :]
    mask0 = ((rows < 12) & (cols < 10)).astype(jnp.float32)
    mask1 = ((rows < 16) & (cols < 16)).astype(jnp.float32)
    masks = jnp.stack([mask0, mask1], axis=0)

    model = MergeHeadNewTokenV1(in_channels=C, key=k_param)

    result_info, segments_logits = model(feats, masks)
    segments_logits = jax.block_until_ready(segments_logits)

    # verify against pure-JAX reference
    ref = ref_forward(model, feats, masks)
    np.testing.assert_allclose(
        np.asarray(segments_logits), np.asarray(ref), atol=5e-4, rtol=5e-4)
    assert segments_logits.shape == (B, 4, H, W)
    assert isinstance(result_info, dict) and len(result_info) == 0

    print("KERNEL_OK")
</pallas_src>

<mosaic_0001>
module attributes {stable_mosaic.version = 11 : i64} {
  func.func @_merge_head_kernel(%arg0: i32, %arg1: memref<1x8x256xf32, #tpu.memory_space<vmem>>, %arg2: memref<1x1x256xf32, #tpu.memory_space<vmem>>, %arg3: memref<2x1x256xf32, #tpu.memory_space<vmem>>, %arg4: memref<9x8x8xf32, #tpu.memory_space<vmem>>, %arg5: memref<8x1xf32, #tpu.memory_space<vmem>>, %arg6: memref<1x8x8xf32, #tpu.memory_space<vmem>>, %arg7: memref<8x1xf32, #tpu.memory_space<vmem>>, %arg8: memref<9x8x16xf32, #tpu.memory_space<vmem>>, %arg9: memref<8x1xf32, #tpu.memory_space<vmem>>, %arg10: memref<9x8x8xf32, #tpu.memory_space<vmem>>, %arg11: memref<8x1xf32, #tpu.memory_space<vmem>>, %arg12: memref<1x8x8xf32, #tpu.memory_space<vmem>>, %arg13: memref<8x1xf32, #tpu.memory_space<vmem>>, %arg14: memref<1x8x8xf32, #tpu.memory_space<vmem>>, %arg15: memref<8x1xf32, #tpu.memory_space<vmem>>, %arg16: memref<1x8x256xf32, #tpu.memory_space<vmem>>) attributes {dimension_semantics = [#tpu.dimension_semantics<parallel>], iteration_bounds = array<i64: 2>, scalar_prefetch = 0 : i64, scratch_operands = 0 : i64, tpu.core_type = #tpu.core_type<tc>, window_params = [{transform_indices = @transform_0, window_bounds = array<i64: 1, 8, 256>}, {transform_indices = @transform_1, window_bounds = array<i64: 1, 1, 256>}, {pipeline_mode = #tpu.pipeline_mode<synchronous>, transform_indices = @transform_2, window_bounds = array<i64: 2, 1, 256>}, {pipeline_mode = #tpu.pipeline_mode<synchronous>, transform_indices = @transform_3, window_bounds = array<i64: 9, 8, 8>}, {pipeline_mode = #tpu.pipeline_mode<synchronous>, transform_indices = @transform_4, window_bounds = array<i64: 8, 1>}, {pipeline_mode = #tpu.pipeline_mode<synchronous>, transform_indices = @transform_5, window_bounds = array<i64: 1, 8, 8>}, {pipeline_mode = #tpu.pipeline_mode<synchronous>, transform_indices = @transform_6, window_bounds = array<i64: 8, 1>}, {pipeline_mode = #tpu.pipeline_mode<synchronous>, transform_indices = @transform_7, window_bounds = array<i64: 9, 8, 16>}, {pipeline_mode = #tpu.pipeline_mode<synchronous>, transform_indices = @transform_8, window_bounds = array<i64: 8, 1>}, {pipeline_mode = #tpu.pipeline_mode<synchronous>, transform_indices = @transform_9, window_bounds = array<i64: 9, 8, 8>}, {pipeline_mode = #tpu.pipeline_mode<synchronous>, transform_indices = @transform_10, window_bounds = array<i64: 8, 1>}, {pipeline_mode = #tpu.pipeline_mode<synchronous>, transform_indices = @transform_11, window_bounds = array<i64: 1, 8, 8>}, {pipeline_mode = #tpu.pipeline_mode<synchronous>, transform_indices = @transform_12, window_bounds = array<i64: 8, 1>}, {pipeline_mode = #tpu.pipeline_mode<synchronous>, transform_indices = @transform_13, window_bounds = array<i64: 1, 8, 8>}, {pipeline_mode = #tpu.pipeline_mode<synchronous>, transform_indices = @transform_14, window_bounds = array<i64: 8, 1>}, {transform_indices = @transform_15, window_bounds = array<i64: 1, 8, 256>}]} {
    %c0 = arith.constant 0 : index
    %c0_0 = arith.constant 0 : index
    %c0_1 = arith.constant 0 : index
    %0 = vector.load %arg3[%c0, %c0_0, %c0_1] : memref<2x1x256xf32, #tpu.memory_space<vmem>>, vector<1x1x256xf32>
    %1 = vector.shape_cast %0 : vector<1x1x256xf32> to vector<1x256xf32>
    %c1 = arith.constant 1 : index
    %c0_2 = arith.constant 0 : index
    %c0_3 = arith.constant 0 : index
    %2 = vector.load %arg3[%c1, %c0_2, %c0_3] : memref<2x1x256xf32, #tpu.memory_space<vmem>>, vector<1x1x256xf32>
    %3 = vector.shape_cast %2 : vector<1x1x256xf32> to vector<1x256xf32>
    %c0_4 = arith.constant 0 : index
    %c0_5 = arith.constant 0 : index
    %c0_6 = arith.constant 0 : index
    %4 = vector.load %arg1[%c0_4, %c0_5, %c0_6] : memref<1x8x256xf32, #tpu.memory_space<vmem>>, vector<1x8x256xf32>
    %5 = vector.shape_cast %4 : vector<1x8x256xf32> to vector<8x256xf32>
    %6 = vector.broadcast %1 : vector<1x256xf32> to vector<8x256xf32>
    %7 = arith.mulf %5, %6 : vector<8x256xf32>
    %8 = vector.broadcast %3 : vector<1x256xf32> to vector<8x256xf32>
    %9 = arith.mulf %5, %8 : vector<8x256xf32>
    %cst = arith.constant 0.000000e+00 : f32
    %10 = vector.broadcast %cst : f32 to vector<8x17xf32>
    %11 = vector.extract_strided_slice %7 {offsets = [0, 0], sizes = [8, 239], strides = [1, 1]} : vector<8x256xf32> to vector<8x239xf32>
    %12 = tpu.concatenate %10, %11 in 1 : vector<8x17xf32>, vector<8x239xf32> -> vector<8x256xf32>
    %c0_7 = arith.constant 0 : index
    %c0_8 = arith.constant 0 : index
    %c0_9 = arith.constant 0 : index
    %13 = vector.load %arg4[%c0_7, %c0_8, %c0_9] : memref<9x8x8xf32, #tpu.memory_space<vmem>>, vector<1x8x8xf32>
    %14 = vector.shape_cast %13 : vector<1x8x8xf32> to vector<8x8xf32>
    %cst_10 = arith.constant dense<0.000000e+00> : vector<8x256xf32>
    %15 = tpu.matmul %14, %12, %cst_10 {dimension_numbers = #tpu.dot_dimension_numbers<[1], [0], [0], [1], [0, 0, 1, 1], [], []>} : vector<8x8xf32>, vector<8x256xf32>, vector<8x256xf32> -> vector<8x256xf32>
    %cst_11 = arith.constant 0.000000e+00 : f32
    %16 = vector.broadcast %cst_11 : f32 to vector<8x16xf32>
    %17 = vector.extract_strided_slice %5 {offsets = [0, 0], sizes = [8, 240], strides = [1, 1]} : vector<8x256xf32> to vector<8x240xf32>
    %18 = tpu.concatenate %16, %17 in 1 : vector<8x16xf32>, vector<8x240xf32> -> vector<8x256xf32>
    %c1_12 = arith.constant 1 : index
    %c0_13 = arith.constant 0 : index
    %c0_14 = arith.constant 0 : index
    %19 = vector.load %arg4[%c1_12, %c0_13, %c0_14] : memref<9x8x8xf32, #tpu.memory_space<vmem>>, vector<1x8x8xf32>
    %20 = vector.shape_cast %19 : vector<1x8x8xf32> to vector<8x8xf32>
    %cst_15 = arith.constant dense<0.000000e+00> : vector<8x256xf32>
    %21 = tpu.matmul %20, %18, %cst_15 {dimension_numbers = #tpu.dot_dimension_numbers<[1], [0], [0], [1], [0, 0, 1, 1], [], []>} : vector<8x8xf32>, vector<8x256xf32>, vector<8x256xf32> -> vector<8x256xf32>
    %22 = arith.addf %15, %21 : vector<8x256xf32>
    %cst_16 = arith.constant 0.000000e+00 : f32
    %23 = vector.broadcast %cst_16 : f32 to vector<8x15xf32>
    %24 = vector.extract_strided_slice %9 {offsets = [0, 0], sizes = [8, 241], strides = [1, 1]} : vector<8x256xf32> to vector<8x241xf32>
    %25 = tpu.concatenate %23, %24 in 1 : vector<8x15xf32>, vector<8x241xf32> -> vector<8x256xf32>
    %c2 = arith.constant 2 : index
    %c0_17 = arith.constant 0 : index
    %c0_18 = arith.constant 0 : index
    %26 = vector.load %arg4[%c2, %c0_17, %c0_18] : memref<9x8x8xf32, #tpu.memory_space<vmem>>, vector<1x8x8xf32>
    %27 = vector.shape_cast %26 : vector<1x8x8xf32> to vector<8x8xf32>
    %cst_19 = arith.constant dense<0.000000e+00> : vector<8x256xf32>
    %28 = tpu.matmul %27, %25, %cst_19 {dimension_numbers = #tpu.dot_dimension_numbers<[1], [0], [0], [1], [0, 0, 1, 1], [], []>} : vector<8x8xf32>, vector<8x256xf32>, vector<8x256xf32> -> vector<8x256xf32>
    %29 = arith.addf %22, %28 : vector<8x256xf32>
    %cst_20 = arith.constant 0.000000e+00 : f32
    %30 = vector.broadcast %cst_20 : f32 to vector<8x1xf32>
    %31 = vector.extract_strided_slice %7 {offsets = [0, 0], sizes = [8, 255], strides = [1, 1]} : vector<8x256xf32> to vector<8x255xf32>
    %32 = tpu.concatenate %30, %31 in 1 : vector<8x1xf32>, vector<8x255xf32> -> vector<8x256xf32>
    %c3 = arith.constant 3 : index
    %c0_21 = arith.constant 0 : index
    %c0_22 = arith.constant 0 : index
    %33 = vector.load %arg4[%c3, %c0_21, %c0_22] : memref<9x8x8xf32, #tpu.memory_space<vmem>>, vector<1x8x8xf32>
    %34 = vector.shape_cast %33 : vector<1x8x8xf32> to vector<8x8xf32>
    %cst_23 = arith.constant dense<0.000000e+00> : vector<8x256xf32>
    %35 = tpu.matmul %34, %32, %cst_23 {dimension_numbers = #tpu.dot_dimension_numbers<[1], [0], [0], [1], [0, 0, 1, 1], [], []>} : vector<8x8xf32>, vector<8x256xf32>, vector<8x256xf32> -> vector<8x256xf32>
    %36 = arith.addf %29, %35 : vector<8x256xf32>
    %c4 = arith.constant 4 : index
    %c0_24 = arith.constant 0 : index
    %c0_25 = arith.constant 0 : index
    %37 = vector.load %arg4[%c4, %c0_24, %c0_25] : memref<9x8x8xf32, #tpu.memory_space<vmem>>, vector<1x8x8xf32>
    %38 = vector.shape_cast %37 : vector<1x8x8xf32> to vector<8x8xf32>
    %cst_26 = arith.constant dense<0.000000e+00> : vector<8x256xf32>
    %39 = tpu.matmul %38, %5, %cst_26 {dimension_numbers = #tpu.dot_dimension_numbers<[1], [0], [0], [1], [0, 0, 1, 1], [], []>} : vector<8x8xf32>, vector<8x256xf32>, vector<8x256xf32> -> vector<8x256xf32>
    %40 = arith.addf %36, %39 : vector<8x256xf32>
    %cst_27 = arith.constant 0.000000e+00 : f32
    %41 = vector.broadcast %cst_27 : f32 to vector<8x1xf32>
    %42 = vector.extract_strided_slice %9 {offsets = [0, 1], sizes = [8, 255], strides = [1, 1]} : vector<8x256xf32> to vector<8x255xf32>
    %43 = tpu.concatenate %42, %41 in 1 : vector<8x255xf32>, vector<8x1xf32> -> vector<8x256xf32>
    %c5 = arith.constant 5 : index
    %c0_28 = arith.constant 0 : index
    %c0_29 = arith.constant 0 : index
    %44 = vector.load %arg4[%c5, %c0_28, %c0_29] : memref<9x8x8xf32, #tpu.memory_space<vmem>>, vector<1x8x8xf32>
    %45 = vector.shape_cast %44 : vector<1x8x8xf32> to vector<8x8xf32>
    %cst_30 = arith.constant dense<0.000000e+00> : vector<8x256xf32>
    %46 = tpu.matmul %45, %43, %cst_30 {dimension_numbers = #tpu.dot_dimension_numbers<[1], [0], [0], [1], [0, 0, 1, 1], [], []>} : vector<8x8xf32>, vector<8x256xf32>, vector<8x256xf32> -> vector<8x256xf32>
    %47 = arith.addf %40, %46 : vector<8x256xf32>
    %cst_31 = arith.constant 0.000000e+00 : f32
    %48 = vector.broadcast %cst_31 : f32 to vector<8x15xf32>
    %49 = vector.extract_strided_slice %7 {offsets = [0, 15], sizes = [8, 241], strides = [1, 1]} : vector<8x256xf32> to vector<8x241xf32>
    %50 = tpu.concatenate %49, %48 in 1 : vector<8x241xf32>, vector<8x15xf32> -> vector<8x256xf32>
    %c6 = arith.constant 6 : index
    %c0_32 = arith.constant 0 : index
    %c0_33 = arith.constant 0 : index
    %51 = vector.load %arg4[%c6, %c0_32, %c0_33] : memref<9x8x8xf32, #tpu.memory_space<vmem>>, vector<1x8x8xf32>
    %52 = vector.shape_cast %51 : vector<1x8x8xf32> to vector<8x8xf32>
    %cst_34 = arith.constant dense<0.000000e+00> : vector<8x256xf32>
    %53 = tpu.matmul %52, %50, %cst_34 {dimension_numbers = #tpu.dot_dimension_numbers<[1], [0], [0], [1], [0, 0, 1, 1], [], []>} : vector<8x8xf32>, vector<8x256xf32>, vector<8x256xf32> -> vector<8x256xf32>
    %54 = arith.addf %47, %53 : vector<8x256xf32>
    %cst_35 = arith.constant 0.000000e+00 : f32
    %55 = vector.broadcast %cst_35 : f32 to vector<8x16xf32>
    %56 = vector.extract_strided_slice %5 {offsets = [0, 16], sizes = [8, 240], strides = [1, 1]} : vector<8x256xf32> to vector<8x240xf32>
    %57 = tpu.concatenate %56, %55 in 1 : vector<8x240xf32>, vector<8x16xf32> -> vector<8x256xf32>
    %c7 = arith.constant 7 : index
    %c0_36 = arith.constant 0 : index
    %c0_37 = arith.constant 0 : index
    %58 = vector.load %arg4[%c7, %c0_36, %c0_37] : memref<9x8x8xf32, #tpu.memory_space<vmem>>, vector<1x8x8xf32>
    %59 = vector.shape_cast %58 : vector<1x8x8xf32> to vector<8x8xf32>
    %cst_38 = arith.constant dense<0.000000e+00> : vector<8x256xf32>
    %60 = tpu.matmul %59, %57, %cst_38 {dimension_numbers = #tpu.dot_dimension_numbers<[1], [0], [0], [1], [0, 0, 1, 1], [], []>} : vector<8x8xf32>, vector<8x256xf32>, vector<8x256xf32> -> vector<8x256xf32>
    %61 = arith.addf %54, %60 : vector<8x256xf32>
    %cst_39 = arith.constant 0.000000e+00 : f32
    %62 = vector.broadcast %cst_39 : f32 to vector<8x17xf32>
    %63 = vector.extract_strided_slice %9 {offsets = [0, 17], sizes = [8, 239], strides = [1, 1]} : vector<8x256xf32> to vector<8x239xf32>
    %64 = tpu.concatenate %63, %62 in 1 : vector<8x239xf32>, vector<8x17xf32> -> vector<8x256xf32>
    %c8 = arith.constant 8 : index
    %c0_40 = arith.constant 0 : index
    %c0_41 = arith.constant 0 : index
    %65 = vector.load %arg4[%c8, %c0_40, %c0_41] : memref<9x8x8xf32, #tpu.memory_space<vmem>>, vector<1x8x8xf32>
    %66 = vector.shape_cast %65 : vector<1x8x8xf32> to vector<8x8xf32>
    %cst_42 = arith.constant dense<0.000000e+00> : vector<8x256xf32>
    %67 = tpu.matmul %66, %64, %cst_42 {dimension_numbers = #tpu.dot_dimension_numbers<[1], [0], [0], [1], [0, 0, 1, 1], [], []>} : vector<8x8xf32>, vector<8x256xf32>, vector<8x256xf32> -> vector<8x256xf32>
    %68 = arith.addf %61, %67 : vector<8x256xf32>
    %c0_43 = arith.constant 0 : index
    %c0_44 = arith.constant 0 : index
    %69 = vector.load %arg5[%c0_43, %c0_44] : memref<8x1xf32, #tpu.memory_space<vmem>>, vector<8x1xf32>
    %70 = vector.broadcast %69 : vector<8x1xf32> to vector<8x256xf32>
    %71 = arith.addf %68, %70 : vector<8x256xf32>
    %cst_45 = arith.constant 0.000000e+00 : f32
    %72 = vector.broadcast %cst_45 : f32 to vector<8x256xf32>
    %73 = arith.maximumf %71, %72 : vector<8x256xf32>
    %c0_46 = arith.constant 0 : index
    %c0_47 = arith.constant 0 : index
    %c0_48 = arith.constant 0 : index
    %74 = vector.load %arg6[%c0_46, %c0_47, %c0_48] : memref<1x8x8xf32, #tpu.memory_space<vmem>>, vector<1x8x8xf32>
    %75 = vector.shape_cast %74 : vector<1x8x8xf32> to vector<8x8xf32>
    %cst_49 = arith.constant dense<0.000000e+00> : vector<8x256xf32>
    %76 = tpu.matmul %75, %73, %cst_49 {dimension_numbers = #tpu.dot_dimension_numbers<[1], [0], [0], [1], [0, 0, 1, 1], [], []>} : vector<8x8xf32>, vector<8x256xf32>, vector<8x256xf32> -> vector<8x256xf32>
    %c0_50 = arith.constant 0 : index
    %c0_51 = arith.constant 0 : index
    %77 = vector.load %arg7[%c0_50, %c0_51] : memref<8x1xf32, #tpu.memory_space<vmem>>, vector<8x1xf32>
    %78 = vector.broadcast %77 : vector<8x1xf32> to vector<8x256xf32>
    %79 = arith.addf %76, %78 : vector<8x256xf32>
    %cst_52 = arith.constant 0.000000e+00 : f32
    %80 = vector.broadcast %cst_52 : f32 to vector<8x256xf32>
    %81 = arith.maximumf %79, %80 : vector<8x256xf32>
    %82 = tpu.concatenate %5, %81 in 0 : vector<8x256xf32>, vector<8x256xf32> -> vector<16x256xf32>
    %83 = vector.broadcast %1 : vector<1x256xf32> to vector<16x256xf32>
    %84 = arith.mulf %82, %83 : vector<16x256xf32>
    %85 = vector.broadcast %3 : vector<1x256xf32> to vector<16x256xf32>
    %86 = arith.mulf %82, %85 : vector<16x256xf32>
    %cst_53 = arith.constant 0.000000e+00 : f32
    %87 = vector.broadcast %cst_53 : f32 to vector<16x17xf32>
    %88 = vector.extract_strided_slice %84 {offsets = [0, 0], sizes = [16, 239], strides = [1, 1]} : vector<16x256xf32> to vector<16x239xf32>
    %89 = tpu.concatenate %87, %88 in 1 : vector<16x17xf32>, vector<16x239xf32> -> vector<16x256xf32>
    %c0_54 = arith.constant 0 : index
    %c0_55 = arith.constant 0 : index
    %c0_56 = arith.constant 0 : index
    %90 = vector.load %arg8[%c0_54, %c0_55, %c0_56] : memref<9x8x16xf32, #tpu.memory_space<vmem>>, vector<1x8x16xf32>
    %91 = vector.shape_cast %90 : vector<1x8x16xf32> to vector<8x16xf32>
    %cst_57 = arith.constant dense<0.000000e+00> : vector<8x256xf32>
    %92 = tpu.matmul %91, %89, %cst_57 {dimension_numbers = #tpu.dot_dimension_numbers<[1], [0], [0], [1], [0, 0, 1, 1], [], []>} : vector<8x16xf32>, vector<16x256xf32>, vector<8x256xf32> -> vector<8x256xf32>
    %cst_58 = arith.constant 0.000000e+00 : f32
    %93 = vector.broadcast %cst_58 : f32 to vector<16x16xf32>
    %94 = vector.extract_strided_slice %82 {offsets = [0, 0], sizes = [16, 240], strides = [1, 1]} : vector<16x256xf32> to vector<16x240xf32>
    %95 = tpu.concatenate %93, %94 in 1 : vector<16x16xf32>, vector<16x240xf32> -> vector<16x256xf32>
    %c1_59 = arith.constant 1 : index
    %c0_60 = arith.constant 0 : index
    %c0_61 = arith.constant 0 : index
    %96 = vector.load %arg8[%c1_59, %c0_60, %c0_61] : memref<9x8x16xf32, #tpu.memory_space<vmem>>, vector<1x8x16xf32>
    %97 = vector.shape_cast %96 : vector<1x8x16xf32> to vector<8x16xf32>
    %cst_62 = arith.constant dense<0.000000e+00> : vector<8x256xf32>
    %98 = tpu.matmul %97, %95, %cst_62 {dimension_numbers = #tpu.dot_dimension_numbers<[1], [0], [0], [1], [0, 0, 1, 1], [], []>} : vector<8x16xf32>, vector<16x256xf32>, vector<8x256xf32> -> vector<8x256xf32>
    %99 = arith.addf %92, %98 : vector<8x256xf32>
    %cst_63 = arith.constant 0.000000e+00 : f32
    %100 = vector.broadcast %cst_63 : f32 to vector<16x15xf32>
    %101 = vector.extract_strided_slice %86 {offsets = [0, 0], sizes = [16, 241], strides = [1, 1]} : vector<16x256xf32> to vector<16x241xf32>
    %102 = tpu.concatenate %100, %101 in 1 : vector<16x15xf32>, vector<16x241xf32> -> vector<16x256xf32>
    %c2_64 = arith.constant 2 : index
    %c0_65 = arith.constant 0 : index
    %c0_66 = arith.constant 0 : index
    %103 = vector.load %arg8[%c2_64, %c0_65, %c0_66] : memref<9x8x16xf32, #tpu.memory_space<vmem>>, vector<1x8x16xf32>
    %104 = vector.shape_cast %103 : vector<1x8x16xf32> to vector<8x16xf32>
    %cst_67 = arith.constant dense<0.000000e+00> : vector<8x256xf32>
    %105 = tpu.matmul %104, %102, %cst_67 {dimension_numbers = #tpu.dot_dimension_numbers<[1], [0], [0], [1], [0, 0, 1, 1], [], []>} : vector<8x16xf32>, vector<16x256xf32>, vector<8x256xf32> -> vector<8x256xf32>
    %106 = arith.addf %99, %105 : vector<8x256xf32>
    %cst_68 = arith.constant 0.000000e+00 : f32
    %107 = vector.broadcast %cst_68 : f32 to vector<16x1xf32>
    %108 = vector.extract_strided_slice %84 {offsets = [0, 0], sizes = [16, 255], strides = [1, 1]} : vector<16x256xf32> to vector<16x255xf32>
    %109 = tpu.concatenate %107, %108 in 1 : vector<16x1xf32>, vector<16x255xf32> -> vector<16x256xf32>
    %c3_69 = arith.constant 3 : index
    %c0_70 = arith.constant 0 : index
    %c0_71 = arith.constant 0 : index
    %110 = vector.load %arg8[%c3_69, %c0_70, %c0_71] : memref<9x8x16xf32, #tpu.memory_space<vmem>>, vector<1x8x16xf32>
    %111 = vector.shape_cast %110 : vector<1x8x16xf32> to vector<8x16xf32>
    %cst_72 = arith.constant dense<0.000000e+00> : vector<8x256xf32>
    %112 = tpu.matmul %111, %109, %cst_72 {dimension_numbers = #tpu.dot_dimension_numbers<[1], [0], [0], [1], [0, 0, 1, 1], [], []>} : vector<8x16xf32>, vector<16x256xf32>, vector<8x256xf32> -> vector<8x256xf32>
    %113 = arith.addf %106, %112 : vector<8x256xf32>
    %c4_73 = arith.constant 4 : index
    %c0_74 = arith.constant 0 : index
    %c0_75 = arith.constant 0 : index
    %114 = vector.load %arg8[%c4_73, %c0_74, %c0_75] : memref<9x8x16xf32, #tpu.memory_space<vmem>>, vector<1x8x16xf32>
    %115 = vector.shape_cast %114 : vector<1x8x16xf32> to vector<8x16xf32>
    %cst_76 = arith.constant dense<0.000000e+00> : vector<8x256xf32>
    %116 = tpu.matmul %115, %82, %cst_76 {dimension_numbers = #tpu.dot_dimension_numbers<[1], [0], [0], [1], [0, 0, 1, 1], [], []>} : vector<8x16xf32>, vector<16x256xf32>, vector<8x256xf32> -> vector<8x256xf32>
    %117 = arith.addf %113, %116 : vector<8x256xf32>
    %cst_77 = arith.constant 0.000000e+00 : f32
    %118 = vector.broadcast %cst_77 : f32 to vector<16x1xf32>
    %119 = vector.extract_strided_slice %86 {offsets = [0, 1], sizes = [16, 255], strides = [1, 1]} : vector<16x256xf32> to vector<16x255xf32>
    %120 = tpu.concatenate %119, %118 in 1 : vector<16x255xf32>, vector<16x1xf32> -> vector<16x256xf32>
    %c5_78 = arith.constant 5 : index
    %c0_79 = arith.constant 0 : index
    %c0_80 = arith.constant 0 : index
    %121 = vector.load %arg8[%c5_78, %c0_79, %c0_80] : memref<9x8x16xf32, #tpu.memory_space<vmem>>, vector<1x8x16xf32>
    %122 = vector.shape_cast %121 : vector<1x8x16xf32> to vector<8x16xf32>
    %cst_81 = arith.constant dense<0.000000e+00> : vector<8x256xf32>
    %123 = tpu.matmul %122, %120, %cst_81 {dimension_numbers = #tpu.dot_dimension_numbers<[1], [0], [0], [1], [0, 0, 1, 1], [], []>} : vector<8x16xf32>, vector<16x256xf32>, vector<8x256xf32> -> vector<8x256xf32>
    %124 = arith.addf %117, %123 : vector<8x256xf32>
    %cst_82 = arith.constant 0.000000e+00 : f32
    %125 = vector.broadcast %cst_82 : f32 to vector<16x15xf32>
    %126 = vector.extract_strided_slice %84 {offsets = [0, 15], sizes = [16, 241], strides = [1, 1]} : vector<16x256xf32> to vector<16x241xf32>
    %127 = tpu.concatenate %126, %125 in 1 : vector<16x241xf32>, vector<16x15xf32> -> vector<16x256xf32>
    %c6_83 = arith.constant 6 : index
    %c0_84 = arith.constant 0 : index
    %c0_85 = arith.constant 0 : index
    %128 = vector.load %arg8[%c6_83, %c0_84, %c0_85] : memref<9x8x16xf32, #tpu.memory_space<vmem>>, vector<1x8x16xf32>
    %129 = vector.shape_cast %128 : vector<1x8x16xf32> to vector<8x16xf32>
    %cst_86 = arith.constant dense<0.000000e+00> : vector<8x256xf32>
    %130 = tpu.matmul %129, %127, %cst_86 {dimension_numbers = #tpu.dot_dimension_numbers<[1], [0], [0], [1], [0, 0, 1, 1], [], []>} : vector<8x16xf32>, vector<16x256xf32>, vector<8x256xf32> -> vector<8x256xf32>
    %131 = arith.addf %124, %130 : vector<8x256xf32>
    %cst_87 = arith.constant 0.000000e+00 : f32
    %132 = vector.broadcast %cst_87 : f32 to vector<16x16xf32>
    %133 = vector.extract_strided_slice %82 {offsets = [0, 16], sizes = [16, 240], strides = [1, 1]} : vector<16x256xf32> to vector<16x240xf32>
    %134 = tpu.concatenate %133, %132 in 1 : vector<16x240xf32>, vector<16x16xf32> -> vector<16x256xf32>
    %c7_88 = arith.constant 7 : index
    %c0_89 = arith.constant 0 : index
    %c0_90 = arith.constant 0 : index
    %135 = vector.load %arg8[%c7_88, %c0_89, %c0_90] : memref<9x8x16xf32, #tpu.memory_space<vmem>>, vector<1x8x16xf32>
    %136 = vector.shape_cast %135 : vector<1x8x16xf32> to vector<8x16xf32>
    %cst_91 = arith.constant dense<0.000000e+00> : vector<8x256xf32>
    %137 = tpu.matmul %136, %134, %cst_91 {dimension_numbers = #tpu.dot_dimension_numbers<[1], [0], [0], [1], [0, 0, 1, 1], [], []>} : vector<8x16xf32>, vector<16x256xf32>, vector<8x256xf32> -> vector<8x256xf32>
    %138 = arith.addf %131, %137 : vector<8x256xf32>
    %cst_92 = arith.constant 0.000000e+00 : f32
    %139 = vector.broadcast %cst_92 : f32 to vector<16x17xf32>
    %140 = vector.extract_strided_slice %86 {offsets = [0, 17], sizes = [16, 239], strides = [1, 1]} : vector<16x256xf32> to vector<16x239xf32>
    %141 = tpu.concatenate %140, %139 in 1 : vector<16x239xf32>, vector<16x17xf32> -> vector<16x256xf32>
    %c8_93 = arith.constant 8 : index
    %c0_94 = arith.constant 0 : index
    %c0_95 = arith.constant 0 : index
    %142 = vector.load %arg8[%c8_93, %c0_94, %c0_95] : memref<9x8x16xf32, #tpu.memory_space<vmem>>, vector<1x8x16xf32>
    %143 = vector.shape_cast %142 : vector<1x8x16xf32> to vector<8x16xf32>
    %cst_96 = arith.constant dense<0.000000e+00> : vector<8x256xf32>
    %144 = tpu.matmul %143, %141, %cst_96 {dimension_numbers = #tpu.dot_dimension_numbers<[1], [0], [0], [1], [0, 0, 1, 1], [], []>} : vector<8x16xf32>, vector<16x256xf32>, vector<8x256xf32> -> vector<8x256xf32>
    %145 = arith.addf %138, %144 : vector<8x256xf32>
    %c0_97 = arith.constant 0 : index
    %c0_98 = arith.constant 0 : index
    %146 = vector.load %arg9[%c0_97, %c0_98] : memref<8x1xf32, #tpu.memory_space<vmem>>, vector<8x1xf32>
    %147 = vector.broadcast %146 : vector<8x1xf32> to vector<8x256xf32>
    %148 = arith.addf %145, %147 : vector<8x256xf32>
    %cst_99 = arith.constant 0.000000e+00 : f32
    %149 = vector.broadcast %cst_99 : f32 to vector<8x256xf32>
    %150 = arith.maximumf %148, %149 : vector<8x256xf32>
    %151 = vector.broadcast %1 : vector<1x256xf32> to vector<8x256xf32>
    %152 = arith.mulf %150, %151 : vector<8x256xf32>
    %153 = vector.broadcast %3 : vector<1x256xf32> to vector<8x256xf32>
    %154 = arith.mulf %150, %153 : vector<8x256xf32>
    %cst_100 = arith.constant 0.000000e+00 : f32
    %155 = vector.broadcast %cst_100 : f32 to vector<8x17xf32>
    %156 = vector.extract_strided_slice %152 {offsets = [0, 0], sizes = [8, 239], strides = [1, 1]} : vector<8x256xf32> to vector<8x239xf32>
    %157 = tpu.concatenate %155, %156 in 1 : vector<8x17xf32>, vector<8x239xf32> -> vector<8x256xf32>
    %c0_101 = arith.constant 0 : index
    %c0_102 = arith.constant 0 : index
    %c0_103 = arith.constant 0 : index
    %158 = vector.load %arg10[%c0_101, %c0_102, %c0_103] : memref<9x8x8xf32, #tpu.memory_space<vmem>>, vector<1x8x8xf32>
    %159 = vector.shape_cast %158 : vector<1x8x8xf32> to vector<8x8xf32>
    %cst_104 = arith.constant dense<0.000000e+00> : vector<8x256xf32>
    %160 = tpu.matmul %159, %157, %cst_104 {dimension_numbers = #tpu.dot_dimension_numbers<[1], [0], [0], [1], [0, 0, 1, 1], [], []>} : vector<8x8xf32>, vector<8x256xf32>, vector<8x256xf32> -> vector<8x256xf32>
    %cst_105 = arith.constant 0.000000e+00 : f32
    %161 = vector.broadcast %cst_105 : f32 to vector<8x16xf32>
    %162 = vector.extract_strided_slice %150 {offsets = [0, 0], sizes = [8, 240], strides = [1, 1]} : vector<8x256xf32> to vector<8x240xf32>
    %163 = tpu.concatenate %161, %162 in 1 : vector<8x16xf32>, vector<8x240xf32> -> vector<8x256xf32>
    %c1_106 = arith.constant 1 : index
    %c0_107 = arith.constant 0 : index
    %c0_108 = arith.constant 0 : index
    %164 = vector.load %arg10[%c1_106, %c0_107, %c0_108] : memref<9x8x8xf32, #tpu.memory_space<vmem>>, vector<1x8x8xf32>
    %165 = vector.shape_cast %164 : vector<1x8x8xf32> to vector<8x8xf32>
    %cst_109 = arith.constant dense<0.000000e+00> : vector<8x256xf32>
    %166 = tpu.matmul %165, %163, %cst_109 {dimension_numbers = #tpu.dot_dimension_numbers<[1], [0], [0], [1], [0, 0, 1, 1], [], []>} : vector<8x8xf32>, vector<8x256xf32>, vector<8x256xf32> -> vector<8x256xf32>
    %167 = arith.addf %160, %166 : vector<8x256xf32>
    %cst_110 = arith.constant 0.000000e+00 : f32
    %168 = vector.broadcast %cst_110 : f32 to vector<8x15xf32>
    %169 = vector.extract_strided_slice %154 {offsets = [0, 0], sizes = [8, 241], strides = [1, 1]} : vector<8x256xf32> to vector<8x241xf32>
    %170 = tpu.concatenate %168, %169 in 1 : vector<8x15xf32>, vector<8x241xf32> -> vector<8x256xf32>
    %c2_111 = arith.constant 2 : index
    %c0_112 = arith.constant 0 : index
    %c0_113 = arith.constant 0 : index
    %171 = vector.load %arg10[%c2_111, %c0_112, %c0_113] : memref<9x8x8xf32, #tpu.memory_space<vmem>>, vector<1x8x8xf32>
    %172 = vector.shape_cast %171 : vector<1x8x8xf32> to vector<8x8xf32>
    %cst_114 = arith.constant dense<0.000000e+00> : vector<8x256xf32>
    %173 = tpu.matmul %172, %170, %cst_114 {dimension_numbers = #tpu.dot_dimension_numbers<[1], [0], [0], [1], [0, 0, 1, 1], [], []>} : vector<8x8xf32>, vector<8x256xf32>, vector<8x256xf32> -> vector<8x256xf32>
    %174 = arith.addf %167, %173 : vector<8x256xf32>
    %cst_115 = arith.constant 0.000000e+00 : f32
    %175 = vector.broadcast %cst_115 : f32 to vector<8x1xf32>
    %176 = vector.extract_strided_slice %152 {offsets = [0, 0], sizes = [8, 255], strides = [1, 1]} : vector<8x256xf32> to vector<8x255xf32>
    %177 = tpu.concatenate %175, %176 in 1 : vector<8x1xf32>, vector<8x255xf32> -> vector<8x256xf32>
    %c3_116 = arith.constant 3 : index
    %c0_117 = arith.constant 0 : index
    %c0_118 = arith.constant 0 : index
    %178 = vector.load %arg10[%c3_116, %c0_117, %c0_118] : memref<9x8x8xf32, #tpu.memory_space<vmem>>, vector<1x8x8xf32>
    %179 = vector.shape_cast %178 : vector<1x8x8xf32> to vector<8x8xf32>
    %cst_119 = arith.constant dense<0.000000e+00> : vector<8x256xf32>
    %180 = tpu.matmul %179, %177, %cst_119 {dimension_numbers = #tpu.dot_dimension_numbers<[1], [0], [0], [1], [0, 0, 1, 1], [], []>} : vector<8x8xf32>, vector<8x256xf32>, vector<8x256xf32> -> vector<8x256xf32>
    %181 = arith.addf %174, %180 : vector<8x256xf32>
    %c4_120 = arith.constant 4 : index
    %c0_121 = arith.constant 0 : index
    %c0_122 = arith.constant 0 : index
    %182 = vector.load %arg10[%c4_120, %c0_121, %c0_122] : memref<9x8x8xf32, #tpu.memory_space<vmem>>, vector<1x8x8xf32>
    %183 = vector.shape_cast %182 : vector<1x8x8xf32> to vector<8x8xf32>
    %cst_123 = arith.constant dense<0.000000e+00> : vector<8x256xf32>
    %184 = tpu.matmul %183, %150, %cst_123 {dimension_numbers = #tpu.dot_dimension_numbers<[1], [0], [0], [1], [0, 0, 1, 1], [], []>} : vector<8x8xf32>, vector<8x256xf32>, vector<8x256xf32> -> vector<8x256xf32>
    %185 = arith.addf %181, %184 : vector<8x256xf32>
    %cst_124 = arith.constant 0.000000e+00 : f32
    %186 = vector.broadcast %cst_124 : f32 to vector<8x1xf32>
    %187 = vector.extract_strided_slice %154 {offsets = [0, 1], sizes = [8, 255], strides = [1, 1]} : vector<8x256xf32> to vector<8x255xf32>
    %188 = tpu.concatenate %187, %186 in 1 : vector<8x255xf32>, vector<8x1xf32> -> vector<8x256xf32>
    %c5_125 = arith.constant 5 : index
    %c0_126 = arith.constant 0 : index
    %c0_127 = arith.constant 0 : index
    %189 = vector.load %arg10[%c5_125, %c0_126, %c0_127] : memref<9x8x8xf32, #tpu.memory_space<vmem>>, vector<1x8x8xf32>
    %190 = vector.shape_cast %189 : vector<1x8x8xf32> to vector<8x8xf32>
    %cst_128 = arith.constant dense<0.000000e+00> : vector<8x256xf32>
    %191 = tpu.matmul %190, %188, %cst_128 {dimension_numbers = #tpu.dot_dimension_numbers<[1], [0], [0], [1], [0, 0, 1, 1], [], []>} : vector<8x8xf32>, vector<8x256xf32>, vector<8x256xf32> -> vector<8x256xf32>
    %192 = arith.addf %185, %191 : vector<8x256xf32>
    %cst_129 = arith.constant 0.000000e+00 : f32
    %193 = vector.broadcast %cst_129 : f32 to vector<8x15xf32>
    %194 = vector.extract_strided_slice %152 {offsets = [0, 15], sizes = [8, 241], strides = [1, 1]} : vector<8x256xf32> to vector<8x241xf32>
    %195 = tpu.concatenate %194, %193 in 1 : vector<8x241xf32>, vector<8x15xf32> -> vector<8x256xf32>
    %c6_130 = arith.constant 6 : index
    %c0_131 = arith.constant 0 : index
    %c0_132 = arith.constant 0 : index
    %196 = vector.load %arg10[%c6_130, %c0_131, %c0_132] : memref<9x8x8xf32, #tpu.memory_space<vmem>>, vector<1x8x8xf32>
    %197 = vector.shape_cast %196 : vector<1x8x8xf32> to vector<8x8xf32>
    %cst_133 = arith.constant dense<0.000000e+00> : vector<8x256xf32>
    %198 = tpu.matmul %197, %195, %cst_133 {dimension_numbers = #tpu.dot_dimension_numbers<[1], [0], [0], [1], [0, 0, 1, 1], [], []>} : vector<8x8xf32>, vector<8x256xf32>, vector<8x256xf32> -> vector<8x256xf32>
    %199 = arith.addf %192, %198 : vector<8x256xf32>
    %cst_134 = arith.constant 0.000000e+00 : f32
    %200 = vector.broadcast %cst_134 : f32 to vector<8x16xf32>
    %201 = vector.extract_strided_slice %150 {offsets = [0, 16], sizes = [8, 240], strides = [1, 1]} : vector<8x256xf32> to vector<8x240xf32>
    %202 = tpu.concatenate %201, %200 in 1 : vector<8x240xf32>, vector<8x16xf32> -> vector<8x256xf32>
    %c7_135 = arith.constant 7 : index
    %c0_136 = arith.constant 0 : index
    %c0_137 = arith.constant 0 : index
    %203 = vector.load %arg10[%c7_135, %c0_136, %c0_137] : memref<9x8x8xf32, #tpu.memory_space<vmem>>, vector<1x8x8xf32>
    %204 = vector.shape_cast %203 : vector<1x8x8xf32> to vector<8x8xf32>
    %cst_138 = arith.constant dense<0.000000e+00> : vector<8x256xf32>
    %205 = tpu.matmul %204, %202, %cst_138 {dimension_numbers = #tpu.dot_dimension_numbers<[1], [0], [0], [1], [0, 0, 1, 1], [], []>} : vector<8x8xf32>, vector<8x256xf32>, vector<8x256xf32> -> vector<8x256xf32>
    %206 = arith.addf %199, %205 : vector<8x256xf32>
    %cst_139 = arith.constant 0.000000e+00 : f32
    %207 = vector.broadcast %cst_139 : f32 to vector<8x17xf32>
    %208 = vector.extract_strided_slice %154 {offsets = [0, 17], sizes = [8, 239], strides = [1, 1]} : vector<8x256xf32> to vector<8x239xf32>
    %209 = tpu.concatenate %208, %207 in 1 : vector<8x239xf32>, vector<8x17xf32> -> vector<8x256xf32>
    %c8_140 = arith.constant 8 : index
    %c0_141 = arith.constant 0 : index
    %c0_142 = arith.constant 0 : index
    %210 = vector.load %arg10[%c8_140, %c0_141, %c0_142] : memref<9x8x8xf32, #tpu.memory_space<vmem>>, vector<1x8x8xf32>
    %211 = vector.shape_cast %210 : vector<1x8x8xf32> to vector<8x8xf32>
    %cst_143 = arith.constant dense<0.000000e+00> : vector<8x256xf32>
    %212 = tpu.matmul %211, %209, %cst_143 {dimension_numbers = #tpu.dot_dimension_numbers<[1], [0], [0], [1], [0, 0, 1, 1], [], []>} : vector<8x8xf32>, vector<8x256xf32>, vector<8x256xf32> -> vector<8x256xf32>
    %213 = arith.addf %206, %212 : vector<8x256xf32>
    %c0_144 = arith.constant 0 : index
    %c0_145 = arith.constant 0 : index
    %214 = vector.load %arg11[%c0_144, %c0_145] : memref<8x1xf32, #tpu.memory_space<vmem>>, vector<8x1xf32>
    %215 = vector.broadcast %214 : vector<8x1xf32> to vector<8x256xf32>
    %216 = arith.addf %213, %215 : vector<8x256xf32>
    %cst_146 = arith.constant 0.000000e+00 : f32
    %217 = vector.broadcast %cst_146 : f32 to vector<8x256xf32>
    %218 = arith.maximumf %216, %217 : vector<8x256xf32>
    %c0_147 = arith.constant 0 : index
    %c0_148 = arith.constant 0 : index
    %c0_149 = arith.constant 0 : index
    %219 = vector.load %arg12[%c0_147, %c0_148, %c0_149] : memref<1x8x8xf32, #tpu.memory_space<vmem>>, vector<1x8x8xf32>
    %220 = vector.shape_cast %219 : vector<1x8x8xf32> to vector<8x8xf32>
    %cst_150 = arith.constant dense<0.000000e+00> : vector<8x256xf32>
    %221 = tpu.matmul %220, %218, %cst_150 {dimension_numbers = #tpu.dot_dimension_numbers<[1], [0], [0], [1], [0, 0, 1, 1], [], []>} : vector<8x8xf32>, vector<8x256xf32>, vector<8x256xf32> -> vector<8x256xf32>
    %c0_151 = arith.constant 0 : index
    %c0_152 = arith.constant 0 : index
    %222 = vector.load %arg13[%c0_151, %c0_152] : memref<8x1xf32, #tpu.memory_space<vmem>>, vector<8x1xf32>
    %223 = vector.broadcast %222 : vector<8x1xf32> to vector<8x256xf32>
    %224 = arith.addf %221, %223 : vector<8x256xf32>
    %cst_153 = arith.constant 0.000000e+00 : f32
    %225 = vector.broadcast %cst_153 : f32 to vector<8x256xf32>
    %226 = arith.maximumf %224, %225 : vector<8x256xf32>
    %c0_154 = arith.constant 0 : index
    %c0_155 = arith.constant 0 : index
    %c0_156 = arith.constant 0 : index
    %227 = vector.load %arg14[%c0_154, %c0_155, %c0_156] : memref<1x8x8xf32, #tpu.memory_space<vmem>>, vector<1x8x8xf32>
    %228 = vector.shape_cast %227 : vector<1x8x8xf32> to vector<8x8xf32>
    %cst_157 = arith.constant dense<0.000000e+00> : vector<8x256xf32>
    %229 = tpu.matmul %228, %226, %cst_157 {dimension_numbers = #tpu.dot_dimension_numbers<[1], [0], [0], [1], [0, 0, 1, 1], [], []>} : vector<8x8xf32>, vector<8x256xf32>, vector<8x256xf32> -> vector<8x256xf32>
    %c0_158 = arith.constant 0 : index
    %c0_159 = arith.constant 0 : index
    %230 = vector.load %arg15[%c0_158, %c0_159] : memref<8x1xf32, #tpu.memory_space<vmem>>, vector<8x1xf32>
    %231 = vector.broadcast %230 : vector<8x1xf32> to vector<8x256xf32>
    %232 = arith.addf %229, %231 : vector<8x256xf32>
    %c0_160 = arith.constant 0 : index
    %c0_161 = arith.constant 0 : index
    %c0_162 = arith.constant 0 : index
    %233 = vector.load %arg2[%c0_160, %c0_161, %c0_162] : memref<1x1x256xf32, #tpu.memory_space<vmem>>, vector<1x1x256xf32>
    %234 = vector.shape_cast %233 : vector<1x1x256xf32> to vector<1x256xf32>
    %cst_163 = arith.constant 0.000000e+00 : f32
    %235 = vector.broadcast %cst_163 : f32 to vector<1x256xf32>
    %236 = arith.cmpf one, %234, %235 : vector<1x256xf32>
    %cst_164 = arith.constant -1.000000e+08 : f32
    %237 = vector.shape_cast %236 : vector<1x256xi1> to vector<1x256xi1>
    %238 = vector.broadcast %237 : vector<1x256xi1> to vector<8x256xi1>
    %239 = vector.broadcast %cst_164 : f32 to vector<8x256xf32>
    %240 = arith.select %238, %232, %239 : vector<8x256xi1>, vector<8x256xf32>
    %c0_165 = arith.constant 0 : index
    %c0_166 = arith.constant 0 : index
    %c0_167 = arith.constant 0 : index
    %241 = vector.load %arg16[%c0_165, %c0_166, %c0_167] : memref<1x8x256xf32, #tpu.memory_space<vmem>>, vector<1x8x256xf32>
    %242 = vector.shape_cast %241 : vector<1x8x256xf32> to vector<8x256xf32>
    %243 = vector.shape_cast %240 : vector<8x256xf32> to vector<1x8x256xf32>
    tpu.vector_store %arg16[%c0_165, %c0_166, %c0_167], %243 {strides = array<i32>} : memref<1x8x256xf32, #tpu.memory_space<vmem>>, vector<1x8x256xf32>,
    return
  }
  func.func @transform_0(%arg0: i32) -> (i32, i32, i32) {
    %c0_i32 = arith.constant 0 : i32
    %c0_i32_0 = arith.constant 0 : i32
    %c0_i32_1 = arith.constant 0 : i32
    return %arg0, %c0_i32, %c0_i32_0 : i32, i32, i32
  }
  func.func @transform_1(%arg0: i32) -> (i32, i32, i32) {
    %c0_i32 = arith.constant 0 : i32
    %c0_i32_0 = arith.constant 0 : i32
    %c0_i32_1 = arith.constant 0 : i32
    return %arg0, %c0_i32, %c0_i32_0 : i32, i32, i32
  }
  func.func @transform_2(%arg0: i32) -> (i32, i32, i32) {
    %c0_i32 = arith.constant 0 : i32
    %c0_i32_0 = arith.constant 0 : i32
    %c0_i32_1 = arith.constant 0 : i32
    %c0_i32_2 = arith.constant 0 : i32
    return %c0_i32, %c0_i32_0, %c0_i32_1 : i32, i32, i32
  }
  func.func @transform_3(%arg0: i32) -> (i32, i32, i32) {
    %c0_i32 = arith.constant 0 : i32
    %c0_i32_0 = arith.constant 0 : i32
    %c0_i32_1 = arith.constant 0 : i32
    %c0_i32_2 = arith.constant 0 : i32
    return %c0_i32, %c0_i32_0, %c0_i32_1 : i32, i32, i32
  }
  func.func @transform_4(%arg0: i32) -> (i32, i32) {
    %c0_i32 = arith.constant 0 : i32
    %c0_i32_0 = arith.constant 0 : i32
    %c0_i32_1 = arith.constant 0 : i32
    return %c0_i32, %c0_i32_0 : i32, i32
  }
  func.func @transform_5(%arg0: i32) -> (i32, i32, i32) {
    %c0_i32 = arith.constant 0 : i32
    %c0_i32_0 = arith.constant 0 : i32
    %c0_i32_1 = arith.constant 0 : i32
    %c0_i32_2 = arith.constant 0 : i32
    return %c0_i32, %c0_i32_0, %c0_i32_1 : i32, i32, i32
  }
  func.func @transform_6(%arg0: i32) -> (i32, i32) {
    %c0_i32 = arith.constant 0 : i32
    %c0_i32_0 = arith.constant 0 : i32
    %c0_i32_1 = arith.constant 0 : i32
    return %c0_i32, %c0_i32_0 : i32, i32
  }
  func.func @transform_7(%arg0: i32) -> (i32, i32, i32) {
    %c0_i32 = arith.constant 0 : i32
    %c0_i32_0 = arith.constant 0 : i32
    %c0_i32_1 = arith.constant 0 : i32
    %c0_i32_2 = arith.constant 0 : i32
    return %c0_i32, %c0_i32_0, %c0_i32_1 : i32, i32, i32
  }
  func.func @transform_8(%arg0: i32) -> (i32, i32) {
    %c0_i32 = arith.constant 0 : i32
    %c0_i32_0 = arith.constant 0 : i32
    %c0_i32_1 = arith.constant 0 : i32
    return %c0_i32, %c0_i32_0 : i32, i32
  }
  func.func @transform_9(%arg0: i32) -> (i32, i32, i32) {
    %c0_i32 = arith.constant 0 : i32
    %c0_i32_0 = arith.constant 0 : i32
    %c0_i32_1 = arith.constant 0 : i32
    %c0_i32_2 = arith.constant 0 : i32
    return %c0_i32, %c0_i32_0, %c0_i32_1 : i32, i32, i32
  }
  func.func @transform_10(%arg0: i32) -> (i32, i32) {
    %c0_i32 = arith.constant 0 : i32
    %c0_i32_0 = arith.constant 0 : i32
    %c0_i32_1 = arith.constant 0 : i32
    return %c0_i32, %c0_i32_0 : i32, i32
  }
  func.func @transform_11(%arg0: i32) -> (i32, i32, i32) {
    %c0_i32 = arith.constant 0 : i32
    %c0_i32_0 = arith.constant 0 : i32
    %c0_i32_1 = arith.constant 0 : i32
    %c0_i32_2 = arith.constant 0 : i32
    return %c0_i32, %c0_i32_0, %c0_i32_1 : i32, i32, i32
  }
  func.func @transform_12(%arg0: i32) -> (i32, i32) {
    %c0_i32 = arith.constant 0 : i32
    %c0_i32_0 = arith.constant 0 : i32
    %c0_i32_1 = arith.constant 0 : i32
    return %c0_i32, %c0_i32_0 : i32, i32
  }
  func.func @transform_13(%arg0: i32) -> (i32, i32, i32) {
    %c0_i32 = arith.constant 0 : i32
    %c0_i32_0 = arith.constant 0 : i32
    %c0_i32_1 = arith.constant 0 : i32
    %c0_i32_2 = arith.constant 0 : i32
    return %c0_i32, %c0_i32_0, %c0_i32_1 : i32, i32, i32
  }
  func.func @transform_14(%arg0: i32) -> (i32, i32) {
    %c0_i32 = arith.constant 0 : i32
    %c0_i32_0 = arith.constant 0 : i32
    %c0_i32_1 = arith.constant 0 : i32
    return %c0_i32, %c0_i32_0 : i32, i32
  }
  func.func @transform_15(%arg0: i32) -> (i32, i32, i32) {
    %c0_i32 = arith.constant 0 : i32
    %c0_i32_0 = arith.constant 0 : i32
    %c0_i32_1 = arith.constant 0 : i32
    return %arg0, %c0_i32, %c0_i32_0 : i32, i32, i32
  }
}

</mosaic_0001>

<llo_original>
// kernel: tpu_custom_call.1
$region0: #{tpu_custom_call.1}
  #allocation0 [shape = 'u32[]', space=smem, size = 0x4, offset = 0x4, fixed_abs, tag = 'smem constant byte address 0x4 - core index']
  #allocation1 [shape = 'u32[144,128]{1,0:T(1,128)}', space=vmem, size = 0x12000, scoped, tag = 'internal scratch']
  %s0 = inlined_call_operand.vmem [shape: f32[2,8,256], index: 0, kind: input, shape index: {}]
  %s1 = inlined_call_operand.vmem [shape: f32[2,1,256], index: 1, kind: input, shape index: {}]
  %s2 = inlined_call_operand.vmem [shape: f32[2,1,256], index: 2, kind: input, shape index: {}]
  %s3 = inlined_call_operand.vmem [shape: f32[9,8,8], index: 3, kind: input, shape index: {}]
  %s4 = inlined_call_operand.vmem [shape: f32[8,1], index: 4, kind: input, shape index: {}]
  %s5 = inlined_call_operand.vmem [shape: f32[1,8,8], index: 5, kind: input, shape index: {}]
  %s6 = inlined_call_operand.vmem [shape: f32[8,1], index: 6, kind: input, shape index: {}]
  %s7 = inlined_call_operand.vmem [shape: f32[9,8,16], index: 7, kind: input, shape index: {}]
  %s8 = inlined_call_operand.vmem [shape: f32[8,1], index: 8, kind: input, shape index: {}]
  %s9 = inlined_call_operand.vmem [shape: f32[9,8,8], index: 9, kind: input, shape index: {}]
  %s10 = inlined_call_operand.vmem [shape: f32[8,1], index: 10, kind: input, shape index: {}]
  %s11 = inlined_call_operand.vmem [shape: f32[1,8,8], index: 11, kind: input, shape index: {}]
  %s12 = inlined_call_operand.vmem [shape: f32[8,1], index: 12, kind: input, shape index: {}]
  %s13 = inlined_call_operand.vmem [shape: f32[1,8,8], index: 13, kind: input, shape index: {}]
  %s14 = inlined_call_operand.vmem [shape: f32[8,1], index: 14, kind: input, shape index: {}]
  %s15 = inlined_call_operand.hbm [shape: f32[2,8,256], index: 15, kind: output, shape index: {}]
  %s16 = sld [smem:[#allocation0]]
  $region93: #{tpu_custom_call.1} parent=0
    _
  %s18 = ssub.s32 1, %s16
  %s19 = scalar_select 0, %s18, %s16
  $region1: #{tpu_custom_call.1} parent=0
    #allocation2 [shape = 'u8[16384]{0}', space=vmem, size = 0x4000, scoped, tag = 'output window, operand 0']
    #allocation3 [shape = 's32[2]{0}', space=sflag, size = 0x8, scoped, tag = 'scoped memory for tpu_custom_call.1']
    %20 = vsyncpa [#allocation3], 0
    %s21 = scalar_lea.sflag [#allocation3], 1
    %22 = vsyncpa %s21, 0
    loop: start=0, step=1, limit=4
    $region2: #{tpu_custom_call.1} parent=1 // loop_pre_header
      _
    $region3: #{tpu_custom_call.1} parent=1 // loop_header
      %s24 = sphi 0, %s28
      %p25 = scmp.ge.s32.totalorder %s24, 4
      %s34 = sphi 0, %s36
      %s37 = sphi 0, %s34
      %s38 = sphi 0, %s37
      %s54 = sphi 0, %s38
      %s60 = sphi 0, %s62
      %s63 = sphi 0, %s60
      %s64 = sphi 0, %s63
      %s80 = sphi 0, %s64
      %s84 = sphi 0, %s84
      %s86 = sphi 0, %s84
      %s87 = sphi 0, %s86
      %s101 = sphi 0, %s87
      %s105 = sphi 0, %s105
      %s107 = sphi 0, %s105
      %s108 = sphi 0, %s107
      %s122 = sphi 0, %s108
      %s126 = sphi 0, %s126
      %s128 = sphi 0, %s126
      %s129 = sphi 0, %s128
      %s143 = sphi 0, %s129
      %s147 = sphi 0, %s147
      %s149 = sphi 0, %s147
      %s150 = sphi 0, %s149
      %s164 = sphi 0, %s150
      %s168 = sphi 0, %s168
      %s170 = sphi 0, %s168
      %s171 = sphi 0, %s170
      %s185 = sphi 0, %s171
      %s189 = sphi 0, %s189
      %s191 = sphi 0, %s189
      %s192 = sphi 0, %s191
      %s206 = sphi 0, %s192
      %s210 = sphi 0, %s210
      %s212 = sphi 0, %s210
      %s213 = sphi 0, %s212
      %s227 = sphi 0, %s213
      %s231 = sphi 0, %s231
      %s233 = sphi 0, %s231
      %s234 = sphi 0, %s233
      %s248 = sphi 0, %s234
      %s252 = sphi 0, %s252
      %s254 = sphi 0, %s252
      %s255 = sphi 0, %s254
      %s269 = sphi 0, %s255
      %s273 = sphi 0, %s273
      %s275 = sphi 0, %s273
      %s276 = sphi 0, %s275
      %s290 = sphi 0, %s276
      %s294 = sphi 0, %s294
      %s296 = sphi 0, %s294
      %s297 = sphi 0, %s296
      %s311 = sphi 0, %s297
      %s315 = sphi 0, %s315
      %s317 = sphi 0, %s315
      %s318 = sphi 0, %s317
      %s332 = sphi 0, %s318
      %s336 = sphi 0, %s336
      %s338 = sphi 0, %s336
      %s339 = sphi 0, %s338
      %s353 = sphi 0, %s339
      %s359 = sphi 0, %s361
      %s362 = sphi 0, %s359
      %s363 = sphi 0, %s362
      %s379 = sphi 0, %s363
    $region4: #{tpu_custom_call.1} parent=1 // loop_header_branch
      %27 = sbr.rel (%p25) target = $region8
    $region5: #{tpu_custom_call.1} parent=1 // loop_body
      %s29 = ssub.s32 %s24, 1
      %s30 = ssub.s32 %s24, 2
      %s31 = sadd.s32 %s24, 1
      %s32 = ssub.s32 %s24, %s31
      %p33 = scmp.eq.s32.totalorder %s32, 0
      %s35 = sadd.s32 %s34, 1
      %s36 = scalar_select %p33, %s34, %s35
      %p39 = pneg %p33
      %p40 = scmp.eq.s32.totalorder %s24, 1
      %p41 = por %p39, %p40
      %p42 = scmp.ne.s32.totalorder %s34, %s37
      %p43 = scmp.eq.s32.totalorder %s24, 0
      %p44 = por %p42, %p43
      %p45 = scmp.ne.s32.totalorder %s34, %s37
      %p46 = scmp.eq.s32.totalorder %s29, 1
      %p47 = por %p45, %p46
      %p48 = scmp.ne.s32.totalorder %s37, %s38
      %p49 = scmp.eq.s32.totalorder %s29, 0
      %p50 = por %p48, %p49
      %p51 = scmp.ne.s32.totalorder %s37, %s38
      %p52 = scmp.eq.s32.totalorder %s30, 1
      %p53 = por %p51, %p52
      %p55 = scmp.ne.s32.totalorder %s38, %s54
      %p56 = scmp.eq.s32.totalorder %s30, 0
      %p57 = por %p55, %p56
      %s58 = ssub.s32 %s24, %s31
      %p59 = scmp.eq.s32.totalorder %s58, 0
      %s61 = sadd.s32 %s60, 1
      %s62 = scalar_select %p59, %s60, %s61
      %p65 = pneg %p59
      %p66 = scmp.eq.s32.totalorder %s24, 1
      %p67 = por %p65, %p66
      %p68 = scmp.ne.s32.totalorder %s60, %s63
      %p69 = scmp.eq.s32.totalorder %s24, 0
      %p70 = por %p68, %p69
      %p71 = scmp.ne.s32.totalorder %s60, %s63
      %p72 = scmp.eq.s32.totalorder %s29, 1
      %p73 = por %p71, %p72
      %p74 = scmp.ne.s32.totalorder %s63, %s64
      %p75 = scmp.eq.s32.totalorder %s29, 0
      %p76 = por %p74, %p75
      %p77 = scmp.ne.s32.totalorder %s63, %s64
      %p78 = scmp.eq.s32.totalorder %s30, 1
      %p79 = por %p77, %p78
      %p81 = scmp.ne.s32.totalorder %s64, %s80
      %p82 = scmp.eq.s32.totalorder %s30, 0
      %p83 = por %p81, %p82
      %s85 = sadd.s32 %s84, 1
      %p88 = scmp.eq.s32.totalorder %s24, 1
      %p89 = scmp.ne.s32.totalorder %s84, %s86
      %p90 = scmp.eq.s32.totalorder %s24, 0
      %p91 = por %p89, %p90
      %p92 = scmp.ne.s32.totalorder %s84, %s86
      %p93 = scmp.eq.s32.totalorder %s29, 1
      %p94 = por %p92, %p93
      %p95 = scmp.ne.s32.totalorder %s86, %s87
      %p96 = scmp.eq.s32.totalorder %s29, 0
      %p97 = por %p95, %p96
      %p98 = scmp.ne.s32.totalorder %s86, %s87
      %p99 = scmp.eq.s32.totalorder %s30, 1
      %p100 = por %p98, %p99
      %p102 = scmp.ne.s32.totalorder %s87, %s101
      %p103 = scmp.eq.s32.totalorder %s30, 0
      %p104 = por %p102, %p103
      %s106 = sadd.s32 %s105, 1
      %p109 = scmp.eq.s32.totalorder %s24, 1
      %p110 = scmp.ne.s32.totalorder %s105, %s107
      %p111 = scmp.eq.s32.totalorder %s24, 0
      %p112 = por %p110, %p111
      %p113 = scmp.ne.s32.totalorder %s105, %s107
      %p114 = scmp.eq.s32.totalorder %s29, 1
      %p115 = por %p113, %p114
      %p116 = scmp.ne.s32.totalorder %s107, %s108
      %p117 = scmp.eq.s32.totalorder %s29, 0
      %p118 = por %p116, %p117
      %p119 = scmp.ne.s32.totalorder %s107, %s108
      %p120 = scmp.eq.s32.totalorder %s30, 1
      %p121 = por %p119, %p120
      %p123 = scmp.ne.s32.totalorder %s108, %s122
      %p124 = scmp.eq.s32.totalorder %s30, 0
      %p125 = por %p123, %p124
      %s127 = sadd.s32 %s126, 1
      %p130 = scmp.eq.s32.totalorder %s24, 1
      %p131 = scmp.ne.s32.totalorder %s126, %s128
      %p132 = scmp.eq.s32.totalorder %s24, 0
      %p133 = por %p131, %p132
      %p134 = scmp.ne.s32.totalorder %s126, %s128
      %p135 = scmp.eq.s32.totalorder %s29, 1
      %p136 = por %p134, %p135
      %p137 = scmp.ne.s32.totalorder %s128, %s129
      %p138 = scmp.eq.s32.totalorder %s29, 0
      %p139 = por %p137, %p138
      %p140 = scmp.ne.s32.totalorder %s128, %s129
      %p141 = scmp.eq.s32.totalorder %s30, 1
      %p142 = por %p140, %p141
      %p144 = scmp.ne.s32.totalorder %s129, %s143
      %p145 = scmp.eq.s32.totalorder %s30, 0
      %p146 = por %p144, %p145
      %s148 = sadd.s32 %s147, 1
      %p151 = scmp.eq.s32.totalorder %s24, 1
      %p152 = scmp.ne.s32.totalorder %s147, %s149
      %p153 = scmp.eq.s32.totalorder %s24, 0
      %p154 = por %p152, %p153
      %p155 = scmp.ne.s32.totalorder %s147, %s149
      %p156 = scmp.eq.s32.totalorder %s29, 1
      %p157 = por %p155, %p156
      %p158 = scmp.ne.s32.totalorder %s149, %s150
      %p159 = scmp.eq.s32.totalorder %s29, 0
      %p160 = por %p158, %p159
      %p161 = scmp.ne.s32.totalorder %s149, %s150
      %p162 = scmp.eq.s32.totalorder %s30, 1
      %p163 = por %p161, %p162
      %p165 = scmp.ne.s32.totalorder %s150, %s164
      %p166 = scmp.eq.s32.totalorder %s30, 0
      %p167 = por %p165, %p166
      %s169 = sadd.s32 %s168, 1
      %p172 = scmp.eq.s32.totalorder %s24, 1
      %p173 = scmp.ne.s32.totalorder %s168, %s170
      %p174 = scmp.eq.s32.totalorder %s24, 0
      %p175 = por %p173, %p174
      %p176 = scmp.ne.s32.totalorder %s168, %s170
      %p177 = scmp.eq.s32.totalorder %s29, 1
      %p178 = por %p176, %p177
      %p179 = scmp.ne.s32.totalorder %s170, %s171
      %p180 = scmp.eq.s32.totalorder %s29, 0
      %p181 = por %p179, %p180
      %p182 = scmp.ne.s32.totalorder %s170, %s171
      %p183 = scmp.eq.s32.totalorder %s30, 1
      %p184 = por %p182, %p183
      %p186 = scmp.ne.s32.totalorder %s171, %s185
      %p187 = scmp.eq.s32.totalorder %s30, 0
      %p188 = por %p186, %p187
      %s190 = sadd.s32 %s189, 1
      %p193 = scmp.eq.s32.totalorder %s24, 1
      %p194 = scmp.ne.s32.totalorder %s189, %s191
      %p195 = scmp.eq.s32.totalorder %s24, 0
      %p196 = por %p194, %p195
      %p197 = scmp.ne.s32.totalorder %s189, %s191
      %p198 = scmp.eq.s32.totalorder %s29, 1
      %p199 = por %p197, %p198
      %p200 = scmp.ne.s32.totalorder %s191, %s192
      %p201 = scmp.eq.s32.totalorder %s29, 0
      %p202 = por %p200, %p201
      %p203 = scmp.ne.s32.totalorder %s191, %s192
      %p204 = scmp.eq.s32.totalorder %s30, 1
      %p205 = por %p203, %p204
      %p207 = scmp.ne.s32.totalorder %s192, %s206
      %p208 = scmp.eq.s32.totalorder %s30, 0
      %p209 = por %p207, %p208
      %s211 = sadd.s32 %s210, 1
      %p214 = scmp.eq.s32.totalorder %s24, 1
      %p215 = scmp.ne.s32.totalorder %s210, %s212
      %p216 = scmp.eq.s32.totalorder %s24, 0
      %p217 = por %p215, %p216
      %p218 = scmp.ne.s32.totalorder %s210, %s212
      %p219 = scmp.eq.s32.totalorder %s29, 1
      %p220 = por %p218, %p219
      %p221 = scmp.ne.s32.totalorder %s212, %s213
      %p222 = scmp.eq.s32.totalorder %s29, 0
      %p223 = por %p221, %p222
      %p224 = scmp.ne.s32.totalorder %s212, %s213
      %p225 = scmp.eq.s32.totalorder %s30, 1
      %p226 = por %p224, %p225
      %p228 = scmp.ne.s32.totalorder %s213, %s227
      %p229 = scmp.eq.s32.totalorder %s30, 0
      %p230 = por %p228, %p229
      %s232 = sadd.s32 %s231, 1
      %p235 = scmp.eq.s32.totalorder %s24, 1
      %p236 = scmp.ne.s32.totalorder %s231, %s233
      %p237 = scmp.eq.s32.totalorder %s24, 0
      %p238 = por %p236, %p237
      %p239 = scmp.ne.s32.totalorder %s231, %s233
      %p240 = scmp.eq.s32.totalorder %s29, 1
      %p241 = por %p239, %p240
      %p242 = scmp.ne.s32.totalorder %s233, %s234
      %p243 = scmp.eq.s32.totalorder %s29, 0
      %p244 = por %p242, %p243
      %p245 = scmp.ne.s32.totalorder %s233, %s234
      %p246 = scmp.eq.s32.totalorder %s30, 1
      %p247 = por %p245, %p246
      %p249 = scmp.ne.s32.totalorder %s234, %s248
      %p250 = scmp.eq.s32.totalorder %s30, 0
      %p251 = por %p249, %p250
      %s253 = sadd.s32 %s252, 1
      %p256 = scmp.eq.s32.totalorder %s24, 1
      %p257 = scmp.ne.s32.totalorder %s252, %s254
      %p258 = scmp.eq.s32.totalorder %s24, 0
      %p259 = por %p257, %p258
      %p260 = scmp.ne.s32.totalorder %s252, %s254
      %p261 = scmp.eq.s32.totalorder %s29, 1
      %p262 = por %p260, %p261
      %p263 = scmp.ne.s32.totalorder %s254, %s255
      %p264 = scmp.eq.s32.totalorder %s29, 0
      %p265 = por %p263, %p264
      %p266 = scmp.ne.s32.totalorder %s254, %s255
      %p267 = scmp.eq.s32.totalorder %s30, 1
      %p268 = por %p266, %p267
      %p270 = scmp.ne.s32.totalorder %s255, %s269
      %p271 = scmp.eq.s32.totalorder %s30, 0
      %p272 = por %p270, %p271
      %s274 = sadd.s32 %s273, 1
      %p277 = scmp.eq.s32.totalorder %s24, 1
      %p278 = scmp.ne.s32.totalorder %s273, %s275
      %p279 = scmp.eq.s32.totalorder %s24, 0
      %p280 = por %p278, %p279
      %p281 = scmp.ne.s32.totalorder %s273, %s275
      %p282 = scmp.eq.s32.totalorder %s29, 1
      %p283 = por %p281, %p282
      %p284 = scmp.ne.s32.totalorder %s275, %s276
      %p285 = scmp.eq.s32.totalorder %s29, 0
      %p286 = por %p284, %p285
      %p287 = scmp.ne.s32.totalorder %s275, %s276
      %p288 = scmp.eq.s32.totalorder %s30, 1
      %p289 = por %p287, %p288
      %p291 = scmp.ne.s32.totalorder %s276, %s290
      %p292 = scmp.eq.s32.totalorder %s30, 0
      %p293 = por %p291, %p292
      %s295 = sadd.s32 %s294, 1
      %p298 = scmp.eq.s32.totalorder %s24, 1
      %p299 = scmp.ne.s32.totalorder %s294, %s296
      %p300 = scmp.eq.s32.totalorder %s24, 0
      %p301 = por %p299, %p300
      %p302 = scmp.ne.s32.totalorder %s294, %s296
      %p303 = scmp.eq.s32.totalorder %s29, 1
      %p304 = por %p302, %p303
      %p305 = scmp.ne.s32.totalorder %s296, %s297
      %p306 = scmp.eq.s32.totalorder %s29, 0
      %p307 = por %p305, %p306
      %p308 = scmp.ne.s32.totalorder %s296, %s297
      %p309 = scmp.eq.s32.totalorder %s30, 1
      %p310 = por %p308, %p309
      %p312 = scmp.ne.s32.totalorder %s297, %s311
      %p313 = scmp.eq.s32.totalorder %s30, 0
      %p314 = por %p312, %p313
      %s316 = sadd.s32 %s315, 1
      %p319 = scmp.eq.s32.totalorder %s24, 1
      %p320 = scmp.ne.s32.totalorder %s315, %s317
      %p321 = scmp.eq.s32.totalorder %s24, 0
      %p322 = por %p320, %p321
      %p323 = scmp.ne.s32.totalorder %s315, %s317
      %p324 = scmp.eq.s32.totalorder %s29, 1
      %p325 = por %p323, %p324
      %p326 = scmp.ne.s32.totalorder %s317, %s318
      %p327 = scmp.eq.s32.totalorder %s29, 0
      %p328 = por %p326, %p327
      %p329 = scmp.ne.s32.totalorder %s317, %s318
      %p330 = scmp.eq.s32.totalorder %s30, 1
      %p331 = por %p329, %p330
      %p333 = scmp.ne.s32.totalorder %s318, %s332
      %p334 = scmp.eq.s32.totalorder %s30, 0
      %p335 = por %p333, %p334
      %s337 = sadd.s32 %s336, 1
      %p340 = scmp.eq.s32.totalorder %s24, 1
      %p341 = scmp.ne.s32.totalorder %s336, %s338
      %p342 = scmp.eq.s32.totalorder %s24, 0
      %p343 = por %p341, %p342
      %p344 = scmp.ne.s32.totalorder %s336, %s338
      %p345 = scmp.eq.s32.totalorder %s29, 1
      %p346 = por %p344, %p345
      %p347 = scmp.ne.s32.totalorder %s338, %s339
      %p348 = scmp.eq.s32.totalorder %s29, 0
      %p349 = por %p347, %p348
      %p350 = scmp.ne.s32.totalorder %s338, %s339
      %p351 = scmp.eq.s32.totalorder %s30, 1
      %p352 = por %p350, %p351
      %p354 = scmp.ne.s32.totalorder %s339, %s353
      %p355 = scmp.eq.s32.totalorder %s30, 0
      %p356 = por %p354, %p355
      %s357 = ssub.s32 %s24, %s31
      %p358 = scmp.eq.s32.totalorder %s357, 0
      %s360 = sadd.s32 %s359, 1
      %s361 = scalar_select %p358, %s359, %s360
      %p364 = pneg %p358
      %p365 = scmp.eq.s32.totalorder %s24, 1
      %p366 = por %p364, %p365
      %p367 = scmp.ne.s32.totalorder %s359, %s362
      %p368 = scmp.eq.s32.totalorder %s24, 0
      %p369 = por %p367, %p368
      %p370 = scmp.ne.s32.totalorder %s359, %s362
      %p371 = scmp.eq.s32.totalorder %s29, 1
      %p372 = por %p370, %p371
      %p373 = scmp.ne.s32.totalorder %s362, %s363
      %p374 = scmp.eq.s32.totalorder %s29, 0
      %p375 = por %p373, %p374
      %p376 = scmp.ne.s32.totalorder %s362, %s363
      %p377 = scmp.eq.s32.totalorder %s30, 1
      %p378 = por %p376, %p377
      %p380 = scmp.ne.s32.totalorder %s363, %s379
      %p381 = scmp.eq.s32.totalorder %s30, 0
      %p382 = por %p380, %p381
      %p383 = scmp.le.s32.totalorder 1, %s24
      %p384 = scmp.lt.s32.totalorder %s24, 3
      %p385 = pnand %p383, %p384
      %p386 = pneg %p385
      // Predicated region
      $region9: #{tpu_custom_call.1} parent=5 // pred_check
        _
      $region10: #{tpu_custom_call.1} parent=5 // pred_check_branch
        %388 = sbr.rel (%p385) target = $region12
      $region11: #{tpu_custom_call.1} parent=5 // pred_region
        %s389 = ssub.s32 %s24, 1
        // Predicated region
        $region13: #{tpu_custom_call.1} parent=11 // pred_check
          %p390 = pneg %p97
        $region14: #{tpu_custom_call.1} parent=11 // pred_check_branch
          %392 = sbr.rel (%p390) target = $region16
        $region15: #{tpu_custom_call.1} parent=11 // pred_region
          _
        $region16: #{tpu_custom_call.1} parent=11 // pred_fallthru
          _
        // Predicated region
        $region17: #{tpu_custom_call.1} parent=11 // pred_check
          %p393 = pneg %p118
        $region18: #{tpu_custom_call.1} parent=11 // pred_check_branch
          %395 = sbr.rel (%p393) target = $region20
        $region19: #{tpu_custom_call.1} parent=11 // pred_region
          _
        $region20: #{tpu_custom_call.1} parent=11 // pred_fallthru
          _
        // Predicated region
        $region21: #{tpu_custom_call.1} parent=11 // pred_check
          %p396 = pneg %p139
        $region22: #{tpu_custom_call.1} parent=11 // pred_check_branch
          %398 = sbr.rel (%p396) target = $region24
        $region23: #{tpu_custom_call.1} parent=11 // pred_region
          _
        $region24: #{tpu_custom_call.1} parent=11 // pred_fallthru
          _
        // Predicated region
        $region25: #{tpu_custom_call.1} parent=11 // pred_check
          %p399 = pneg %p160
        $region26: #{tpu_custom_call.1} parent=11 // pred_check_branch
          %401 = sbr.rel (%p399) target = $region28
        $region27: #{tpu_custom_call.1} parent=11 // pred_region
          _
        $region28: #{tpu_custom_call.1} parent=11 // pred_fallthru
          _
        // Predicated region
        $region29: #{tpu_custom_call.1} parent=11 // pred_check
          %p402 = pneg %p181
        $region30: #{tpu_custom_call.1} parent=11 // pred_check_branch
          %404 = sbr.rel (%p402) target = $region32
        $region31: #{tpu_custom_call.1} parent=11 // pred_region
          _
        $region32: #{tpu_custom_call.1} parent=11 // pred_fallthru
          _
        // Predicated region
        $region33: #{tpu_custom_call.1} parent=11 // pred_check
          %p405 = pneg %p202
        $region34: #{tpu_custom_call.1} parent=11 // pred_check_branch
          %407 = sbr.rel (%p405) target = $region36
        $region35: #{tpu_custom_call.1} parent=11 // pred_region
          _
        $region36: #{tpu_custom_call.1} parent=11 // pred_fallthru
          _
        // Predicated region
        $region37: #{tpu_custom_call.1} parent=11 // pred_check
          %p408 = pneg %p223
        $region38: #{tpu_custom_call.1} parent=11 // pred_check_branch
          %410 = sbr.rel (%p408) target = $region40
        $region39: #{tpu_custom_call.1} parent=11 // pred_region
          _
        $region40: #{tpu_custom_call.1} parent=11 // pred_fallthru
          _
        // Predicated region
        $region41: #{tpu_custom_call.1} parent=11 // pred_check
          %p411 = pneg %p244
        $region42: #{tpu_custom_call.1} parent=11 // pred_check_branch
          %413 = sbr.rel (%p411) target = $region44
        $region43: #{tpu_custom_call.1} parent=11 // pred_region
          _
        $region44: #{tpu_custom_call.1} parent=11 // pred_fallthru
          _
        // Predicated region
        $region45: #{tpu_custom_call.1} parent=11 // pred_check
          %p414 = pneg %p265
        $region46: #{tpu_custom_call.1} parent=11 // pred_check_branch
          %416 = sbr.rel (%p414) target = $region48
        $region47: #{tpu_custom_call.1} parent=11 // pred_region
          _
        $region48: #{tpu_custom_call.1} parent=11 // pred_fallthru
          _
        // Predicated region
        $region49: #{tpu_custom_call.1} parent=11 // pred_check
          %p417 = pneg %p286
        $region50: #{tpu_custom_call.1} parent=11 // pred_check_branch
          %419 = sbr.rel (%p417) target = $region52
        $region51: #{tpu_custom_call.1} parent=11 // pred_region
          _
        $region52: #{tpu_custom_call.1} parent=11 // pred_fallthru
          _
        // Predicated region
        $region53: #{tpu_custom_call.1} parent=11 // pred_check
          %p420 = pneg %p307
        $region54: #{tpu_custom_call.1} parent=11 // pred_check_branch
          %422 = sbr.rel (%p420) target = $region56
        $region55: #{tpu_custom_call.1} parent=11 // pred_region
          _
        $region56: #{tpu_custom_call.1} parent=11 // pred_fallthru
          _
        // Predicated region
        $region57: #{tpu_custom_call.1} parent=11 // pred_check
          %p423 = pneg %p328
        $region58: #{tpu_custom_call.1} parent=11 // pred_check_branch
          %425 = sbr.rel (%p423) target = $region60
        $region59: #{tpu_custom_call.1} parent=11 // pred_region
          _
        $region60: #{tpu_custom_call.1} parent=11 // pred_fallthru
          _
        // Predicated region
        $region61: #{tpu_custom_call.1} parent=11 // pred_check
          %p426 = pneg %p349
        $region62: #{tpu_custom_call.1} parent=11 // pred_check_branch
          %428 = sbr.rel (%p426) target = $region64
        $region63: #{tpu_custom_call.1} parent=11 // pred_region
          _
        $region64: #{tpu_custom_call.1} parent=11 // pred_fallthru
          _
      $region12: #{tpu_custom_call.1} parent=5 // pred_fallthru
        _
      %p429 = scmp.lt.s32.totalorder %s24, 2
      // Predicated region
      $region65: #{tpu_custom_call.1} parent=5 // pred_check
        %p430 = pneg %p429
      $region66: #{tpu_custom_call.1} parent=5 // pred_check_branch
        %432 = sbr.rel (%p430) target = $region68
      $region67: #{tpu_custom_call.1} parent=5 // pred_region
        // Predicated region
        $region69: #{tpu_custom_call.1} parent=67 // pred_check
          %p433 = pneg %p44
        $region70: #{tpu_custom_call.1} parent=67 // pred_check_branch
          %435 = sbr.rel (%p433) target = $region72
        $region71: #{tpu_custom_call.1} parent=67 // pred_region
          %p436 = scmp.lt.s32.totalorder %s24, 1
          %s437 = scalar_select %p436, %s24, 1
          %s438 = smul.addr %s437, 2
          %s439 = smul.addr %s438, 8
          %s440 = scalar_lea.vmem %s0, %s439
        $region72: #{tpu_custom_call.1} parent=67 // pred_fallthru
          _
        // Predicated region
        $region73: #{tpu_custom_call.1} parent=67 // pred_check
          %p441 = pneg %p70
        $region74: #{tpu_custom_call.1} parent=67 // pred_check_branch
          %443 = sbr.rel (%p441) target = $region76
        $region75: #{tpu_custom_call.1} parent=67 // pred_region
          %p444 = scmp.lt.s32.totalorder %s24, 1
          %s445 = scalar_select %p444, %s24, 1
          %s446 = smul.addr %s445, 2
          %s447 = scalar_lea.vmem %s1, %s446
        $region76: #{tpu_custom_call.1} parent=67 // pred_fallthru
          _
      $region68: #{tpu_custom_call.1} parent=5 // pred_fallthru
        _
      %p448 = scmp.le.s32.totalorder 1, %s24
      %p449 = scmp.lt.s32.totalorder %s24, 3
      %p450 = pnand %p448, %p449
      %p451 = pneg %p450
      // Predicated region
      $region77: #{tpu_custom_call.1} parent=5 // pred_check
        _
      $region78: #{tpu_custom_call.1} parent=5 // pred_check_branch
        %453 = sbr.rel (%p450) target = $region80
      $region79: #{tpu_custom_call.1} parent=5 // pred_region
        %s454 = ssub.s32 %s24, 1
        %p455 = scmp.lt.s32.totalorder %s29, 1
        %s456 = scalar_select %p455, %s29, 1
        %s457 = smul.addr %s456, 2
        %s458 = smul.addr %s457, 8
        %s459 = scalar_lea.vmem %s0, %s458
        %p460 = pneg %p50
        %p461 = pneg %p47
        %p462 = scmp.lt.s32.totalorder %s29, 1
        %s463 = scalar_select %p462, %s29, 1
        %s464 = smul.addr %s463, 2
        %s465 = scalar_lea.vmem %s1, %s464
        %p466 = pneg %p76
        %p467 = pneg %p73
        %p468 = pneg %p97
        %p469 = pneg %p94
        %p470 = pneg %p118
        %p471 = pneg %p115
        %p472 = pneg %p139
        %p473 = pneg %p136
        %p474 = pneg %p160
        %p475 = pneg %p157
        %p476 = pneg %p181
        %p477 = pneg %p178
        %p478 = pneg %p202
        %p479 = pneg %p199
        %p480 = pneg %p223
        %p481 = pneg %p220
        %p482 = pneg %p244
        %p483 = pneg %p241
        %p484 = pneg %p265
        %p485 = pneg %p262
        %p486 = pneg %p286
        %p487 = pneg %p283
        %p488 = pneg %p307
        %p489 = pneg %p304
        %p490 = pneg %p328
        %p491 = pneg %p325
        %p492 = pneg %p349
        %p493 = pneg %p346
        %p494 = pneg %p375
        %p495 = pneg %p372
        %s496 = sand.u32 %s362, 1
        %s497 = scalar_lea.sflag [#allocation3], %s496
        %s498 = sand.u32 %s362, 1
        %s499 = smul.addr %s498, 16
        %s500 = scalar_lea.vmem [#allocation2], %s499
        %p501 = scmp.lt.s32.totalorder %s29, 1
        %s502 = scalar_select %p501, %s29, 1
        %s503 = smul.addr %s502, 2
        %s504 = smul.addr %s503, 8
        %s505 = scalar_lea.vmem %s0, %s504
        %p506 = scmp.lt.s32.totalorder %s29, 1
        %s507 = scalar_select %p506, %s29, 1
        %s508 = smul.addr %s507, 2
        %s509 = scalar_lea.vmem %s1, %s508
        %v510 = vld [vmem:[%s2] sm:$0x3]
        %s511 = scalar_lea.vmem %s2, 2
        %v512 = vld [vmem:[%s511] sm:$0x3]
        %v513 = vld [vmem:[%s505] sm:$0xff]
        %v514 = vld [vmem:[%s505 + $0x8] sm:$0xff]
        %v516 = vlaneseq
        %v517 = vshrl.u32 %v516, 7
        %v518 = vsub.s32 0, %v517
        %v519 = vrot.slane %v510, %v518
        %v520 = vlaneseq
        %v521 = vshrl.u32 %v520, 7
        %v522 = vsub.s32 1, %v521
        %v523 = vrot.slane %v510, %v522
        %v526 = vmul.f32 %v513, %v519
        %v527 = vmul.f32 %v514, %v523
        %v529 = vlaneseq
        %v530 = vshrl.u32 %v529, 7
        %v531 = vsub.s32 0, %v530
        %v532 = vrot.slane %v512, %v531
        %v533 = vlaneseq
        %v534 = vshrl.u32 %v533, 7
        %v535 = vsub.s32 1, %v534
        %v536 = vrot.slane %v512, %v535
        %v539 = vmul.f32 %v513, %v532
        %v540 = vmul.f32 %v514, %v536
        %543 = vrot.lane.b32.xlu0 %v526, 17
        %v544 = vpop.permute.xlu0 %543
        %545 = vrot.lane.b32.xlu0 %v527, 17
        %v546 = vpop.permute.xlu0 %545
        %vm547 = vcmask 138240
        %v548 = vsel %vm547, %v544, %v546
        %v551 = vsel %vm547, 0.0, %v544
        %v552 = vld [vmem:[%s3] sm:$0xff]
        %555 = vrot.lane.b32.xlu0 %v513, 16
        %v556 = vpop.permute.xlu0 %555
        %557 = vrot.lane.b32.xlu0 %v514, 16
        %v558 = vpop.permute.xlu0 %557
        %vm559 = vcmask 130048
        %v560 = vsel %vm559, %v556, %v558
        %v563 = vsel %vm559, 0.0, %v556
        %s564 = scalar_lea.vmem %s3, 8
        %v565 = vld [vmem:[%s564] sm:$0xff]
        %vm566 = vcmask 64512
        %v568 = vsel %vm566, %v565, 0
        %570 = vmatprep.subr.mxu0 %v560
        %571 = vmatpush1.msra.mxu0 %v563
        %572 = vmatprep.subr.mxu0 0.0
        %573 = vmatpush1.msra.mxu0 0.0
        %574 = vmatprep.subr.mxu0 0.0
        %575 = vmatpush1.msra.mxu0 0.0
        %576 = vmatprep.subr.mxu0 0.0
        %577 = vmatpush1.msra.mxu0 0.0
        %578 = vmatprep.subr.mxu0 0.0
        %579 = vmatpush1.msra.mxu0 0.0
        %580 = vmatprep.subr.mxu0 0.0
        %581 = vmatpush1.msra.mxu0 0.0
        %582 = vmatprep.subr.mxu0 0.0
        %583 = vmatpush1.msra.mxu0 0.0
        %584 = vmatprep.subr.mxu0 0.0
        %585 = vmatpush1.msra.mxu0 0.0
        %586 = vmatprep.subr.mxu0 0.0
        %587 = vmatpush1.msra.mxu0 0.0
        %588 = vmatprep.subr.mxu0 0.0
        %589 = vmatpush1.msra.mxu0 0.0
        %590 = vmatprep.subr.mxu0 0.0
        %591 = vmatpush1.msra.mxu0 0.0
        %592 = vmatprep.subr.mxu0 0.0
        %593 = vmatpush1.msra.mxu0 0.0
        %594 = vmatprep.subr.mxu0 0.0
        %595 = vmatpush1.msra.mxu0 0.0
        %596 = vmatprep.subr.mxu0 0.0
        %597 = vmatpush1.msra.mxu0 0.0
        %598 = vmatprep.subr.mxu0 0.0
        %599 = vmatpush1.msra.mxu0 0.0
        %600 = vmatprep.subr.mxu0 0.0
        %601 = vmatpush1.msra.mxu0 0.0
        %602 = vmatprep.subr.mxu0 0.0
        %603 = vmatpush1.msra.mxu0 0.0
        %604 = vmatprep.subr.mxu0 0.0
        %605 = vmatpush1.msra.mxu0 0.0
        %606 = vmatprep.subr.mxu0 0.0
        %607 = vmatpush1.msra.mxu0 0.0
        %608 = vmatprep.subr.mxu0 0.0
        %609 = vmatpush1.msra.mxu0 0.0
        %610 = vmatprep.subr.mxu0 0.0
        %611 = vmatpush1.msra.mxu0 0.0
        %612 = vmatprep.subr.mxu0 0.0
        %613 = vmatpush1.msra.mxu0 0.0
        %614 = vmatprep.subr.mxu0 0.0
        %615 = vmatpush1.msra.mxu0 0.0
        %616 = vmatprep.subr.mxu0 0.0
        %617 = vmatpush1.msra.mxu0 0.0
        %618 = vmatprep.subr.mxu0 0.0
        %619 = vmatpush1.msra.mxu0 0.0
        %620 = vmatprep.subr.mxu0 0.0
        %621 = vmatpush1.msra.mxu0 0.0
        %622 = vmatprep.subr.mxu0 0.0
        %623 = vmatpush1.msra.mxu0 0.0
        %624 = vmatprep.subr.mxu0 0.0
        %625 = vmatpush1.msra.mxu0 0.0
        %626 = vmatprep.subr.mxu0 0.0
        %627 = vmatpush1.msra.mxu0 0.0
        %628 = vmatprep.subr.mxu0 0.0
        %629 = vmatpush1.msra.mxu0 0.0
        %630 = vmatprep.subr.mxu0 0.0
        %631 = vmatpush1.msra.mxu0 0.0
        %632 = vmatprep.subr.mxu0 0.0
        %633 = vmatpush1.msra.mxu0 0.0
        %634 = vmatprep.mubr.f32.mxu0 0.0
        %635 = vmatmul.mubr.f32.gmra.mrb[0].mxu0 %v568
        %v636 = vpop.f32.mrb[0].mxu0
        %v637 = vadd.f32 0.0, %v636
        %v638 = vpop.f32.mrb[0].mxu0
        %v639 = vadd.f32 0.0, %v638
        %640 = vdwg.mxu0
        %v642 = vsel %vm566, %v552, 0
        %644 = vmatprep.subr.mxu0 %v548
        %645 = vmatpush1.msra.mxu0 %v551
        %646 = vmatprep.subr.mxu0 0.0
        %647 = vmatpush1.msra.mxu0 0.0
        %648 = vmatprep.subr.mxu0 0.0
        %649 = vmatpush1.msra.mxu0 0.0
        %650 = vmatprep.subr.mxu0 0.0
        %651 = vmatpush1.msra.mxu0 0.0
        %652 = vmatprep.subr.mxu0 0.0
        %653 = vmatpush1.msra.mxu0 0.0
        %654 = vmatprep.subr.mxu0 0.0
        %655 = vmatpush1.msra.mxu0 0.0
        %656 = vmatprep.subr.mxu0 0.0
        %657 = vmatpush1.msra.mxu0 0.0
        %658 = vmatprep.subr.mxu0 0.0
        %659 = vmatpush1.msra.mxu0 0.0
        %660 = vmatprep.subr.mxu0 0.0
        %661 = vmatpush1.msra.mxu0 0.0
        %662 = vmatprep.subr.mxu0 0.0
        %663 = vmatpush1.msra.mxu0 0.0
        %664 = vmatprep.subr.mxu0 0.0
        %665 = vmatpush1.msra.mxu0 0.0
        %666 = vmatprep.subr.mxu0 0.0
        %667 = vmatpush1.msra.mxu0 0.0
        %668 = vmatprep.subr.mxu0 0.0
        %669 = vmatpush1.msra.mxu0 0.0
        %670 = vmatprep.subr.mxu0 0.0
        %671 = vmatpush1.msra.mxu0 0.0
        %672 = vmatprep.subr.mxu0 0.0
        %673 = vmatpush1.msra.mxu0 0.0
        %674 = vmatprep.subr.mxu0 0.0
        %675 = vmatpush1.msra.mxu0 0.0
        %676 = vmatprep.subr.mxu0 0.0
        %677 = vmatpush1.msra.mxu0 0.0
        %678 = vmatprep.subr.mxu0 0.0
        %679 = vmatpush1.msra.mxu0 0.0
        %680 = vmatprep.subr.mxu0 0.0
        %681 = vmatpush1.msra.mxu0 0.0
        %682 = vmatprep.subr.mxu0 0.0
        %683 = vmatpush1.msra.mxu0 0.0
        %684 = vmatprep.subr.mxu0 0.0
        %685 = vmatpush1.msra.mxu0 0.0
        %686 = vmatprep.subr.mxu0 0.0
        %687 = vmatpush1.msra.mxu0 0.0
        %688 = vmatprep.subr.mxu0 0.0
        %689 = vmatpush1.msra.mxu0 0.0
        %690 = vmatprep.subr.mxu0 0.0
        %691 = vmatpush1.msra.mxu0 0.0
        %692 = vmatprep.subr.mxu0 0.0
        %693 = vmatpush1.msra.mxu0 0.0
        %694 = vmatprep.subr.mxu0 0.0
        %695 = vmatpush1.msra.mxu0 0.0
        %696 = vmatprep.subr.mxu0 0.0
        %697 = vmatpush1.msra.mxu0 0.0
        %698 = vmatprep.subr.mxu0 0.0
        %699 = vmatpush1.msra.mxu0 0.0
        %700 = vmatprep.subr.mxu0 0.0
        %701 = vmatpush1.msra.mxu0 0.0
        %702 = vmatprep.subr.mxu0 0.0
        %703 = vmatpush1.msra.mxu0 0.0
        %704 = vmatprep.subr.mxu0 0.0
        %705 = vmatpush1.msra.mxu0 0.0
        %706 = vmatprep.subr.mxu0 0.0
        %707 = vmatpush1.msra.mxu0 0.0
        %708 = vmatprep.mubr.f32.mxu0 0.0
        %709 = vmatmul.mubr.f32.gmra.mrb[0].mxu0 %v642
        %v710 = vpop.f32.mrb[0].mxu0
        %v711 = vadd.f32 %v637, %v710
        %v712 = vpop.f32.mrb[0].mxu0
        %v713 = vadd.f32 %v639, %v712
        %714 = vdwg.mxu0
        %717 = vrot.lane.b32.xlu0 %v539, 15
        %v718 = vpop.permute.xlu0 %717
        %719 = vrot.lane.b32.xlu0 %v540, 15
        %v720 = vpop.permute.xlu0 %719
        %vm721 = vcmask 121856
        %v722 = vsel %vm721, %v718, %v720
        %v725 = vsel %vm721, 0.0, %v718
        %s726 = scalar_lea.vmem %s3, 16
        %v727 = vld [vmem:[%s726] sm:$0xff]
        %v729 = vsel %vm566, %v727, 0
        %731 = vmatprep.subr.mxu0 %v722
        %732 = vmatpush1.msra.mxu0 %v725
        %733 = vmatprep.subr.mxu0 0.0
        %734 = vmatpush1.msra.mxu0 0.0
        %735 = vmatprep.subr.mxu0 0.0
        %736 = vmatpush1.msra.mxu0 0.0
        %737 = vmatprep.subr.mxu0 0.0
        %738 = vmatpush1.msra.mxu0 0.0
        %739 = vmatprep.subr.mxu0 0.0
        %740 = vmatpush1.msra.mxu0 0.0
        %741 = vmatprep.subr.mxu0 0.0
        %742 = vmatpush1.msra.mxu0 0.0
        %743 = vmatprep.subr.mxu0 0.0
        %744 = vmatpush1.msra.mxu0 0.0
        %745 = vmatprep.subr.mxu0 0.0
        %746 = vmatpush1.msra.mxu0 0.0
        %747 = vmatprep.subr.mxu0 0.0
        %748 = vmatpush1.msra.mxu0 0.0
        %749 = vmatprep.subr.mxu0 0.0
        %750 = vmatpush1.msra.mxu0 0.0
        %751 = vmatprep.subr.mxu0 0.0
        %752 = vmatpush1.msra.mxu0 0.0
        %753 = vmatprep.subr.mxu0 0.0
        %754 = vmatpush1.msra.mxu0 0.0
        %755 = vmatprep.subr.mxu0 0.0
        %756 = vmatpush1.msra.mxu0 0.0
        %757 = vmatprep.subr.mxu0 0.0
        %758 = vmatpush1.msra.mxu0 0.0
        %759 = vmatprep.subr.mxu0 0.0
        %760 = vmatpush1.msra.mxu0 0.0
        %761 = vmatprep.subr.mxu0 0.0
        %762 = vmatpush1.msra.mxu0 0.0
        %763 = vmatprep.subr.mxu0 0.0
        %764 = vmatpush1.msra.mxu0 0.0
        %765 = vmatprep.subr.mxu0 0.0
        %766 = vmatpush1.msra.mxu0 0.0
        %767 = vmatprep.subr.mxu0 0.0
        %768 = vmatpush1.msra.mxu0 0.0
        %769 = vmatprep.subr.mxu0 0.0
        %770 = vmatpush1.msra.mxu0 0.0
        %771 = vmatprep.subr.mxu0 0.0
        %772 = vmatpush1.msra.mxu0 0.0
        %773 = vmatprep.subr.mxu0 0.0
        %774 = vmatpush1.msra.mxu0 0.0
        %775 = vmatprep.subr.mxu0 0.0
        %776 = vmatpush1.msra.mxu0 0.0
        %777 = vmatprep.subr.mxu0 0.0
        %778 = vmatpush1.msra.mxu0 0.0
        %779 = vmatprep.subr.mxu0 0.0
        %780 = vmatpush1.msra.mxu0 0.0
        %781 = vmatprep.subr.mxu0 0.0
        %782 = vmatpush1.msra.mxu0 0.0
        %783 = vmatprep.subr.mxu0 0.0
        %784 = vmatpush1.msra.mxu0 0.0
        %785 = vmatprep.subr.mxu0 0.0
        %786 = vmatpush1.msra.mxu0 0.0
        %787 = vmatprep.subr.mxu0 0.0
        %788 = vmatpush1.msra.mxu0 0.0
        %789 = vmatprep.subr.mxu0 0.0
        %790 = vmatpush1.msra.mxu0 0.0
        %791 = vmatprep.subr.mxu0 0.0
        %792 = vmatpush1.msra.mxu0 0.0
        %793 = vmatprep.subr.mxu0 0.0
        %794 = vmatpush1.msra.mxu0 0.0
        %795 = vmatprep.mubr.f32.mxu0 0.0
        %796 = vmatmul.mubr.f32.gmra.mrb[0].mxu0 %v729
        %v797 = vpop.f32.mrb[0].mxu0
        %v798 = vadd.f32 0.0, %v797
        %v799 = vpop.f32.mrb[0].mxu0
        %v800 = vadd.f32 0.0, %v799
        %801 = vdwg.mxu0
        %v802 = vadd.f32 %v711, %v798
        %v803 = vadd.f32 %v713, %v800
        %804 = vrot.lane.b32.xlu0 %v526, 1
        %v805 = vpop.permute.xlu0 %804
        %806 = vrot.lane.b32.xlu0 %v527, 1
        %v807 = vpop.permute.xlu0 %806
        %vm808 = vcmask 7168
        %v809 = vsel %vm808, %v805, %v807
        %v812 = vsel %vm808, 0.0, %v805
        %s813 = scalar_lea.vmem %s3, 24
        %v814 = vld [vmem:[%s813] sm:$0xff]
        %v816 = vsel %vm566, %v814, 0
        %818 = vmatprep.subr.mxu0 %v809
        %819 = vmatpush1.msra.mxu0 %v812
        %820 = vmatprep.subr.mxu0 0.0
        %821 = vmatpush1.msra.mxu0 0.0
        %822 = vmatprep.subr.mxu0 0.0
        %823 = vmatpush1.msra.mxu0 0.0
        %824 = vmatprep.subr.mxu0 0.0
        %825 = vmatpush1.msra.mxu0 0.0
        %826 = vmatprep.subr.mxu0 0.0
        %827 = vmatpush1.msra.mxu0 0.0
        %828 = vmatprep.subr.mxu0 0.0
        %829 = vmatpush1.msra.mxu0 0.0
        %830 = vmatprep.subr.mxu0 0.0
        %831 = vmatpush1.msra.mxu0 0.0
        %832 = vmatprep.subr.mxu0 0.0
        %833 = vmatpush1.msra.mxu0 0.0
        %834 = vmatprep.subr.mxu0 0.0
        %835 = vmatpush1.msra.mxu0 0.0
        %836 = vmatprep.subr.mxu0 0.0
        %837 = vmatpush1.msra.mxu0 0.0
        %838 = vmatprep.subr.mxu0 0.0
        %839 = vmatpush1.msra.mxu0 0.0
        %840 = vmatprep.subr.mxu0 0.0
        %841 = vmatpush1.msra.mxu0 0.0
        %842 = vmatprep.subr.mxu0 0.0
        %843 = vmatpush1.msra.mxu0 0.0
        %844 = vmatprep.subr.mxu0 0.0
        %845 = vmatpush1.msra.mxu0 0.0
        %846 = vmatprep.subr.mxu0 0.0
        %847 = vmatpush1.msra.mxu0 0.0
        %848 = vmatprep.subr.mxu0 0.0
        %849 = vmatpush1.msra.mxu0 0.0
        %850 = vmatprep.subr.mxu0 0.0
        %851 = vmatpush1.msra.mxu0 0.0
        %852 = vmatprep.subr.mxu0 0.0
        %853 = vmatpush1.msra.mxu0 0.0
        %854 = vmatprep.subr.mxu0 0.0
        %855 = vmatpush1.msra.mxu0 0.0
        %856 = vmatprep.subr.mxu0 0.0
        %857 = vmatpush1.msra.mxu0 0.0
        %858 = vmatprep.subr.mxu0 0.0
        %859 = vmatpush1.msra.mxu0 0.0
        %860 = vmatprep.subr.mxu0 0.0
        %861 = vmatpush1.msra.mxu0 0.0
        %862 = vmatprep.subr.mxu0 0.0
        %863 = vmatpush1.msra.mxu0 0.0
        %864 = vmatprep.subr.mxu0 0.0
        %865 = vmatpush1.msra.mxu0 0.0
        %866 = vmatprep.subr.mxu0 0.0
        %867 = vmatpush1.msra.mxu0 0.0
        %868 = vmatprep.subr.mxu0 0.0
        %869 = vmatpush1.msra.mxu0 0.0
        %870 = vmatprep.subr.mxu0 0.0
        %871 = vmatpush1.msra.mxu0 0.0
        %872 = vmatprep.subr.mxu0 0.0
        %873 = vmatpush1.msra.mxu0 0.0
        %874 = vmatprep.subr.mxu0 0.0
        %875 = vmatpush1.msra.mxu0 0.0
        %876 = vmatprep.subr.mxu0 0.0
        %877 = vmatpush1.msra.mxu0 0.0
        %878 = vmatprep.subr.mxu0 0.0
        %879 = vmatpush1.msra.mxu0 0.0
        %880 = vmatprep.subr.mxu0 0.0
        %881 = vmatpush1.msra.mxu0 0.0
        %882 = vmatprep.mubr.f32.mxu0 0.0
        %883 = vmatmul.mubr.f32.gmra.mrb[0].mxu0 %v816
        %v884 = vpop.f32.mrb[0].mxu0
        %v885 = vadd.f32 0.0, %v884
        %v886 = vpop.f32.mrb[0].mxu0
        %v887 = vadd.f32 0.0, %v886
        %888 = vdwg.mxu0
        %v889 = vadd.f32 %v802, %v885
        %v890 = vadd.f32 %v803, %v887
        %s891 = scalar_lea.vmem %s3, 32
        %v892 = vld [vmem:[%s891] sm:$0xff]
        %v894 = vsel %vm566, %v892, 0
        %896 = vmatprep.subr.mxu0 %v514
        %897 = vmatpush1.msra.mxu0 %v513
        %898 = vmatprep.subr.mxu0 0.0
        %899 = vmatpush1.msra.mxu0 0.0
        %900 = vmatprep.subr.mxu0 0.0
        %901 = vmatpush1.msra.mxu0 0.0
        %902 = vmatprep.subr.mxu0 0.0
        %903 = vmatpush1.msra.mxu0 0.0
        %904 = vmatprep.subr.mxu0 0.0
        %905 = vmatpush1.msra.mxu0 0.0
        %906 = vmatprep.subr.mxu0 0.0
        %907 = vmatpush1.msra.mxu0 0.0
        %908 = vmatprep.subr.mxu0 0.0
        %909 = vmatpush1.msra.mxu0 0.0
        %910 = vmatprep.subr.mxu0 0.0
        %911 = vmatpush1.msra.mxu0 0.0
        %912 = vmatprep.subr.mxu0 0.0
        %913 = vmatpush1.msra.mxu0 0.0
        %914 = vmatprep.subr.mxu0 0.0
        %915 = vmatpush1.msra.mxu0 0.0
        %916 = vmatprep.subr.mxu0 0.0
        %917 = vmatpush1.msra.mxu0 0.0
        %918 = vmatprep.subr.mxu0 0.0
        %919 = vmatpush1.msra.mxu0 0.0
        %920 = vmatprep.subr.mxu0 0.0
        %921 = vmatpush1.msra.mxu0 0.0
        %922 = vmatprep.subr.mxu0 0.0
        %923 = vmatpush1.msra.mxu0 0.0
        %924 = vmatprep.subr.mxu0 0.0
        %925 = vmatpush1.msra.mxu0 0.0
        %926 = vmatprep.subr.mxu0 0.0
        %927 = vmatpush1.msra.mxu0 0.0
        %928 = vmatprep.subr.mxu0 0.0
        %929 = vmatpush1.msra.mxu0 0.0
        %930 = vmatprep.subr.mxu0 0.0
        %931 = vmatpush1.msra.mxu0 0.0
        %932 = vmatprep.subr.mxu0 0.0
        %933 = vmatpush1.msra.mxu0 0.0
        %934 = vmatprep.subr.mxu0 0.0
        %935 = vmatpush1.msra.mxu0 0.0
        %936 = vmatprep.subr.mxu0 0.0
        %937 = vmatpush1.msra.mxu0 0.0
        %938 = vmatprep.subr.mxu0 0.0
        %939 = vmatpush1.msra.mxu0 0.0
        %940 = vmatprep.subr.mxu0 0.0
        %941 = vmatpush1.msra.mxu0 0.0
        %942 = vmatprep.subr.mxu0 0.0
        %943 = vmatpush1.msra.mxu0 0.0
        %944 = vmatprep.subr.mxu0 0.0
        %945 = vmatpush1.msra.mxu0 0.0
        %946 = vmatprep.subr.mxu0 0.0
        %947 = vmatpush1.msra.mxu0 0.0
        %948 = vmatprep.subr.mxu0 0.0
        %949 = vmatpush1.msra.mxu0 0.0
        %950 = vmatprep.subr.mxu0 0.0
        %951 = vmatpush1.msra.mxu0 0.0
        %952 = vmatprep.subr.mxu0 0.0
        %953 = vmatpush1.msra.mxu0 0.0
        %954 = vmatprep.subr.mxu0 0.0
        %955 = vmatpush1.msra.mxu0 0.0
        %956 = vmatprep.subr.mxu0 0.0
        %957 = vmatpush1.msra.mxu0 0.0
        %958 = vmatprep.subr.mxu0 0.0
        %959 = vmatpush1.msra.mxu0 0.0
        %960 = vmatprep.mubr.f32.mxu0 0.0
        %961 = vmatmul.mubr.f32.gmra.mrb[0].mxu0 %v894
        %v962 = vpop.f32.mrb[0].mxu0
        %v963 = vadd.f32 0.0, %v962
        %v964 = vpop.f32.mrb[0].mxu0
        %v965 = vadd.f32 0.0, %v964
        %966 = vdwg.mxu0
        %v967 = vadd.f32 %v889, %v963
        %v968 = vadd.f32 %v890, %v965
        %969 = vrot.lane.b32.xlu0 %v539, 127
        %v970 = vpop.permute.xlu0 %969
        %971 = vrot.lane.b32.xlu0 %v540, 127
        %v972 = vpop.permute.xlu0 %971
        %vm973 = vcmask 1039360
        %v974 = vsel %vm973, %v970, %v972
        %v977 = vsel %vm973, %v972, 0.0
        %s978 = scalar_lea.vmem %s3, 40
        %v979 = vld [vmem:[%s978] sm:$0xff]
        %v981 = vsel %vm566, %v979, 0
        %983 = vmatprep.subr.mxu0 %v977
        %984 = vmatpush1.msra.mxu0 %v974
        %985 = vmatprep.subr.mxu0 0.0
        %986 = vmatpush1.msra.mxu0 0.0
        %987 = vmatprep.subr.mxu0 0.0
        %988 = vmatpush1.msra.mxu0 0.0
        %989 = vmatprep.subr.mxu0 0.0
        %990 = vmatpush1.msra.mxu0 0.0
        %991 = vmatprep.subr.mxu0 0.0
        %992 = vmatpush1.msra.mxu0 0.0
        %993 = vmatprep.subr.mxu0 0.0
        %994 = vmatpush1.msra.mxu0 0.0
        %995 = vmatprep.subr.mxu0 0.0
        %996 = vmatpush1.msra.mxu0 0.0
        %997 = vmatprep.subr.mxu0 0.0
        %998 = vmatpush1.msra.mxu0 0.0
        %999 = vmatprep.subr.mxu0 0.0
        %1000 = vmatpush1.msra.mxu0 0.0
        %1001 = vmatprep.subr.mxu0 0.0
        %1002 = vmatpush1.msra.mxu0 0.0
        %1003 = vmatprep.subr.mxu0 0.0
        %1004 = vmatpush1.msra.mxu0 0.0
        %1005 = vmatprep.subr.mxu0 0.0
        %1006 = vmatpush1.msra.mxu0 0.0
        %1007 = vmatprep.subr.mxu0 0.0
        %1008 = vmatpush1.msra.mxu0 0.0
        %1009 = vmatprep.subr.mxu0 0.0
        %1010 = vmatpush1.msra.mxu0 0.0
        %1011 = vmatprep.subr.mxu0 0.0
        %1012 = vmatpush1.msra.mxu0 0.0
        %1013 = vmatprep.subr.mxu0 0.0
        %1014 = vmatpush1.msra.mxu0 0.0
        %1015 = vmatprep.subr.mxu0 0.0
        %1016 = vmatpush1.msra.mxu0 0.0
        %1017 = vmatprep.subr.mxu0 0.0
        %1018 = vmatpush1.msra.mxu0 0.0
        %1019 = vmatprep.subr.mxu0 0.0
        %1020 = vmatpush1.msra.mxu0 0.0
        %1021 = vmatprep.subr.mxu0 0.0
        %1022 = vmatpush1.msra.mxu0 0.0
        %1023 = vmatprep.subr.mxu0 0.0
        %1024 = vmatpush1.msra.mxu0 0.0
        %1025 = vmatprep.subr.mxu0 0.0
        %1026 = vmatpush1.msra.mxu0 0.0
        %1027 = vmatprep.subr.mxu0 0.0
        %1028 = vmatpush1.msra.mxu0 0.0
        %1029 = vmatprep.subr.mxu0 0.0
        %1030 = vmatpush1.msra.mxu0 0.0
        %1031 = vmatprep.subr.mxu0 0.0
        %1032 = vmatpush1.msra.mxu0 0.0
        %1033 = vmatprep.subr.mxu0 0.0
        %1034 = vmatpush1.msra.mxu0 0.0
        %1035 = vmatprep.subr.mxu0 0.0
        %1036 = vmatpush1.msra.mxu0 0.0
        %1037 = vmatprep.subr.mxu0 0.0
        %1038 = vmatpush1.msra.mxu0 0.0
        %1039 = vmatprep.subr.mxu0 0.0
        %1040 = vmatpush1.msra.mxu0 0.0
        %1041 = vmatprep.subr.mxu0 0.0
        %1042 = vmatpush1.msra.mxu0 0.0
        %1043 = vmatprep.subr.mxu0 0.0
        %1044 = vmatpush1.msra.mxu0 0.0
        %1045 = vmatprep.subr.mxu0 0.0
        %1046 = vmatpush1.msra.mxu0 0.0
        %1047 = vmatprep.mubr.f32.mxu0 0.0
        %1048 = vmatmul.mubr.f32.gmra.mrb[0].mxu0 %v981
        %v1049 = vpop.f32.mrb[0].mxu0
        %v1050 = vadd.f32 0.0, %v1049
        %v1051 = vpop.f32.mrb[0].mxu0
        %v1052 = vadd.f32 0.0, %v1051
        %1053 = vdwg.mxu0
        %v1054 = vadd.f32 %v967, %v1050
        %v1055 = vadd.f32 %v968, %v1052
        %1056 = vrot.lane.b32.xlu0 %v526, 113
        %v1057 = vpop.permute.xlu0 %1056
        %1058 = vrot.lane.b32.xlu0 %v527, 113
        %v1059 = vpop.permute.xlu0 %1058
        %vm1060 = vcmask 924672
        %v1061 = vsel %vm1060, %v1057, %v1059
        %v1064 = vsel %vm1060, %v1059, 0.0
        %s1065 = scalar_lea.vmem %s3, 48
        %v1066 = vld [vmem:[%s1065] sm:$0xff]
        %v1068 = vsel %vm566, %v1066, 0
        %1070 = vmatprep.subr.mxu0 %v1064
        %1071 = vmatpush1.msra.mxu0 %v1061
        %1072 = vmatprep.subr.mxu0 0.0
        %1073 = vmatpush1.msra.mxu0 0.0
        %1074 = vmatprep.subr.mxu0 0.0
        %1075 = vmatpush1.msra.mxu0 0.0
        %1076 = vmatprep.subr.mxu0 0.0
        %1077 = vmatpush1.msra.mxu0 0.0
        %1078 = vmatprep.subr.mxu0 0.0
        %1079 = vmatpush1.msra.mxu0 0.0
        %1080 = vmatprep.subr.mxu0 0.0
        %1081 = vmatpush1.msra.mxu0 0.0
        %1082 = vmatprep.subr.mxu0 0.0
        %1083 = vmatpush1.msra.mxu0 0.0
        %1084 = vmatprep.subr.mxu0 0.0
        %1085 = vmatpush1.msra.mxu0 0.0
        %1086 = vmatprep.subr.mxu0 0.0
        %1087 = vmatpush1.msra.mxu0 0.0
        %1088 = vmatprep.subr.mxu0 0.0
        %1089 = vmatpush1.msra.mxu0 0.0
        %1090 = vmatprep.subr.mxu0 0.0
        %1091 = vmatpush1.msra.mxu0 0.0
        %1092 = vmatprep.subr.mxu0 0.0
        %1093 = vmatpush1.msra.mxu0 0.0
        %1094 = vmatprep.subr.mxu0 0.0
        %1095 = vmatpush1.msra.mxu0 0.0
        %1096 = vmatprep.subr.mxu0 0.0
        %1097 = vmatpush1.msra.mxu0 0.0
        %1098 = vmatprep.subr.mxu0 0.0
        %1099 = vmatpush1.msra.mxu0 0.0
        %1100 = vmatprep.subr.mxu0 0.0
        %1101 = vmatpush1.msra.mxu0 0.0
        %1102 = vmatprep.subr.mxu0 0.0
        %1103 = vmatpush1.msra.mxu0 0.0
        %1104 = vmatprep.subr.mxu0 0.0
        %1105 = vmatpush1.msra.mxu0 0.0
        %1106 = vmatprep.subr.mxu0 0.0
        %1107 = vmatpush1.msra.mxu0 0.0
        %1108 = vmatprep.subr.mxu0 0.0
        %1109 = vmatpush1.msra.mxu0 0.0
        %1110 = vmatprep.subr.mxu0 0.0
        %1111 = vmatpush1.msra.mxu0 0.0
        %1112 = vmatprep.subr.mxu0 0.0
        %1113 = vmatpush1.msra.mxu0 0.0
        %1114 = vmatprep.subr.mxu0 0.0
        %1115 = vmatpush1.msra.mxu0 0.0
        %1116 = vmatprep.subr.mxu0 0.0
        %1117 = vmatpush1.msra.mxu0 0.0
        %1118 = vmatprep.subr.mxu0 0.0
        %1119 = vmatpush1.msra.mxu0 0.0
        %1120 = vmatprep.subr.mxu0 0.0
        %1121 = vmatpush1.msra.mxu0 0.0
        %1122 = vmatprep.subr.mxu0 0.0
        %1123 = vmatpush1.msra.mxu0 0.0
        %1124 = vmatprep.subr.mxu0 0.0
        %1125 = vmatpush1.msra.mxu0 0.0
        %1126 = vmatprep.subr.mxu0 0.0
        %1127 = vmatpush1.msra.mxu0 0.0
        %1128 = vmatprep.subr.mxu0 0.0
        %1129 = vmatpush1.msra.mxu0 0.0
        %1130 = vmatprep.subr.mxu0 0.0
        %1131 = vmatpush1.msra.mxu0 0.0
        %1132 = vmatprep.subr.mxu0 0.0
        %1133 = vmatpush1.msra.mxu0 0.0
        %1134 = vmatprep.mubr.f32.mxu0 0.0
        %1135 = vmatmul.mubr.f32.gmra.mrb[0].mxu0 %v1068
        %v1136 = vpop.f32.mrb[0].mxu0
        %v1137 = vadd.f32 0.0, %v1136
        %v1138 = vpop.f32.mrb[0].mxu0
        %v1139 = vadd.f32 0.0, %v1138
        %1140 = vdwg.mxu0
        %v1141 = vadd.f32 %v1054, %v1137
        %v1142 = vadd.f32 %v1055, %v1139
        %1143 = vrot.lane.b32.xlu0 %v513, 112
        %v1144 = vpop.permute.xlu0 %1143
        %1145 = vrot.lane.b32.xlu0 %v514, 112
        %v1146 = vpop.permute.xlu0 %1145
        %vm1147 = vcmask 916480
        %v1148 = vsel %vm1147, %v1144, %v1146
        %v1151 = vsel %vm1147, %v1146, 0.0
        %s1152 = scalar_lea.vmem %s3, 56
        %v1153 = vld [vmem:[%s1152] sm:$0xff]
        %v1155 = vsel %vm566, %v1153, 0
        %1157 = vmatprep.subr.mxu0 %v1151
        %1158 = vmatpush1.msra.mxu0 %v1148
        %1159 = vmatprep.subr.mxu0 0.0
        %1160 = vmatpush1.msra.mxu0 0.0
        %1161 = vmatprep.subr.mxu0 0.0
        %1162 = vmatpush1.msra.mxu0 0.0
        %1163 = vmatprep.subr.mxu0 0.0
        %1164 = vmatpush1.msra.mxu0 0.0
        %1165 = vmatprep.subr.mxu0 0.0
        %1166 = vmatpush1.msra.mxu0 0.0
        %1167 = vmatprep.subr.mxu0 0.0
        %1168 = vmatpush1.msra.mxu0 0.0
        %1169 = vmatprep.subr.mxu0 0.0
        %1170 = vmatpush1.msra.mxu0 0.0
        %1171 = vmatprep.subr.mxu0 0.0
        %1172 = vmatpush1.msra.mxu0 0.0
        %1173 = vmatprep.subr.mxu0 0.0
        %1174 = vmatpush1.msra.mxu0 0.0
        %1175 = vmatprep.subr.mxu0 0.0
        %1176 = vmatpush1.msra.mxu0 0.0
        %1177 = vmatprep.subr.mxu0 0.0
        %1178 = vmatpush1.msra.mxu0 0.0
        %1179 = vmatprep.subr.mxu0 0.0
        %1180 = vmatpush1.msra.mxu0 0.0
        %1181 = vmatprep.subr.mxu0 0.0
        %1182 = vmatpush1.msra.mxu0 0.0
        %1183 = vmatprep.subr.mxu0 0.0
        %1184 = vmatpush1.msra.mxu0 0.0
        %1185 = vmatprep.subr.mxu0 0.0
        %1186 = vmatpush1.msra.mxu0 0.0
        %1187 = vmatprep.subr.mxu0 0.0
        %1188 = vmatpush1.msra.mxu0 0.0
        %1189 = vmatprep.subr.mxu0 0.0
        %1190 = vmatpush1.msra.mxu0 0.0
        %1191 = vmatprep.subr.mxu0 0.0
        %1192 = vmatpush1.msra.mxu0 0.0
        %1193 = vmatprep.subr.mxu0 0.0
        %1194 = vmatpush1.msra.mxu0 0.0
        %1195 = vmatprep.subr.mxu0 0.0
        %1196 = vmatpush1.msra.mxu0 0.0
        %1197 = vmatprep.subr.mxu0 0.0
        %1198 = vmatpush1.msra.mxu0 0.0
        %1199 = vmatprep.subr.mxu0 0.0
        %1200 = vmatpush1.msra.mxu0 0.0
        %1201 = vmatprep.subr.mxu0 0.0
        %1202 = vmatpush1.msra.mxu0 0.0
        %1203 = vmatprep.subr.mxu0 0.0
        %1204 = vmatpush1.msra.mxu0 0.0
        %1205 = vmatprep.subr.mxu0 0.0
        %1206 = vmatpush1.msra.mxu0 0.0
        %1207 = vmatprep.subr.mxu0 0.0
        %1208 = vmatpush1.msra.mxu0 0.0
        %1209 = vmatprep.subr.mxu0 0.0
        %1210 = vmatpush1.msra.mxu0 0.0
        %1211 = vmatprep.subr.mxu0 0.0
        %1212 = vmatpush1.msra.mxu0 0.0
        %1213 = vmatprep.subr.mxu0 0.0
        %1214 = vmatpush1.msra.mxu0 0.0
        %1215 = vmatprep.subr.mxu0 0.0
        %1216 = vmatpush1.msra.mxu0 0.0
        %1217 = vmatprep.subr.mxu0 0.0
        %1218 = vmatpush1.msra.mxu0 0.0
        %1219 = vmatprep.subr.mxu0 0.0
        %1220 = vmatpush1.msra.mxu0 0.0
        %1221 = vmatprep.mubr.f32.mxu0 0.0
        %1222 = vmatmul.mubr.f32.gmra.mrb[0].mxu0 %v1155
        %v1223 = vpop.f32.mrb[0].mxu0
        %v1224 = vadd.f32 0.0, %v1223
        %v1225 = vpop.f32.mrb[0].mxu0
        %v1226 = vadd.f32 0.0, %v1225
        %1227 = vdwg.mxu0
        %v1228 = vadd.f32 %v1141, %v1224
        %v1229 = vadd.f32 %v1142, %v1226
        %1230 = vrot.lane.b32.xlu0 %v539, 111
        %v1231 = vpop.permute.xlu0 %1230
        %1232 = vrot.lane.b32.xlu0 %v540, 111
        %v1233 = vpop.permute.xlu0 %1232
        %vm1234 = vcmask 908288
        %v1235 = vsel %vm1234, %v1231, %v1233
        %v1238 = vsel %vm1234, %v1233, 0.0
        %s1239 = scalar_lea.vmem %s3, 64
        %v1240 = vld [vmem:[%s1239] sm:$0xff]
        %v1242 = vsel %vm566, %v1240, 0
        %1244 = vmatprep.subr.mxu0 %v1238
        %1245 = vmatpush1.msra.mxu0 %v1235
        %1246 = vmatprep.subr.mxu0 0.0
        %1247 = vmatpush1.msra.mxu0 0.0
        %1248 = vmatprep.subr.mxu0 0.0
        %1249 = vmatpush1.msra.mxu0 0.0
        %1250 = vmatprep.subr.mxu0 0.0
        %1251 = vmatpush1.msra.mxu0 0.0
        %1252 = vmatprep.subr.mxu0 0.0
        %1253 = vmatpush1.msra.mxu0 0.0
        %1254 = vmatprep.subr.mxu0 0.0
        %1255 = vmatpush1.msra.mxu0 0.0
        %1256 = vmatprep.subr.mxu0 0.0
        %1257 = vmatpush1.msra.mxu0 0.0
        %1258 = vmatprep.subr.mxu0 0.0
        %1259 = vmatpush1.msra.mxu0 0.0
        %1260 = vmatprep.subr.mxu0 0.0
        %1261 = vmatpush1.msra.mxu0 0.0
        %1262 = vmatprep.subr.mxu0 0.0
        %1263 = vmatpush1.msra.mxu0 0.0
        %1264 = vmatprep.subr.mxu0 0.0
        %1265 = vmatpush1.msra.mxu0 0.0
        %1266 = vmatprep.subr.mxu0 0.0
        %1267 = vmatpush1.msra.mxu0 0.0
        %1268 = vmatprep.subr.mxu0 0.0
        %1269 = vmatpush1.msra.mxu0 0.0
        %1270 = vmatprep.subr.mxu0 0.0
        %1271 = vmatpush1.msra.mxu0 0.0
        %1272 = vmatprep.subr.mxu0 0.0
        %1273 = vmatpush1.msra.mxu0 0.0
        %1274 = vmatprep.subr.mxu0 0.0
        %1275 = vmatpush1.msra.mxu0 0.0
        %1276 = vmatprep.subr.mxu0 0.0
        %1277 = vmatpush1.msra.mxu0 0.0
        %1278 = vmatprep.subr.mxu0 0.0
        %1279 = vmatpush1.msra.mxu0 0.0
        %1280 = vmatprep.subr.mxu0 0.0
        %1281 = vmatpush1.msra.mxu0 0.0
        %1282 = vmatprep.subr.mxu0 0.0
        %1283 = vmatpush1.msra.mxu0 0.0
        %1284 = vmatprep.subr.mxu0 0.0
        %1285 = vmatpush1.msra.mxu0 0.0
        %1286 = vmatprep.subr.mxu0 0.0
        %1287 = vmatpush1.msra.mxu0 0.0
        %1288 = vmatprep.subr.mxu0 0.0
        %1289 = vmatpush1.msra.mxu0 0.0
        %1290 = vmatprep.subr.mxu0 0.0
        %1291 = vmatpush1.msra.mxu0 0.0
        %1292 = vmatprep.subr.mxu0 0.0
        %1293 = vmatpush1.msra.mxu0 0.0
        %1294 = vmatprep.subr.mxu0 0.0
        %1295 = vmatpush1.msra.mxu0 0.0
        %1296 = vmatprep.subr.mxu0 0.0
        %1297 = vmatpush1.msra.mxu0 0.0
        %1298 = vmatprep.subr.mxu0 0.0
        %1299 = vmatpush1.msra.mxu0 0.0
        %1300 = vmatprep.subr.mxu0 0.0
        %1301 = vmatpush1.msra.mxu0 0.0
        %1302 = vmatprep.subr.mxu0 0.0
        %1303 = vmatpush1.msra.mxu0 0.0
        %1304 = vmatprep.subr.mxu0 0.0
        %1305 = vmatpush1.msra.mxu0 0.0
        %1306 = vmatprep.subr.mxu0 0.0
        %1307 = vmatpush1.msra.mxu0 0.0
        %1308 = vmatprep.mubr.f32.mxu0 0.0
        %1309 = vmatmul.mubr.f32.gmra.mrb[0].mxu0 %v1242
        %v1310 = vpop.f32.mrb[0].mxu0
        %v1311 = vadd.f32 0.0, %v1310
        %v1312 = vpop.f32.mrb[0].mxu0
        %v1313 = vadd.f32 0.0, %v1312
        %1314 = vdwg.mxu0
        %v1315 = vadd.f32 %v1228, %v1311
        %v1316 = vadd.f32 %v1229, %v1313
        %v1317 = vld [vmem:[%s4] sm:$0xff]
        %1319 = vset.pattern.permute.xlu0 0
        %1320 = vperm.xlu0 %1319, %v1317
        %v1321 = vpop.permute.xlu0 %1320
        %v1323 = vadd.f32 %v1315, %v1321
        %v1324 = vadd.f32 %v1316, %v1321
        %v1325 = vmax.f32 %v1323, 0.0
        %v1326 = vmax.f32 %v1324, 0.0
        %v1327 = vld [vmem:[%s5] sm:$0xff]
        %v1328 = vld [vmem:[%s6] sm:$0xff]
        %1330 = vset.pattern.permute.xlu0 0
        %1331 = vperm.xlu0 %1330, %v1328
        %v1332 = vpop.permute.xlu0 %1331
        %v1335 = vsel %vm566, %v1327, 0
        %1337 = vmatprep.subr.mxu0 %v1326
        %1338 = vmatpush1.msra.mxu0 %v1325
        %1339 = vmatprep.subr.mxu0 0.0
        %1340 = vmatpush1.msra.mxu0 0.0
        %1341 = vmatprep.subr.mxu0 0.0
        %1342 = vmatpush1.msra.mxu0 0.0
        %1343 = vmatprep.subr.mxu0 0.0
        %1344 = vmatpush1.msra.mxu0 0.0
        %1345 = vmatprep.subr.mxu0 0.0
        %1346 = vmatpush1.msra.mxu0 0.0
        %1347 = vmatprep.subr.mxu0 0.0
        %1348 = vmatpush1.msra.mxu0 0.0
        %1349 = vmatprep.subr.mxu0 0.0
        %1350 = vmatpush1.msra.mxu0 0.0
        %1351 = vmatprep.subr.mxu0 0.0
        %1352 = vmatpush1.msra.mxu0 0.0
        %1353 = vmatprep.subr.mxu0 0.0
        %1354 = vmatpush1.msra.mxu0 0.0
        %1355 = vmatprep.subr.mxu0 0.0
        %1356 = vmatpush1.msra.mxu0 0.0
        %1357 = vmatprep.subr.mxu0 0.0
        %1358 = vmatpush1.msra.mxu0 0.0
        %1359 = vmatprep.subr.mxu0 0.0
        %1360 = vmatpush1.msra.mxu0 0.0
        %1361 = vmatprep.subr.mxu0 0.0
        %1362 = vmatpush1.msra.mxu0 0.0
        %1363 = vmatprep.subr.mxu0 0.0
        %1364 = vmatpush1.msra.mxu0 0.0
        %1365 = vmatprep.subr.mxu0 0.0
        %1366 = vmatpush1.msra.mxu0 0.0
        %1367 = vmatprep.subr.mxu0 0.0
        %1368 = vmatpush1.msra.mxu0 0.0
        %1369 = vmatprep.subr.mxu0 0.0
        %1370 = vmatpush1.msra.mxu0 0.0
        %1371 = vmatprep.subr.mxu0 0.0
        %1372 = vmatpush1.msra.mxu0 0.0
        %1373 = vmatprep.subr.mxu0 0.0
        %1374 = vmatpush1.msra.mxu0 0.0
        %1375 = vmatprep.subr.mxu0 0.0
        %1376 = vmatpush1.msra.mxu0 0.0
        %1377 = vmatprep.subr.mxu0 0.0
        %1378 = vmatpush1.msra.mxu0 0.0
        %1379 = vmatprep.subr.mxu0 0.0
        %1380 = vmatpush1.msra.mxu0 0.0
        %1381 = vmatprep.subr.mxu0 0.0
        %1382 = vmatpush1.msra.mxu0 0.0
        %1383 = vmatprep.subr.mxu0 0.0
        %1384 = vmatpush1.msra.mxu0 0.0
        %1385 = vmatprep.subr.mxu0 0.0
        %1386 = vmatpush1.msra.mxu0 0.0
        %1387 = vmatprep.subr.mxu0 0.0
        %1388 = vmatpush1.msra.mxu0 0.0
        %1389 = vmatprep.subr.mxu0 0.0
        %1390 = vmatpush1.msra.mxu0 0.0
        %1391 = vmatprep.subr.mxu0 0.0
        %1392 = vmatpush1.msra.mxu0 0.0
        %1393 = vmatprep.subr.mxu0 0.0
        %1394 = vmatpush1.msra.mxu0 0.0
        %1395 = vmatprep.subr.mxu0 0.0
        %1396 = vmatpush1.msra.mxu0 0.0
        %1397 = vmatprep.subr.mxu0 0.0
        %1398 = vmatpush1.msra.mxu0 0.0
        %1399 = vmatprep.subr.mxu0 0.0
        %1400 = vmatpush1.msra.mxu0 0.0
        %1401 = vmatprep.mubr.f32.mxu0 0.0
        %1402 = vmatmul.mubr.f32.gmra.mrb[0].mxu0 %v1335
        %v1403 = vpop.f32.mrb[0].mxu0
        %v1404 = vadd.f32 %v1332, %v1403
        %v1405 = vpop.f32.mrb[0].mxu0
        %v1406 = vadd.f32 %v1332, %v1405
        %1407 = vdwg.mxu0
        %v1408 = vmax.f32 %v1404, 0.0
        %v1409 = vmax.f32 %v1406, 0.0
        %v1410 = vmul.f32 %v1408, %v519
        %v1411 = vmul.f32 %v1409, %v523
        %v1412 = vmul.f32 %v1408, %v532
        %v1413 = vmul.f32 %v1409, %v536
        %1416 = vrot.lane.b32.xlu0 %v1410, 17
        %v1417 = vpop.permute.xlu0 %1416
        %1418 = vrot.lane.b32.xlu0 %v1411, 17
        %v1419 = vpop.permute.xlu0 %1418
        %v1420 = vsel %vm547, %v1417, %v1419
        %v1423 = vsel %vm547, 0.0, %v1417
        %v1424 = vld [vmem:[%s7] sm:$0xff]
        %1427 = vrot.lane.b32.xlu0 %v1408, 16
        %v1428 = vpop.permute.xlu0 %1427
        %1429 = vrot.lane.b32.xlu0 %v1409, 16
        %v1430 = vpop.permute.xlu0 %1429
        %v1431 = vsel %vm559, %v1428, %v1430
        %v1434 = vsel %vm559, 0.0, %v1428
        %s1435 = scalar_lea.vmem %s7, 8
        %v1436 = vld [vmem:[%s1435] sm:$0xff]
        %v1438 = vsel %vm559, %v1436, 0
        %1440 = vmatprep.subr.mxu0 %v560
        %1441 = vmatpush1.msra.mxu0 %v563
        %1442 = vmatprep.subr.mxu0 %v1431
        %1443 = vmatpush1.msra.mxu0 %v1434
        %1444 = vmatprep.subr.mxu0 0.0
        %1445 = vmatpush1.msra.mxu0 0.0
        %1446 = vmatprep.subr.mxu0 0.0
        %1447 = vmatpush1.msra.mxu0 0.0
        %1448 = vmatprep.subr.mxu0 0.0
        %1449 = vmatpush1.msra.mxu0 0.0
        %1450 = vmatprep.subr.mxu0 0.0
        %1451 = vmatpush1.msra.mxu0 0.0
        %1452 = vmatprep.subr.mxu0 0.0
        %1453 = vmatpush1.msra.mxu0 0.0
        %1454 = vmatprep.subr.mxu0 0.0
        %1455 = vmatpush1.msra.mxu0 0.0
        %1456 = vmatprep.subr.mxu0 0.0
        %1457 = vmatpush1.msra.mxu0 0.0
        %1458 = vmatprep.subr.mxu0 0.0
        %1459 = vmatpush1.msra.mxu0 0.0
        %1460 = vmatprep.subr.mxu0 0.0
        %1461 = vmatpush1.msra.mxu0 0.0
        %1462 = vmatprep.subr.mxu0 0.0
        %1463 = vmatpush1.msra.mxu0 0.0
        %1464 = vmatprep.subr.mxu0 0.0
        %1465 = vmatpush1.msra.mxu0 0.0
        %1466 = vmatprep.subr.mxu0 0.0
        %1467 = vmatpush1.msra.mxu0 0.0
        %1468 = vmatprep.subr.mxu0 0.0
        %1469 = vmatpush1.msra.mxu0 0.0
        %1470 = vmatprep.subr.mxu0 0.0
        %1471 = vmatpush1.msra.mxu0 0.0
        %1472 = vmatprep.subr.mxu0 0.0
        %1473 = vmatpush1.msra.mxu0 0.0
        %1474 = vmatprep.subr.mxu0 0.0
        %1475 = vmatpush1.msra.mxu0 0.0
        %1476 = vmatprep.subr.mxu0 0.0
        %1477 = vmatpush1.msra.mxu0 0.0
        %1478 = vmatprep.subr.mxu0 0.0
        %1479 = vmatpush1.msra.mxu0 0.0
        %1480 = vmatprep.subr.mxu0 0.0
        %1481 = vmatpush1.msra.mxu0 0.0
        %1482 = vmatprep.subr.mxu0 0.0
        %1483 = vmatpush1.msra.mxu0 0.0
        %1484 = vmatprep.subr.mxu0 0.0
        %1485 = vmatpush1.msra.mxu0 0.0
        %1486 = vmatprep.subr.mxu0 0.0
        %1487 = vmatpush1.msra.mxu0 0.0
        %1488 = vmatprep.subr.mxu0 0.0
        %1489 = vmatpush1.msra.mxu0 0.0
        %1490 = vmatprep.subr.mxu0 0.0
        %1491 = vmatpush1.msra.mxu0 0.0
        %1492 = vmatprep.subr.mxu0 0.0
        %1493 = vmatpush1.msra.mxu0 0.0
        %1494 = vmatprep.subr.mxu0 0.0
        %1495 = vmatpush1.msra.mxu0 0.0
        %1496 = vmatprep.subr.mxu0 0.0
        %1497 = vmatpush1.msra.mxu0 0.0
        %1498 = vmatprep.subr.mxu0 0.0
        %1499 = vmatpush1.msra.mxu0 0.0
        %1500 = vmatprep.subr.mxu0 0.0
        %1501 = vmatpush1.msra.mxu0 0.0
        %1502 = vmatprep.subr.mxu0 0.0
        %1503 = vmatpush1.msra.mxu0 0.0
        %1504 = vmatprep.mubr.f32.mxu0 0.0
        %1505 = vmatmul.mubr.f32.gmra.mrb[0].mxu0 %v1438
        %v1506 = vpop.f32.mrb[0].mxu0
        %v1507 = vadd.f32 0.0, %v1506
        %v1508 = vpop.f32.mrb[0].mxu0
        %v1509 = vadd.f32 0.0, %v1508
        %1510 = vdwg.mxu0
        %v1512 = vsel %vm559, %v1424, 0
        %1514 = vmatprep.subr.mxu0 %v548
        %1515 = vmatpush1.msra.mxu0 %v551
        %1516 = vmatprep.subr.mxu0 %v1420
        %1517 = vmatpush1.msra.mxu0 %v1423
        %1518 = vmatprep.subr.mxu0 0.0
        %1519 = vmatpush1.msra.mxu0 0.0
        %1520 = vmatprep.subr.mxu0 0.0
        %1521 = vmatpush1.msra.mxu0 0.0
        %1522 = vmatprep.subr.mxu0 0.0
        %1523 = vmatpush1.msra.mxu0 0.0
        %1524 = vmatprep.subr.mxu0 0.0
        %1525 = vmatpush1.msra.mxu0 0.0
        %1526 = vmatprep.subr.mxu0 0.0
        %1527 = vmatpush1.msra.mxu0 0.0
        %1528 = vmatprep.subr.mxu0 0.0
        %1529 = vmatpush1.msra.mxu0 0.0
        %1530 = vmatprep.subr.mxu0 0.0
        %1531 = vmatpush1.msra.mxu0 0.0
        %1532 = vmatprep.subr.mxu0 0.0
        %1533 = vmatpush1.msra.mxu0 0.0
        %1534 = vmatprep.subr.mxu0 0.0
        %1535 = vmatpush1.msra.mxu0 0.0
        %1536 = vmatprep.subr.mxu0 0.0
        %1537 = vmatpush1.msra.mxu0 0.0
        %1538 = vmatprep.subr.mxu0 0.0
        %1539 = vmatpush1.msra.mxu0 0.0
        %1540 = vmatprep.subr.mxu0 0.0
        %1541 = vmatpush1.msra.mxu0 0.0
        %1542 = vmatprep.subr.mxu0 0.0
        %1543 = vmatpush1.msra.mxu0 0.0
        %1544 = vmatprep.subr.mxu0 0.0
        %1545 = vmatpush1.msra.mxu0 0.0
        %1546 = vmatprep.subr.mxu0 0.0
        %1547 = vmatpush1.msra.mxu0 0.0
        %1548 = vmatprep.subr.mxu0 0.0
        %1549 = vmatpush1.msra.mxu0 0.0
        %1550 = vmatprep.subr.mxu0 0.0
        %1551 = vmatpush1.msra.mxu0 0.0
        %1552 = vmatprep.subr.mxu0 0.0
        %1553 = vmatpush1.msra.mxu0 0.0
        %1554 = vmatprep.subr.mxu0 0.0
        %1555 = vmatpush1.msra.mxu0 0.0
        %1556 = vmatprep.subr.mxu0 0.0
        %1557 = vmatpush1.msra.mxu0 0.0
        %1558 = vmatprep.subr.mxu0 0.0
        %1559 = vmatpush1.msra.mxu0 0.0
        %1560 = vmatprep.subr.mxu0 0.0
        %1561 = vmatpush1.msra.mxu0 0.0
        %1562 = vmatprep.subr.mxu0 0.0
        %1563 = vmatpush1.msra.mxu0 0.0
        %1564 = vmatprep.subr.mxu0 0.0
        %1565 = vmatpush1.msra.mxu0 0.0
        %1566 = vmatprep.subr.mxu0 0.0
        %1567 = vmatpush1.msra.mxu0 0.0
        %1568 = vmatprep.subr.mxu0 0.0
        %1569 = vmatpush1.msra.mxu0 0.0
        %1570 = vmatprep.subr.mxu0 0.0
        %1571 = vmatpush1.msra.mxu0 0.0
        %1572 = vmatprep.subr.mxu0 0.0
        %1573 = vmatpush1.msra.mxu0 0.0
        %1574 = vmatprep.subr.mxu0 0.0
        %1575 = vmatpush1.msra.mxu0 0.0
        %1576 = vmatprep.subr.mxu0 0.0
        %1577 = vmatpush1.msra.mxu0 0.0
        %1578 = vmatprep.mubr.f32.mxu0 0.0
        %1579 = vmatmul.mubr.f32.gmra.mrb[0].mxu0 %v1512
        %v1580 = vpop.f32.mrb[0].mxu0
        %v1581 = vadd.f32 %v1507, %v1580
        %v1582 = vpop.f32.mrb[0].mxu0
        %v1583 = vadd.f32 %v1509, %v1582
        %1584 = vdwg.mxu0
        %1587 = vrot.lane.b32.xlu0 %v1412, 15
        %v1588 = vpop.permute.xlu0 %1587
        %1589 = vrot.lane.b32.xlu0 %v1413, 15
        %v1590 = vpop.permute.xlu0 %1589
        %v1591 = vsel %vm721, %v1588, %v1590
        %v1594 = vsel %vm721, 0.0, %v1588
        %s1595 = scalar_lea.vmem %s7, 16
        %v1596 = vld [vmem:[%s1595] sm:$0xff]
        %v1598 = vsel %vm559, %v1596, 0
        %1600 = vmatprep.subr.mxu0 %v722
        %1601 = vmatpush1.msra.mxu0 %v725
        %1602 = vmatprep.subr.mxu0 %v1591
        %1603 = vmatpush1.msra.mxu0 %v1594
        %1604 = vmatprep.subr.mxu0 0.0
        %1605 = vmatpush1.msra.mxu0 0.0
        %1606 = vmatprep.subr.mxu0 0.0
        %1607 = vmatpush1.msra.mxu0 0.0
        %1608 = vmatprep.subr.mxu0 0.0
        %1609 = vmatpush1.msra.mxu0 0.0
        %1610 = vmatprep.subr.mxu0 0.0
        %1611 = vmatpush1.msra.mxu0 0.0
        %1612 = vmatprep.subr.mxu0 0.0
        %1613 = vmatpush1.msra.mxu0 0.0
        %1614 = vmatprep.subr.mxu0 0.0
        %1615 = vmatpush1.msra.mxu0 0.0
        %1616 = vmatprep.subr.mxu0 0.0
        %1617 = vmatpush1.msra.mxu0 0.0
        %1618 = vmatprep.subr.mxu0 0.0
        %1619 = vmatpush1.msra.mxu0 0.0
        %1620 = vmatprep.subr.mxu0 0.0
        %1621 = vmatpush1.msra.mxu0 0.0
        %1622 = vmatprep.subr.mxu0 0.0
        %1623 = vmatpush1.msra.mxu0 0.0
        %1624 = vmatprep.subr.mxu0 0.0
        %1625 = vmatpush1.msra.mxu0 0.0
        %1626 = vmatprep.subr.mxu0 0.0
        %1627 = vmatpush1.msra.mxu0 0.0
        %1628 = vmatprep.subr.mxu0 0.0
        %1629 = vmatpush1.msra.mxu0 0.0
        %1630 = vmatprep.subr.mxu0 0.0
        %1631 = vmatpush1.msra.mxu0 0.0
        %1632 = vmatprep.subr.mxu0 0.0
        %1633 = vmatpush1.msra.mxu0 0.0
        %1634 = vmatprep.subr.mxu0 0.0
        %1635 = vmatpush1.msra.mxu0 0.0
        %1636 = vmatprep.subr.mxu0 0.0
        %1637 = vmatpush1.msra.mxu0 0.0
        %1638 = vmatprep.subr.mxu0 0.0
        %1639 = vmatpush1.msra.mxu0 0.0
        %1640 = vmatprep.subr.mxu0 0.0
        %1641 = vmatpush1.msra.mxu0 0.0
        %1642 = vmatprep.subr.mxu0 0.0
        %1643 = vmatpush1.msra.mxu0 0.0
        %1644 = vmatprep.subr.mxu0 0.0
        %1645 = vmatpush1.msra.mxu0 0.0
        %1646 = vmatprep.subr.mxu0 0.0
        %1647 = vmatpush1.msra.mxu0 0.0
        %1648 = vmatprep.subr.mxu0 0.0
        %1649 = vmatpush1.msra.mxu0 0.0
        %1650 = vmatprep.subr.mxu0 0.0
        %1651 = vmatpush1.msra.mxu0 0.0
        %1652 = vmatprep.subr.mxu0 0.0
        %1653 = vmatpush1.msra.mxu0 0.0
        %1654 = vmatprep.subr.mxu0 0.0
        %1655 = vmatpush1.msra.mxu0 0.0
        %1656 = vmatprep.subr.mxu0 0.0
        %1657 = vmatpush1.msra.mxu0 0.0
        %1658 = vmatprep.subr.mxu0 0.0
        %1659 = vmatpush1.msra.mxu0 0.0
        %1660 = vmatprep.subr.mxu0 0.0
        %1661 = vmatpush1.msra.mxu0 0.0
        %1662 = vmatprep.subr.mxu0 0.0
        %1663 = vmatpush1.msra.mxu0 0.0
        %1664 = vmatprep.mubr.f32.mxu0 0.0
        %1665 = vmatmul.mubr.f32.gmra.mrb[0].mxu0 %v1598
        %v1666 = vpop.f32.mrb[0].mxu0
        %v1667 = vadd.f32 0.0, %v1666
        %v1668 = vpop.f32.mrb[0].mxu0
        %v1669 = vadd.f32 0.0, %v1668
        %1670 = vdwg.mxu0
        %v1671 = vadd.f32 %v1581, %v1667
        %v1672 = vadd.f32 %v1583, %v1669
        %1673 = vrot.lane.b32.xlu0 %v1410, 1
        %v1674 = vpop.permute.xlu0 %1673
        %1675 = vrot.lane.b32.xlu0 %v1411, 1
        %v1676 = vpop.permute.xlu0 %1675
        %v1677 = vsel %vm808, %v1674, %v1676
        %v1680 = vsel %vm808, 0.0, %v1674
        %s1681 = scalar_lea.vmem %s7, 24
        %v1682 = vld [vmem:[%s1681] sm:$0xff]
        %v1684 = vsel %vm559, %v1682, 0
        %1686 = vmatprep.subr.mxu0 %v809
        %1687 = vmatpush1.msra.mxu0 %v812
        %1688 = vmatprep.subr.mxu0 %v1677
        %1689 = vmatpush1.msra.mxu0 %v1680
        %1690 = vmatprep.subr.mxu0 0.0
        %1691 = vmatpush1.msra.mxu0 0.0
        %1692 = vmatprep.subr.mxu0 0.0
        %1693 = vmatpush1.msra.mxu0 0.0
        %1694 = vmatprep.subr.mxu0 0.0
        %1695 = vmatpush1.msra.mxu0 0.0
        %1696 = vmatprep.subr.mxu0 0.0
        %1697 = vmatpush1.msra.mxu0 0.0
        %1698 = vmatprep.subr.mxu0 0.0
        %1699 = vmatpush1.msra.mxu0 0.0
        %1700 = vmatprep.subr.mxu0 0.0
        %1701 = vmatpush1.msra.mxu0 0.0
        %1702 = vmatprep.subr.mxu0 0.0
        %1703 = vmatpush1.msra.mxu0 0.0
        %1704 = vmatprep.subr.mxu0 0.0
        %1705 = vmatpush1.msra.mxu0 0.0
        %1706 = vmatprep.subr.mxu0 0.0
        %1707 = vmatpush1.msra.mxu0 0.0
        %1708 = vmatprep.subr.mxu0 0.0
        %1709 = vmatpush1.msra.mxu0 0.0
        %1710 = vmatprep.subr.mxu0 0.0
        %1711 = vmatpush1.msra.mxu0 0.0
        %1712 = vmatprep.subr.mxu0 0.0
        %1713 = vmatpush1.msra.mxu0 0.0
        %1714 = vmatprep.subr.mxu0 0.0
        %1715 = vmatpush1.msra.mxu0 0.0
        %1716 = vmatprep.subr.mxu0 0.0
        %1717 = vmatpush1.msra.mxu0 0.0
        %1718 = vmatprep.subr.mxu0 0.0
        %1719 = vmatpush1.msra.mxu0 0.0
        %1720 = vmatprep.subr.mxu0 0.0
        %1721 = vmatpush1.msra.mxu0 0.0
        %1722 = vmatprep.subr.mxu0 0.0
        %1723 = vmatpush1.msra.mxu0 0.0
        %1724 = vmatprep.subr.mxu0 0.0
        %1725 = vmatpush1.msra.mxu0 0.0
        %1726 = vmatprep.subr.mxu0 0.0
        %1727 = vmatpush1.msra.mxu0 0.0
        %1728 = vmatprep.subr.mxu0 0.0
        %1729 = vmatpush1.msra.mxu0 0.0
        %1730 = vmatprep.subr.mxu0 0.0
        %1731 = vmatpush1.msra.mxu0 0.0
        %1732 = vmatprep.subr.mxu0 0.0
        %1733 = vmatpush1.msra.mxu0 0.0
        %1734 = vmatprep.subr.mxu0 0.0
        %1735 = vmatpush1.msra.mxu0 0.0
        %1736 = vmatprep.subr.mxu0 0.0
        %1737 = vmatpush1.msra.mxu0 0.0
        %1738 = vmatprep.subr.mxu0 0.0
        %1739 = vmatpush1.msra.mxu0 0.0
        %1740 = vmatprep.subr.mxu0 0.0
        %1741 = vmatpush1.msra.mxu0 0.0
        %1742 = vmatprep.subr.mxu0 0.0
        %1743 = vmatpush1.msra.mxu0 0.0
        %1744 = vmatprep.subr.mxu0 0.0
        %1745 = vmatpush1.msra.mxu0 0.0
        %1746 = vmatprep.subr.mxu0 0.0
        %1747 = vmatpush1.msra.mxu0 0.0
        %1748 = vmatprep.subr.mxu0 0.0
        %1749 = vmatpush1.msra.mxu0 0.0
        %1750 = vmatprep.mubr.f32.mxu0 0.0
        %1751 = vmatmul.mubr.f32.gmra.mrb[0].mxu0 %v1684
        %v1752 = vpop.f32.mrb[0].mxu0
        %v1753 = vadd.f32 0.0, %v1752
        %v1754 = vpop.f32.mrb[0].mxu0
        %v1755 = vadd.f32 0.0, %v1754
        %1756 = vdwg.mxu0
        %v1757 = vadd.f32 %v1671, %v1753
        %v1758 = vadd.f32 %v1672, %v1755
        %s1759 = scalar_lea.vmem %s7, 32
        %v1760 = vld [vmem:[%s1759] sm:$0xff]
        %v1762 = vsel %vm559, %v1760, 0
        %1764 = vmatprep.subr.mxu0 %v514
        %1765 = vmatpush1.msra.mxu0 %v513
        %1766 = vmatprep.subr.mxu0 %v1409
        %1767 = vmatpush1.msra.mxu0 %v1408
        %1768 = vmatprep.subr.mxu0 0.0
        %1769 = vmatpush1.msra.mxu0 0.0
        %1770 = vmatprep.subr.mxu0 0.0
        %1771 = vmatpush1.msra.mxu0 0.0
        %1772 = vmatprep.subr.mxu0 0.0
        %1773 = vmatpush1.msra.mxu0 0.0
        %1774 = vmatprep.subr.mxu0 0.0
        %1775 = vmatpush1.msra.mxu0 0.0
        %1776 = vmatprep.subr.mxu0 0.0
        %1777 = vmatpush1.msra.mxu0 0.0
        %1778 = vmatprep.subr.mxu0 0.0
        %1779 = vmatpush1.msra.mxu0 0.0
        %1780 = vmatprep.subr.mxu0 0.0
        %1781 = vmatpush1.msra.mxu0 0.0
        %1782 = vmatprep.subr.mxu0 0.0
        %1783 = vmatpush1.msra.mxu0 0.0
        %1784 = vmatprep.subr.mxu0 0.0
        %1785 = vmatpush1.msra.mxu0 0.0
        %1786 = vmatprep.subr.mxu0 0.0
        %1787 = vmatpush1.msra.mxu0 0.0
        %1788 = vmatprep.subr.mxu0 0.0
        %1789 = vmatpush1.msra.mxu0 0.0
        %1790 = vmatprep.subr.mxu0 0.0
        %1791 = vmatpush1.msra.mxu0 0.0
        %1792 = vmatprep.subr.mxu0 0.0
        %1793 = vmatpush1.msra.mxu0 0.0
        %1794 = vmatprep.subr.mxu0 0.0
        %1795 = vmatpush1.msra.mxu0 0.0
        %1796 = vmatprep.subr.mxu0 0.0
        %1797 = vmatpush1.msra.mxu0 0.0
        %1798 = vmatprep.subr.mxu0 0.0
        %1799 = vmatpush1.msra.mxu0 0.0
        %1800 = vmatprep.subr.mxu0 0.0
        %1801 = vmatpush1.msra.mxu0 0.0
        %1802 = vmatprep.subr.mxu0 0.0
        %1803 = vmatpush1.msra.mxu0 0.0
        %1804 = vmatprep.subr.mxu0 0.0
        %1805 = vmatpush1.msra.mxu0 0.0
        %1806 = vmatprep.subr.mxu0 0.0
        %1807 = vmatpush1.msra.mxu0 0.0
        %1808 = vmatprep.subr.mxu0 0.0
        %1809 = vmatpush1.msra.mxu0 0.0
        %1810 = vmatprep.subr.mxu0 0.0
        %1811 = vmatpush1.msra.mxu0 0.0
        %1812 = vmatprep.subr.mxu0 0.0
        %1813 = vmatpush1.msra.mxu0 0.0
        %1814 = vmatprep.subr.mxu0 0.0
        %1815 = vmatpush1.msra.mxu0 0.0
        %1816 = vmatprep.subr.mxu0 0.0
        %1817 = vmatpush1.msra.mxu0 0.0
        %1818 = vmatprep.subr.mxu0 0.0
        %1819 = vmatpush1.msra.mxu0 0.0
        %1820 = vmatprep.subr.mxu0 0.0
        %1821 = vmatpush1.msra.mxu0 0.0
        %1822 = vmatprep.subr.mxu0 0.0
        %1823 = vmatpush1.msra.mxu0 0.0
        %1824 = vmatprep.subr.mxu0 0.0
        %1825 = vmatpush1.msra.mxu0 0.0
        %1826 = vmatprep.subr.mxu0 0.0
        %1827 = vmatpush1.msra.mxu0 0.0
        %1828 = vmatprep.mubr.f32.mxu0 0.0
        %1829 = vmatmul.mubr.f32.gmra.mrb[0].mxu0 %v1762
        %v1830 = vpop.f32.mrb[0].mxu0
        %v1831 = vadd.f32 0.0, %v1830
        %v1832 = vpop.f32.mrb[0].mxu0
        %v1833 = vadd.f32 0.0, %v1832
        %1834 = vdwg.mxu0
        %v1835 = vadd.f32 %v1757, %v1831
        %v1836 = vadd.f32 %v1758, %v1833
        %1837 = vrot.lane.b32.xlu0 %v1412, 127
        %v1838 = vpop.permute.xlu0 %1837
        %1839 = vrot.lane.b32.xlu0 %v1413, 127
        %v1840 = vpop.permute.xlu0 %1839
        %v1841 = vsel %vm973, %v1838, %v1840
        %v1844 = vsel %vm973, %v1840, 0.0
        %s1845 = scalar_lea.vmem %s7, 40
        %v1846 = vld [vmem:[%s1845] sm:$0xff]
        %v1848 = vsel %vm559, %v1846, 0
        %1850 = vmatprep.subr.mxu0 %v977
        %1851 = vmatpush1.msra.mxu0 %v974
        %1852 = vmatprep.subr.mxu0 %v1844
        %1853 = vmatpush1.msra.mxu0 %v1841
        %1854 = vmatprep.subr.mxu0 0.0
        %1855 = vmatpush1.msra.mxu0 0.0
        %1856 = vmatprep.subr.mxu0 0.0
        %1857 = vmatpush1.msra.mxu0 0.0
        %1858 = vmatprep.subr.mxu0 0.0
        %1859 = vmatpush1.msra.mxu0 0.0
        %1860 = vmatprep.subr.mxu0 0.0
        %1861 = vmatpush1.msra.mxu0 0.0
        %1862 = vmatprep.subr.mxu0 0.0
        %1863 = vmatpush1.msra.mxu0 0.0
        %1864 = vmatprep.subr.mxu0 0.0
        %1865 = vmatpush1.msra.mxu0 0.0
        %1866 = vmatprep.subr.mxu0 0.0
        %1867 = vmatpush1.msra.mxu0 0.0
        %1868 = vmatprep.subr.mxu0 0.0
        %1869 = vmatpush1.msra.mxu0 0.0
        %1870 = vmatprep.subr.mxu0 0.0
        %1871 = vmatpush1.msra.mxu0 0.0
        %1872 = vmatprep.subr.mxu0 0.0
        %1873 = vmatpush1.msra.mxu0 0.0
        %1874 = vmatprep.subr.mxu0 0.0
        %1875 = vmatpush1.msra.mxu0 0.0
        %1876 = vmatprep.subr.mxu0 0.0
        %1877 = vmatpush1.msra.mxu0 0.0
        %1878 = vmatprep.subr.mxu0 0.0
        %1879 = vmatpush1.msra.mxu0 0.0
        %1880 = vmatprep.subr.mxu0 0.0
        %1881 = vmatpush1.msra.mxu0 0.0
        %1882 = vmatprep.subr.mxu0 0.0
        %1883 = vmatpush1.msra.mxu0 0.0
        %1884 = vmatprep.subr.mxu0 0.0
        %1885 = vmatpush1.msra.mxu0 0.0
        %1886 = vmatprep.subr.mxu0 0.0
        %1887 = vmatpush1.msra.mxu0 0.0
        %1888 = vmatprep.subr.mxu0 0.0
        %1889 = vmatpush1.msra.mxu0 0.0
        %1890 = vmatprep.subr.mxu0 0.0
        %1891 = vmatpush1.msra.mxu0 0.0
        %1892 = vmatprep.subr.mxu0 0.0
        %1893 = vmatpush1.msra.mxu0 0.0
        %1894 = vmatprep.subr.mxu0 0.0
        %1895 = vmatpush1.msra.mxu0 0.0
        %1896 = vmatprep.subr.mxu0 0.0
        %1897 = vmatpush1.msra.mxu0 0.0
        %1898 = vmatprep.subr.mxu0 0.0
        %1899 = vmatpush1.msra.mxu0 0.0
        %1900 = vmatprep.subr.mxu0 0.0
        %1901 = vmatpush1.msra.mxu0 0.0
        %1902 = vmatprep.subr.mxu0 0.0
        %1903 = vmatpush1.msra.mxu0 0.0
        %1904 = vmatprep.subr.mxu0 0.0
        %1905 = vmatpush1.msra.mxu0 0.0
        %1906 = vmatprep.subr.mxu0 0.0
        %1907 = vmatpush1.msra.mxu0 0.0
        %1908 = vmatprep.subr.mxu0 0.0
        %1909 = vmatpush1.msra.mxu0 0.0
        %1910 = vmatprep.subr.mxu0 0.0
        %1911 = vmatpush1.msra.mxu0 0.0
        %1912 = vmatprep.subr.mxu0 0.0
        %1913 = vmatpush1.msra.mxu0 0.0
        %1914 = vmatprep.mubr.f32.mxu0 0.0
        %1915 = vmatmul.mubr.f32.gmra.mrb[0].mxu0 %v1848
        %v1916 = vpop.f32.mrb[0].mxu0
        %v1917 = vadd.f32 0.0, %v1916
        %v1918 = vpop.f32.mrb[0].mxu0
        %v1919 = vadd.f32 0.0, %v1918
        %1920 = vdwg.mxu0
        %v1921 = vadd.f32 %v1835, %v1917
        %v1922 = vadd.f32 %v1836, %v1919
        %1923 = vrot.lane.b32.xlu0 %v1410, 113
        %v1924 = vpop.permute.xlu0 %1923
        %1925 = vrot.lane.b32.xlu0 %v1411, 113
        %v1926 = vpop.permute.xlu0 %1925
        %v1927 = vsel %vm1060, %v1924, %v1926
        %v1930 = vsel %vm1060, %v1926, 0.0
        %s1931 = scalar_lea.vmem %s7, 48
        %v1932 = vld [vmem:[%s1931] sm:$0xff]
        %v1934 = vsel %vm559, %v1932, 0
        %1936 = vmatprep.subr.mxu0 %v1064
        %1937 = vmatpush1.msra.mxu0 %v1061
        %1938 = vmatprep.subr.mxu0 %v1930
        %1939 = vmatpush1.msra.mxu0 %v1927
        %1940 = vmatprep.subr.mxu0 0.0
        %1941 = vmatpush1.msra.mxu0 0.0
        %1942 = vmatprep.subr.mxu0 0.0
        %1943 = vmatpush1.msra.mxu0 0.0
        %1944 = vmatprep.subr.mxu0 0.0
        %1945 = vmatpush1.msra.mxu0 0.0
        %1946 = vmatprep.subr.mxu0 0.0
        %1947 = vmatpush1.msra.mxu0 0.0
        %1948 = vmatprep.subr.mxu0 0.0
        %1949 = vmatpush1.msra.mxu0 0.0
        %1950 = vmatprep.subr.mxu0 0.0
        %1951 = vmatpush1.msra.mxu0 0.0
        %1952 = vmatprep.subr.mxu0 0.0
        %1953 = vmatpush1.msra.mxu0 0.0
        %1954 = vmatprep.subr.mxu0 0.0
        %1955 = vmatpush1.msra.mxu0 0.0
        %1956 = vmatprep.subr.mxu0 0.0
        %1957 = vmatpush1.msra.mxu0 0.0
        %1958 = vmatprep.subr.mxu0 0.0
        %1959 = vmatpush1.msra.mxu0 0.0
        %1960 = vmatprep.subr.mxu0 0.0
        %1961 = vmatpush1.msra.mxu0 0.0
        %1962 = vmatprep.subr.mxu0 0.0
        %1963 = vmatpush1.msra.mxu0 0.0
        %1964 = vmatprep.subr.mxu0 0.0
        %1965 = vmatpush1.msra.mxu0 0.0
        %1966 = vmatprep.subr.mxu0 0.0
        %1967 = vmatpush1.msra.mxu0 0.0
        %1968 = vmatprep.subr.mxu0 0.0
        %1969 = vmatpush1.msra.mxu0 0.0
        %1970 = vmatprep.subr.mxu0 0.0
        %1971 = vmatpush1.msra.mxu0 0.0
        %1972 = vmatprep.subr.mxu0 0.0
        %1973 = vmatpush1.msra.mxu0 0.0
        %1974 = vmatprep.subr.mxu0 0.0
        %1975 = vmatpush1.msra.mxu0 0.0
        %1976 = vmatprep.subr.mxu0 0.0
        %1977 = vmatpush1.msra.mxu0 0.0
        %1978 = vmatprep.subr.mxu0 0.0
        %1979 = vmatpush1.msra.mxu0 0.0
        %1980 = vmatprep.subr.mxu0 0.0
        %1981 = vmatpush1.msra.mxu0 0.0
        %1982 = vmatprep.subr.mxu0 0.0
        %1983 = vmatpush1.msra.mxu0 0.0
        %1984 = vmatprep.subr.mxu0 0.0
        %1985 = vmatpush1.msra.mxu0 0.0
        %1986 = vmatprep.subr.mxu0 0.0
        %1987 = vmatpush1.msra.mxu0 0.0
        %1988 = vmatprep.subr.mxu0 0.0
        %1989 = vmatpush1.msra.mxu0 0.0
        %1990 = vmatprep.subr.mxu0 0.0
        %1991 = vmatpush1.msra.mxu0 0.0
        %1992 = vmatprep.subr.mxu0 0.0
        %1993 = vmatpush1.msra.mxu0 0.0
        %1994 = vmatprep.subr.mxu0 0.0
        %1995 = vmatpush1.msra.mxu0 0.0
        %1996 = vmatprep.subr.mxu0 0.0
        %1997 = vmatpush1.msra.mxu0 0.0
        %1998 = vmatprep.subr.mxu0 0.0
        %1999 = vmatpush1.msra.mxu0 0.0
        %2000 = vmatprep.mubr.f32.mxu0 0.0
        %2001 = vmatmul.mubr.f32.gmra.mrb[0].mxu0 %v1934
        %v2002 = vpop.f32.mrb[0].mxu0
        %v2003 = vadd.f32 0.0, %v2002
        %v2004 = vpop.f32.mrb[0].mxu0
        %v2005 = vadd.f32 0.0, %v2004
        %2006 = vdwg.mxu0
        %v2007 = vadd.f32 %v1921, %v2003
        %v2008 = vadd.f32 %v1922, %v2005
        %2009 = vrot.lane.b32.xlu0 %v1408, 112
        %v2010 = vpop.permute.xlu0 %2009
        %2011 = vrot.lane.b32.xlu0 %v1409, 112
        %v2012 = vpop.permute.xlu0 %2011
        %v2013 = vsel %vm1147, %v2010, %v2012
        %v2016 = vsel %vm1147, %v2012, 0.0
        %s2017 = scalar_lea.vmem %s7, 56
        %v2018 = vld [vmem:[%s2017] sm:$0xff]
        %v2020 = vsel %vm559, %v2018, 0
        %2022 = vmatprep.subr.mxu0 %v1151
        %2023 = vmatpush1.msra.mxu0 %v1148
        %2024 = vmatprep.subr.mxu0 %v2016
        %2025 = vmatpush1.msra.mxu0 %v2013
        %2026 = vmatprep.subr.mxu0 0.0
        %2027 = vmatpush1.msra.mxu0 0.0
        %2028 = vmatprep.subr.mxu0 0.0
        %2029 = vmatpush1.msra.mxu0 0.0
        %2030 = vmatprep.subr.mxu0 0.0
        %2031 = vmatpush1.msra.mxu0 0.0
        %2032 = vmatprep.subr.mxu0 0.0
        %2033 = vmatpush1.msra.mxu0 0.0
        %2034 = vmatprep.subr.mxu0 0.0
        %2035 = vmatpush1.msra.mxu0 0.0
        %2036 = vmatprep.subr.mxu0 0.0
        %2037 = vmatpush1.msra.mxu0 0.0
        %2038 = vmatprep.subr.mxu0 0.0
        %2039 = vmatpush1.msra.mxu0 0.0
        %2040 = vmatprep.subr.mxu0 0.0
        %2041 = vmatpush1.msra.mxu0 0.0
        %2042 = vmatprep.subr.mxu0 0.0
        %2043 = vmatpush1.msra.mxu0 0.0
        %2044 = vmatprep.subr.mxu0 0.0
        %2045 = vmatpush1.msra.mxu0 0.0
        %2046 = vmatprep.subr.mxu0 0.0
        %2047 = vmatpush1.msra.mxu0 0.0
        %2048 = vmatprep.subr.mxu0 0.0
        %2049 = vmatpush1.msra.mxu0 0.0
        %2050 = vmatprep.subr.mxu0 0.0
        %2051 = vmatpush1.msra.mxu0 0.0
        %2052 = vmatprep.subr.mxu0 0.0
        %2053 = vmatpush1.msra.mxu0 0.0
        %2054 = vmatprep.subr.mxu0 0.0
        %2055 = vmatpush1.msra.mxu0 0.0
        %2056 = vmatprep.subr.mxu0 0.0
        %2057 = vmatpush1.msra.mxu0 0.0
        %2058 = vmatprep.subr.mxu0 0.0
        %2059 = vmatpush1.msra.mxu0 0.0
        %2060 = vmatprep.subr.mxu0 0.0
        %2061 = vmatpush1.msra.mxu0 0.0
        %2062 = vmatprep.subr.mxu0 0.0
        %2063 = vmatpush1.msra.mxu0 0.0
        %2064 = vmatprep.subr.mxu0 0.0
        %2065 = vmatpush1.msra.mxu0 0.0
        %2066 = vmatprep.subr.mxu0 0.0
        %2067 = vmatpush1.msra.mxu0 0.0
        %2068 = vmatprep.subr.mxu0 0.0
        %2069 = vmatpush1.msra.mxu0 0.0
        %2070 = vmatprep.subr.mxu0 0.0
        %2071 = vmatpush1.msra.mxu0 0.0
        %2072 = vmatprep.subr.mxu0 0.0
        %2073 = vmatpush1.msra.mxu0 0.0
        %2074 = vmatprep.subr.mxu0 0.0
        %2075 = vmatpush1.msra.mxu0 0.0
        %2076 = vmatprep.subr.mxu0 0.0
        %2077 = vmatpush1.msra.mxu0 0.0
        %2078 = vmatprep.subr.mxu0 0.0
        %2079 = vmatpush1.msra.mxu0 0.0
        %2080 = vmatprep.subr.mxu0 0.0
        %2081 = vmatpush1.msra.mxu0 0.0
        %2082 = vmatprep.subr.mxu0 0.0
        %2083 = vmatpush1.msra.mxu0 0.0
        %2084 = vmatprep.subr.mxu0 0.0
        %2085 = vmatpush1.msra.mxu0 0.0
        %2086 = vmatprep.mubr.f32.mxu0 0.0
        %2087 = vmatmul.mubr.f32.gmra.mrb[0].mxu0 %v2020
        %v2088 = vpop.f32.mrb[0].mxu0
        %v2089 = vadd.f32 0.0, %v2088
        %v2090 = vpop.f32.mrb[0].mxu0
        %v2091 = vadd.f32 0.0, %v2090
        %2092 = vdwg.mxu0
        %v2093 = vadd.f32 %v2007, %v2089
        %v2094 = vadd.f32 %v2008, %v2091
        %2095 = vrot.lane.b32.xlu0 %v1412, 111
        %v2096 = vpop.permute.xlu0 %2095
        %2097 = vrot.lane.b32.xlu0 %v1413, 111
        %v2098 = vpop.permute.xlu0 %2097
        %v2099 = vsel %vm1234, %v2096, %v2098
        %v2102 = vsel %vm1234, %v2098, 0.0
        %s2103 = scalar_lea.vmem %s7, 64
        %v2104 = vld [vmem:[%s2103] sm:$0xff]
        %v2106 = vsel %vm559, %v2104, 0
        %2108 = vmatprep.subr.mxu0 %v1238
        %2109 = vmatpush1.msra.mxu0 %v1235
        %2110 = vmatprep.subr.mxu0 %v2102
        %2111 = vmatpush1.msra.mxu0 %v2099
        %2112 = vmatprep.subr.mxu0 0.0
        %2113 = vmatpush1.msra.mxu0 0.0
        %2114 = vmatprep.subr.mxu0 0.0
        %2115 = vmatpush1.msra.mxu0 0.0
        %2116 = vmatprep.subr.mxu0 0.0
        %2117 = vmatpush1.msra.mxu0 0.0
        %2118 = vmatprep.subr.mxu0 0.0
        %2119 = vmatpush1.msra.mxu0 0.0
        %2120 = vmatprep.subr.mxu0 0.0
        %2121 = vmatpush1.msra.mxu0 0.0
        %2122 = vmatprep.subr.mxu0 0.0
        %2123 = vmatpush1.msra.mxu0 0.0
        %2124 = vmatprep.subr.mxu0 0.0
        %2125 = vmatpush1.msra.mxu0 0.0
        %2126 = vmatprep.subr.mxu0 0.0
        %2127 = vmatpush1.msra.mxu0 0.0
        %2128 = vmatprep.subr.mxu0 0.0
        %2129 = vmatpush1.msra.mxu0 0.0
        %2130 = vmatprep.subr.mxu0 0.0
        %2131 = vmatpush1.msra.mxu0 0.0
        %2132 = vmatprep.subr.mxu0 0.0
        %2133 = vmatpush1.msra.mxu0 0.0
        %2134 = vmatprep.subr.mxu0 0.0
        %2135 = vmatpush1.msra.mxu0 0.0
        %2136 = vmatprep.subr.mxu0 0.0
        %2137 = vmatpush1.msra.mxu0 0.0
        %2138 = vmatprep.subr.mxu0 0.0
        %2139 = vmatpush1.msra.mxu0 0.0
        %2140 = vmatprep.subr.mxu0 0.0
        %2141 = vmatpush1.msra.mxu0 0.0
        %2142 = vmatprep.subr.mxu0 0.0
        %2143 = vmatpush1.msra.mxu0 0.0
        %2144 = vmatprep.subr.mxu0 0.0
        %2145 = vmatpush1.msra.mxu0 0.0
        %2146 = vmatprep.subr.mxu0 0.0
        %2147 = vmatpush1.msra.mxu0 0.0
        %2148 = vmatprep.subr.mxu0 0.0
        %2149 = vmatpush1.msra.mxu0 0.0
        %2150 = vmatprep.subr.mxu0 0.0
        %2151 = vmatpush1.msra.mxu0 0.0
        %2152 = vmatprep.subr.mxu0 0.0
        %2153 = vmatpush1.msra.mxu0 0.0
        %2154 = vmatprep.subr.mxu0 0.0
        %2155 = vmatpush1.msra.mxu0 0.0
        %2156 = vmatprep.subr.mxu0 0.0
        %2157 = vmatpush1.msra.mxu0 0.0
        %2158 = vmatprep.subr.mxu0 0.0
        %2159 = vmatpush1.msra.mxu0 0.0
        %2160 = vmatprep.subr.mxu0 0.0
        %2161 = vmatpush1.msra.mxu0 0.0
        %2162 = vmatprep.subr.mxu0 0.0
        %2163 = vmatpush1.msra.mxu0 0.0
        %2164 = vmatprep.subr.mxu0 0.0
        %2165 = vmatpush1.msra.mxu0 0.0
        %2166 = vmatprep.subr.mxu0 0.0
        %2167 = vmatpush1.msra.mxu0 0.0
        %2168 = vmatprep.subr.mxu0 0.0
        %2169 = vmatpush1.msra.mxu0 0.0
        %2170 = vmatprep.subr.mxu0 0.0
        %2171 = vmatpush1.msra.mxu0 0.0
        %2172 = vmatprep.mubr.f32.mxu0 0.0
        %2173 = vmatmul.mubr.f32.gmra.mrb[0].mxu0 %v2106
        %v2174 = vpop.f32.mrb[0].mxu0
        %v2175 = vadd.f32 0.0, %v2174
        %v2176 = vpop.f32.mrb[0].mxu0
        %v2177 = vadd.f32 0.0, %v2176
        %2178 = vdwg.mxu0
        %v2179 = vadd.f32 %v2093, %v2175
        %v2180 = vadd.f32 %v2094, %v2177
        %v2181 = vld [vmem:[%s8] sm:$0xff]
        %2183 = vset.pattern.permute.xlu0 0
        %2184 = vperm.xlu0 %2183, %v2181
        %v2185 = vpop.permute.xlu0 %2184
        %v2187 = vadd.f32 %v2179, %v2185
        %v2188 = vadd.f32 %v2180, %v2185
        %v2189 = vmax.f32 %v2187, 0.0
        %v2190 = vmax.f32 %v2188, 0.0
        %v2191 = vmul.f32 %v2189, %v519
        %v2192 = vmul.f32 %v2190, %v523
        %v2193 = vmul.f32 %v2189, %v532
        %v2194 = vmul.f32 %v2190, %v536
        %2197 = vrot.lane.b32.xlu0 %v2191, 17
        %v2198 = vpop.permute.xlu0 %2197
        %2199 = vrot.lane.b32.xlu0 %v2192, 17
        %v2200 = vpop.permute.xlu0 %2199
        %v2201 = vsel %vm547, %v2198, %v2200
        %v2204 = vsel %vm547, 0.0, %v2198
        %v2205 = vld [vmem:[%s9] sm:$0xff]
        %2208 = vrot.lane.b32.xlu0 %v2189, 16
        %v2209 = vpop.permute.xlu0 %2208
        %2210 = vrot.lane.b32.xlu0 %v2190, 16
        %v2211 = vpop.permute.xlu0 %2210
        %v2212 = vsel %vm559, %v2209, %v2211
        %v2215 = vsel %vm559, 0.0, %v2209
        %s2216 = scalar_lea.vmem %s9, 8
        %v2217 = vld [vmem:[%s2216] sm:$0xff]
        %v2219 = vsel %vm566, %v2217, 0
        %2221 = vmatprep.subr.mxu0 %v2212
        %2222 = vmatpush1.msra.mxu0 %v2215
        %2223 = vmatprep.subr.mxu0 0.0
        %2224 = vmatpush1.msra.mxu0 0.0
        %2225 = vmatprep.subr.mxu0 0.0
        %2226 = vmatpush1.msra.mxu0 0.0
        %2227 = vmatprep.subr.mxu0 0.0
        %2228 = vmatpush1.msra.mxu0 0.0
        %2229 = vmatprep.subr.mxu0 0.0
        %2230 = vmatpush1.msra.mxu0 0.0
        %2231 = vmatprep.subr.mxu0 0.0
        %2232 = vmatpush1.msra.mxu0 0.0
        %2233 = vmatprep.subr.mxu0 0.0
        %2234 = vmatpush1.msra.mxu0 0.0
        %2235 = vmatprep.subr.mxu0 0.0
        %2236 = vmatpush1.msra.mxu0 0.0
        %2237 = vmatprep.subr.mxu0 0.0
        %2238 = vmatpush1.msra.mxu0 0.0
        %2239 = vmatprep.subr.mxu0 0.0
        %2240 = vmatpush1.msra.mxu0 0.0
        %2241 = vmatprep.subr.mxu0 0.0
        %2242 = vmatpush1.msra.mxu0 0.0
        %2243 = vmatprep.subr.mxu0 0.0
        %2244 = vmatpush1.msra.mxu0 0.0
        %2245 = vmatprep.subr.mxu0 0.0
        %2246 = vmatpush1.msra.mxu0 0.0
        %2247 = vmatprep.subr.mxu0 0.0
        %2248 = vmatpush1.msra.mxu0 0.0
        %2249 = vmatprep.subr.mxu0 0.0
        %2250 = vmatpush1.msra.mxu0 0.0
        %2251 = vmatprep.subr.mxu0 0.0
        %2252 = vmatpush1.msra.mxu0 0.0
        %2253 = vmatprep.subr.mxu0 0.0
        %2254 = vmatpush1.msra.mxu0 0.0
        %2255 = vmatprep.subr.mxu0 0.0
        %2256 = vmatpush1.msra.mxu0 0.0
        %2257 = vmatprep.subr.mxu0 0.0
        %2258 = vmatpush1.msra.mxu0 0.0
        %2259 = vmatprep.subr.mxu0 0.0
        %2260 = vmatpush1.msra.mxu0 0.0
        %2261 = vmatprep.subr.mxu0 0.0
        %2262 = vmatpush1.msra.mxu0 0.0
        %2263 = vmatprep.subr.mxu0 0.0
        %2264 = vmatpush1.msra.mxu0 0.0
        %2265 = vmatprep.subr.mxu0 0.0
        %2266 = vmatpush1.msra.mxu0 0.0
        %2267 = vmatprep.subr.mxu0 0.0
        %2268 = vmatpush1.msra.mxu0 0.0
        %2269 = vmatprep.subr.mxu0 0.0
        %2270 = vmatpush1.msra.mxu0 0.0
        %2271 = vmatprep.subr.mxu0 0.0
        %2272 = vmatpush1.msra.mxu0 0.0
        %2273 = vmatprep.subr.mxu0 0.0
        %2274 = vmatpush1.msra.mxu0 0.0
        %2275 = vmatprep.subr.mxu0 0.0
        %2276 = vmatpush1.msra.mxu0 0.0
        %2277 = vmatprep.subr.mxu0 0.0
        %2278 = vmatpush1.msra.mxu0 0.0
        %2279 = vmatprep.subr.mxu0 0.0
        %2280 = vmatpush1.msra.mxu0 0.0
        %2281 = vmatprep.subr.mxu0 0.0
        %2282 = vmatpush1.msra.mxu0 0.0
        %2283 = vmatprep.subr.mxu0 0.0
        %2284 = vmatpush1.msra.mxu0 0.0
        %2285 = vmatprep.mubr.f32.mxu0 0.0
        %2286 = vmatmul.mubr.f32.gmra.mrb[0].mxu0 %v2219
        %v2287 = vpop.f32.mrb[0].mxu0
        %v2288 = vadd.f32 0.0, %v2287
        %v2289 = vpop.f32.mrb[0].mxu0
        %v2290 = vadd.f32 0.0, %v2289
        %2291 = vdwg.mxu0
        %v2293 = vsel %vm566, %v2205, 0
        %2295 = vmatprep.subr.mxu0 %v2201
        %2296 = vmatpush1.msra.mxu0 %v2204
        %2297 = vmatprep.subr.mxu0 0.0
        %2298 = vmatpush1.msra.mxu0 0.0
        %2299 = vmatprep.subr.mxu0 0.0
        %2300 = vmatpush1.msra.mxu0 0.0
        %2301 = vmatprep.subr.mxu0 0.0
        %2302 = vmatpush1.msra.mxu0 0.0
        %2303 = vmatprep.subr.mxu0 0.0
        %2304 = vmatpush1.msra.mxu0 0.0
        %2305 = vmatprep.subr.mxu0 0.0
        %2306 = vmatpush1.msra.mxu0 0.0
        %2307 = vmatprep.subr.mxu0 0.0
        %2308 = vmatpush1.msra.mxu0 0.0
        %2309 = vmatprep.subr.mxu0 0.0
        %2310 = vmatpush1.msra.mxu0 0.0
        %2311 = vmatprep.subr.mxu0 0.0
        %2312 = vmatpush1.msra.mxu0 0.0
        %2313 = vmatprep.subr.mxu0 0.0
        %2314 = vmatpush1.msra.mxu0 0.0
        %2315 = vmatprep.subr.mxu0 0.0
        %2316 = vmatpush1.msra.mxu0 0.0
        %2317 = vmatprep.subr.mxu0 0.0
        %2318 = vmatpush1.msra.mxu0 0.0
        %2319 = vmatprep.subr.mxu0 0.0
        %2320 = vmatpush1.msra.mxu0 0.0
        %2321 = vmatprep.subr.mxu0 0.0
        %2322 = vmatpush1.msra.mxu0 0.0
        %2323 = vmatprep.subr.mxu0 0.0
        %2324 = vmatpush1.msra.mxu0 0.0
        %2325 = vmatprep.subr.mxu0 0.0
        %2326 = vmatpush1.msra.mxu0 0.0
        %2327 = vmatprep.subr.mxu0 0.0
        %2328 = vmatpush1.msra.mxu0 0.0
        %2329 = vmatprep.subr.mxu0 0.0
        %2330 = vmatpush1.msra.mxu0 0.0
        %2331 = vmatprep.subr.mxu0 0.0
        %2332 = vmatpush1.msra.mxu0 0.0
        %2333 = vmatprep.subr.mxu0 0.0
        %2334 = vmatpush1.msra.mxu0 0.0
        %2335 = vmatprep.subr.mxu0 0.0
        %2336 = vmatpush1.msra.mxu0 0.0
        %2337 = vmatprep.subr.mxu0 0.0
        %2338 = vmatpush1.msra.mxu0 0.0
        %2339 = vmatprep.subr.mxu0 0.0
        %2340 = vmatpush1.msra.mxu0 0.0
        %2341 = vmatprep.subr.mxu0 0.0
        %2342 = vmatpush1.msra.mxu0 0.0
        %2343 = vmatprep.subr.mxu0 0.0
        %2344 = vmatpush1.msra.mxu0 0.0
        %2345 = vmatprep.subr.mxu0 0.0
        %2346 = vmatpush1.msra.mxu0 0.0
        %2347 = vmatprep.subr.mxu0 0.0
        %2348 = vmatpush1.msra.mxu0 0.0
        %2349 = vmatprep.subr.mxu0 0.0
        %2350 = vmatpush1.msra.mxu0 0.0
        %2351 = vmatprep.subr.mxu0 0.0
        %2352 = vmatpush1.msra.mxu0 0.0
        %2353 = vmatprep.subr.mxu0 0.0
        %2354 = vmatpush1.msra.mxu0 0.0
        %2355 = vmatprep.subr.mxu0 0.0
        %2356 = vmatpush1.msra.mxu0 0.0
        %2357 = vmatprep.subr.mxu0 0.0
        %2358 = vmatpush1.msra.mxu0 0.0
        %2359 = vmatprep.mubr.f32.mxu0 0.0
        %2360 = vmatmul.mubr.f32.gmra.mrb[0].mxu0 %v2293
        %v2361 = vpop.f32.mrb[0].mxu0
        %v2362 = vadd.f32 %v2288, %v2361
        %v2363 = vpop.f32.mrb[0].mxu0
        %v2364 = vadd.f32 %v2290, %v2363
        %2365 = vdwg.mxu0
        %2368 = vrot.lane.b32.xlu0 %v2193, 15
        %v2369 = vpop.permute.xlu0 %2368
        %2370 = vrot.lane.b32.xlu0 %v2194, 15
        %v2371 = vpop.permute.xlu0 %2370
        %v2372 = vsel %vm721, %v2369, %v2371
        %v2375 = vsel %vm721, 0.0, %v2369
        %s2376 = scalar_lea.vmem %s9, 16
        %v2377 = vld [vmem:[%s2376] sm:$0xff]
        %v2379 = vsel %vm566, %v2377, 0
        %2381 = vmatprep.subr.mxu0 %v2372
        %2382 = vmatpush1.msra.mxu0 %v2375
        %2383 = vmatprep.subr.mxu0 0.0
        %2384 = vmatpush1.msra.mxu0 0.0
        %2385 = vmatprep.subr.mxu0 0.0
        %2386 = vmatpush1.msra.mxu0 0.0
        %2387 = vmatprep.subr.mxu0 0.0
        %2388 = vmatpush1.msra.mxu0 0.0
        %2389 = vmatprep.subr.mxu0 0.0
        %2390 = vmatpush1.msra.mxu0 0.0
        %2391 = vmatprep.subr.mxu0 0.0
        %2392 = vmatpush1.msra.mxu0 0.0
        %2393 = vmatprep.subr.mxu0 0.0
        %2394 = vmatpush1.msra.mxu0 0.0
        %2395 = vmatprep.subr.mxu0 0.0
        %2396 = vmatpush1.msra.mxu0 0.0
        %2397 = vmatprep.subr.mxu0 0.0
        %2398 = vmatpush1.msra.mxu0 0.0
        %2399 = vmatprep.subr.mxu0 0.0
        %2400 = vmatpush1.msra.mxu0 0.0
        %2401 = vmatprep.subr.mxu0 0.0
        %2402 = vmatpush1.msra.mxu0 0.0
        %2403 = vmatprep.subr.mxu0 0.0
        %2404 = vmatpush1.msra.mxu0 0.0
        %2405 = vmatprep.subr.mxu0 0.0
        %2406 = vmatpush1.msra.mxu0 0.0
        %2407 = vmatprep.subr.mxu0 0.0
        %2408 = vmatpush1.msra.mxu0 0.0
        %2409 = vmatprep.subr.mxu0 0.0
        %2410 = vmatpush1.msra.mxu0 0.0
        %2411 = vmatprep.subr.mxu0 0.0
        %2412 = vmatpush1.msra.mxu0 0.0
        %2413 = vmatprep.subr.mxu0 0.0
        %2414 = vmatpush1.msra.mxu0 0.0
        %2415 = vmatprep.subr.mxu0 0.0
        %2416 = vmatpush1.msra.mxu0 0.0
        %2417 = vmatprep.subr.mxu0 0.0
        %2418 = vmatpush1.msra.mxu0 0.0
        %2419 = vmatprep.subr.mxu0 0.0
        %2420 = vmatpush1.msra.mxu0 0.0
        %2421 = vmatprep.subr.mxu0 0.0
        %2422 = vmatpush1.msra.mxu0 0.0
        %2423 = vmatprep.subr.mxu0 0.0
        %2424 = vmatpush1.msra.mxu0 0.0
        %2425 = vmatprep.subr.mxu0 0.0
        %2426 = vmatpush1.msra.mxu0 0.0
        %2427 = vmatprep.subr.mxu0 0.0
        %2428 = vmatpush1.msra.mxu0 0.0
        %2429 = vmatprep.subr.mxu0 0.0
        %2430 = vmatpush1.msra.mxu0 0.0
        %2431 = vmatprep.subr.mxu0 0.0
        %2432 = vmatpush1.msra.mxu0 0.0
        %2433 = vmatprep.subr.mxu0 0.0
        %2434 = vmatpush1.msra.mxu0 0.0
        %2435 = vmatprep.subr.mxu0 0.0
        %2436 = vmatpush1.msra.mxu0 0.0
        %2437 = vmatprep.subr.mxu0 0.0
        %2438 = vmatpush1.msra.mxu0 0.0
        %2439 = vmatprep.subr.mxu0 0.0
        %2440 = vmatpush1.msra.mxu0 0.0
        %2441 = vmatprep.subr.mxu0 0.0
        %2442 = vmatpush1.msra.mxu0 0.0
        %2443 = vmatprep.subr.mxu0 0.0
        %2444 = vmatpush1.msra.mxu0 0.0
        %2445 = vmatprep.mubr.f32.mxu0 0.0
        %2446 = vmatmul.mubr.f32.gmra.mrb[0].mxu0 %v2379
        %v2447 = vpop.f32.mrb[0].mxu0
        %v2448 = vadd.f32 0.0, %v2447
        %v2449 = vpop.f32.mrb[0].mxu0
        %v2450 = vadd.f32 0.0, %v2449
        %2451 = vdwg.mxu0
        %v2452 = vadd.f32 %v2362, %v2448
        %v2453 = vadd.f32 %v2364, %v2450
        %2454 = vrot.lane.b32.xlu0 %v2191, 1
        %v2455 = vpop.permute.xlu0 %2454
        %2456 = vrot.lane.b32.xlu0 %v2192, 1
        %v2457 = vpop.permute.xlu0 %2456
        %v2458 = vsel %vm808, %v2455, %v2457
        %v2461 = vsel %vm808, 0.0, %v2455
        %s2462 = scalar_lea.vmem %s9, 24
        %v2463 = vld [vmem:[%s2462] sm:$0xff]
        %v2465 = vsel %vm566, %v2463, 0
        %2467 = vmatprep.subr.mxu0 %v2458
        %2468 = vmatpush1.msra.mxu0 %v2461
        %2469 = vmatprep.subr.mxu0 0.0
        %2470 = vmatpush1.msra.mxu0 0.0
        %2471 = vmatprep.subr.mxu0 0.0
        %2472 = vmatpush1.msra.mxu0 0.0
        %2473 = vmatprep.subr.mxu0 0.0
        %2474 = vmatpush1.msra.mxu0 0.0
        %2475 = vmatprep.subr.mxu0 0.0
        %2476 = vmatpush1.msra.mxu0 0.0
        %2477 = vmatprep.subr.mxu0 0.0
        %2478 = vmatpush1.msra.mxu0 0.0
        %2479 = vmatprep.subr.mxu0 0.0
        %2480 = vmatpush1.msra.mxu0 0.0
        %2481 = vmatprep.subr.mxu0 0.0
        %2482 = vmatpush1.msra.mxu0 0.0
        %2483 = vmatprep.subr.mxu0 0.0
        %2484 = vmatpush1.msra.mxu0 0.0
        %2485 = vmatprep.subr.mxu0 0.0
        %2486 = vmatpush1.msra.mxu0 0.0
        %2487 = vmatprep.subr.mxu0 0.0
        %2488 = vmatpush1.msra.mxu0 0.0
        %2489 = vmatprep.subr.mxu0 0.0
        %2490 = vmatpush1.msra.mxu0 0.0
        %2491 = vmatprep.subr.mxu0 0.0
        %2492 = vmatpush1.msra.mxu0 0.0
        %2493 = vmatprep.subr.mxu0 0.0
        %2494 = vmatpush1.msra.mxu0 0.0
        %2495 = vmatprep.subr.mxu0 0.0
        %2496 = vmatpush1.msra.mxu0 0.0
        %2497 = vmatprep.subr.mxu0 0.0
        %2498 = vmatpush1.msra.mxu0 0.0
        %2499 = vmatprep.subr.mxu0 0.0
        %2500 = vmatpush1.msra.mxu0 0.0
        %2501 = vmatprep.subr.mxu0 0.0
        %2502 = vmatpush1.msra.mxu0 0.0
        %2503 = vmatprep.subr.mxu0 0.0
        %2504 = vmatpush1.msra.mxu0 0.0
        %2505 = vmatprep.subr.mxu0 0.0
        %2506 = vmatpush1.msra.mxu0 0.0
        %2507 = vmatprep.subr.mxu0 0.0
        %2508 = vmatpush1.msra.mxu0 0.0
        %2509 = vmatprep.subr.mxu0 0.0
        %2510 = vmatpush1.msra.mxu0 0.0
        %2511 = vmatprep.subr.mxu0 0.0
        %2512 = vmatpush1.msra.mxu0 0.0
        %2513 = vmatprep.subr.mxu0 0.0
        %2514 = vmatpush1.msra.mxu0 0.0
        %2515 = vmatprep.subr.mxu0 0.0
        %2516 = vmatpush1.msra.mxu0 0.0
        %2517 = vmatprep.subr.mxu0 0.0
        %2518 = vmatpush1.msra.mxu0 0.0
        %2519 = vmatprep.subr.mxu0 0.0
        %2520 = vmatpush1.msra.mxu0 0.0
        %2521 = vmatprep.subr.mxu0 0.0
        %2522 = vmatpush1.msra.mxu0 0.0
        %2523 = vmatprep.subr.mxu0 0.0
        %2524 = vmatpush1.msra.mxu0 0.0
        %2525 = vmatprep.subr.mxu0 0.0
        %2526 = vmatpush1.msra.mxu0 0.0
        %2527 = vmatprep.subr.mxu0 0.0
        %2528 = vmatpush1.msra.mxu0 0.0
        %2529 = vmatprep.subr.mxu0 0.0
        %2530 = vmatpush1.msra.mxu0 0.0
        %2531 = vmatprep.mubr.f32.mxu0 0.0
        %2532 = vmatmul.mubr.f32.gmra.mrb[0].mxu0 %v2465
        %v2533 = vpop.f32.mrb[0].mxu0
        %v2534 = vadd.f32 0.0, %v2533
        %v2535 = vpop.f32.mrb[0].mxu0
        %v2536 = vadd.f32 0.0, %v2535
        %2537 = vdwg.mxu0
        %v2538 = vadd.f32 %v2452, %v2534
        %v2539 = vadd.f32 %v2453, %v2536
        %s2540 = scalar_lea.vmem %s9, 32
        %v2541 = vld [vmem:[%s2540] sm:$0xff]
        %v2543 = vsel %vm566, %v2541, 0
        %2545 = vmatprep.subr.mxu0 %v2190
        %2546 = vmatpush1.msra.mxu0 %v2189
        %2547 = vmatprep.subr.mxu0 0.0
        %2548 = vmatpush1.msra.mxu0 0.0
        %2549 = vmatprep.subr.mxu0 0.0
        %2550 = vmatpush1.msra.mxu0 0.0
        %2551 = vmatprep.subr.mxu0 0.0
        %2552 = vmatpush1.msra.mxu0 0.0
        %2553 = vmatprep.subr.mxu0 0.0
        %2554 = vmatpush1.msra.mxu0 0.0
        %2555 = vmatprep.subr.mxu0 0.0
        %2556 = vmatpush1.msra.mxu0 0.0
        %2557 = vmatprep.subr.mxu0 0.0
        %2558 = vmatpush1.msra.mxu0 0.0
        %2559 = vmatprep.subr.mxu0 0.0
        %2560 = vmatpush1.msra.mxu0 0.0
        %2561 = vmatprep.subr.mxu0 0.0
        %2562 = vmatpush1.msra.mxu0 0.0
        %2563 = vmatprep.subr.mxu0 0.0
        %2564 = vmatpush1.msra.mxu0 0.0
        %2565 = vmatprep.subr.mxu0 0.0
        %2566 = vmatpush1.msra.mxu0 0.0
        %2567 = vmatprep.subr.mxu0 0.0
        %2568 = vmatpush1.msra.mxu0 0.0
        %2569 = vmatprep.subr.mxu0 0.0
        %2570 = vmatpush1.msra.mxu0 0.0
        %2571 = vmatprep.subr.mxu0 0.0
        %2572 = vmatpush1.msra.mxu0 0.0
        %2573 = vmatprep.subr.mxu0 0.0
        %2574 = vmatpush1.msra.mxu0 0.0
        %2575 = vmatprep.subr.mxu0 0.0
        %2576 = vmatpush1.msra.mxu0 0.0
        %2577 = vmatprep.subr.mxu0 0.0
        %2578 = vmatpush1.msra.mxu0 0.0
        %2579 = vmatprep.subr.mxu0 0.0
        %2580 = vmatpush1.msra.mxu0 0.0
        %2581 = vmatprep.subr.mxu0 0.0
        %2582 = vmatpush1.msra.mxu0 0.0
        %2583 = vmatprep.subr.mxu0 0.0
        %2584 = vmatpush1.msra.mxu0 0.0
        %2585 = vmatprep.subr.mxu0 0.0
        %2586 = vmatpush1.msra.mxu0 0.0
        %2587 = vmatprep.subr.mxu0 0.0
        %2588 = vmatpush1.msra.mxu0 0.0
        %2589 = vmatprep.subr.mxu0 0.0
        %2590 = vmatpush1.msra.mxu0 0.0
        %2591 = vmatprep.subr.mxu0 0.0
        %2592 = vmatpush1.msra.mxu0 0.0
        %2593 = vmatprep.subr.mxu0 0.0
        %2594 = vmatpush1.msra.mxu0 0.0
        %2595 = vmatprep.subr.mxu0 0.0
        %2596 = vmatpush1.msra.mxu0 0.0
        %2597 = vmatprep.subr.mxu0 0.0
        %2598 = vmatpush1.msra.mxu0 0.0
        %2599 = vmatprep.subr.mxu0 0.0
        %2600 = vmatpush1.msra.mxu0 0.0
        %2601 = vmatprep.subr.mxu0 0.0
        %2602 = vmatpush1.msra.mxu0 0.0
        %2603 = vmatprep.subr.mxu0 0.0
        %2604 = vmatpush1.msra.mxu0 0.0
        %2605 = vmatprep.subr.mxu0 0.0
        %2606 = vmatpush1.msra.mxu0 0.0
        %2607 = vmatprep.subr.mxu0 0.0
        %2608 = vmatpush1.msra.mxu0 0.0
        %2609 = vmatprep.mubr.f32.mxu0 0.0
        %2610 = vmatmul.mubr.f32.gmra.mrb[0].mxu0 %v2543
        %v2611 = vpop.f32.mrb[0].mxu0
        %v2612 = vadd.f32 0.0, %v2611
        %v2613 = vpop.f32.mrb[0].mxu0
        %v2614 = vadd.f32 0.0, %v2613
        %2615 = vdwg.mxu0
        %v2616 = vadd.f32 %v2538, %v2612
        %v2617 = vadd.f32 %v2539, %v2614
        %2618 = vrot.lane.b32.xlu0 %v2193, 127
        %v2619 = vpop.permute.xlu0 %2618
        %2620 = vrot.lane.b32.xlu0 %v2194, 127
        %v2621 = vpop.permute.xlu0 %2620
        %v2622 = vsel %vm973, %v2619, %v2621
        %v2625 = vsel %vm973, %v2621, 0.0
        %s2626 = scalar_lea.vmem %s9, 40
        %v2627 = vld [vmem:[%s2626] sm:$0xff]
        %v2629 = vsel %vm566, %v2627, 0
        %2631 = vmatprep.subr.mxu0 %v2625
        %2632 = vmatpush1.msra.mxu0 %v2622
        %2633 = vmatprep.subr.mxu0 0.0
        %2634 = vmatpush1.msra.mxu0 0.0
        %2635 = vmatprep.subr.mxu0 0.0
        %2636 = vmatpush1.msra.mxu0 0.0
        %2637 = vmatprep.subr.mxu0 0.0
        %2638 = vmatpush1.msra.mxu0 0.0
        %2639 = vmatprep.subr.mxu0 0.0
        %2640 = vmatpush1.msra.mxu0 0.0
        %2641 = vmatprep.subr.mxu0 0.0
        %2642 = vmatpush1.msra.mxu0 0.0
        %2643 = vmatprep.subr.mxu0 0.0
        %2644 = vmatpush1.msra.mxu0 0.0
        %2645 = vmatprep.subr.mxu0 0.0
        %2646 = vmatpush1.msra.mxu0 0.0
        %2647 = vmatprep.subr.mxu0 0.0
        %2648 = vmatpush1.msra.mxu0 0.0
        %2649 = vmatprep.subr.mxu0 0.0
        %2650 = vmatpush1.msra.mxu0 0.0
        %2651 = vmatprep.subr.mxu0 0.0
        %2652 = vmatpush1.msra.mxu0 0.0
        %2653 = vmatprep.subr.mxu0 0.0
        %2654 = vmatpush1.msra.mxu0 0.0
        %2655 = vmatprep.subr.mxu0 0.0
        %2656 = vmatpush1.msra.mxu0 0.0
        %2657 = vmatprep.subr.mxu0 0.0
        %2658 = vmatpush1.msra.mxu0 0.0
        %2659 = vmatprep.subr.mxu0 0.0
        %2660 = vmatpush1.msra.mxu0 0.0
        %2661 = vmatprep.subr.mxu0 0.0
        %2662 = vmatpush1.msra.mxu0 0.0
        %2663 = vmatprep.subr.mxu0 0.0
        %2664 = vmatpush1.msra.mxu0 0.0
        %2665 = vmatprep.subr.mxu0 0.0
        %2666 = vmatpush1.msra.mxu0 0.0
        %2667 = vmatprep.subr.mxu0 0.0
        %2668 = vmatpush1.msra.mxu0 0.0
        %2669 = vmatprep.subr.mxu0 0.0
        %2670 = vmatpush1.msra.mxu0 0.0
        %2671 = vmatprep.subr.mxu0 0.0
        %2672 = vmatpush1.msra.mxu0 0.0
        %2673 = vmatprep.subr.mxu0 0.0
        %2674 = vmatpush1.msra.mxu0 0.0
        %2675 = vmatprep.subr.mxu0 0.0
        %2676 = vmatpush1.msra.mxu0 0.0
        %2677 = vmatprep.subr.mxu0 0.0
        %2678 = vmatpush1.msra.mxu0 0.0
        %2679 = vmatprep.subr.mxu0 0.0
        %2680 = vmatpush1.msra.mxu0 0.0
        %2681 = vmatprep.subr.mxu0 0.0
        %2682 = vmatpush1.msra.mxu0 0.0
        %2683 = vmatprep.subr.mxu0 0.0
        %2684 = vmatpush1.msra.mxu0 0.0
        %2685 = vmatprep.subr.mxu0 0.0
        %2686 = vmatpush1.msra.mxu0 0.0
        %2687 = vmatprep.subr.mxu0 0.0
        %2688 = vmatpush1.msra.mxu0 0.0
        %2689 = vmatprep.subr.mxu0 0.0
        %2690 = vmatpush1.msra.mxu0 0.0
        %2691 = vmatprep.subr.mxu0 0.0
        %2692 = vmatpush1.msra.mxu0 0.0
        %2693 = vmatprep.subr.mxu0 0.0
        %2694 = vmatpush1.msra.mxu0 0.0
        %2695 = vmatprep.mubr.f32.mxu0 0.0
        %2696 = vmatmul.mubr.f32.gmra.mrb[0].mxu0 %v2629
        %v2697 = vpop.f32.mrb[0].mxu0
        %v2698 = vadd.f32 0.0, %v2697
        %v2699 = vpop.f32.mrb[0].mxu0
        %v2700 = vadd.f32 0.0, %v2699
        %2701 = vdwg.mxu0
        %v2702 = vadd.f32 %v2616, %v2698
        %v2703 = vadd.f32 %v2617, %v2700
        %2704 = vrot.lane.b32.xlu0 %v2191, 113
        %v2705 = vpop.permute.xlu0 %2704
        %2706 = vrot.lane.b32.xlu0 %v2192, 113
        %v2707 = vpop.permute.xlu0 %2706
        %v2708 = vsel %vm1060, %v2705, %v2707
        %v2711 = vsel %vm1060, %v2707, 0.0
        %s2712 = scalar_lea.vmem %s9, 48
        %v2713 = vld [vmem:[%s2712] sm:$0xff]
        %v2715 = vsel %vm566, %v2713, 0
        %2717 = vmatprep.subr.mxu0 %v2711
        %2718 = vmatpush1.msra.mxu0 %v2708
        %2719 = vmatprep.subr.mxu0 0.0
        %2720 = vmatpush1.msra.mxu0 0.0
        %2721 = vmatprep.subr.mxu0 0.0
        %2722 = vmatpush1.msra.mxu0 0.0
        %2723 = vmatprep.subr.mxu0 0.0
        %2724 = vmatpush1.msra.mxu0 0.0
        %2725 = vmatprep.subr.mxu0 0.0
        %2726 = vmatpush1.msra.mxu0 0.0
        %2727 = vmatprep.subr.mxu0 0.0
        %2728 = vmatpush1.msra.mxu0 0.0
        %2729 = vmatprep.subr.mxu0 0.0
        %2730 = vmatpush1.msra.mxu0 0.0
        %2731 = vmatprep.subr.mxu0 0.0
        %2732 = vmatpush1.msra.mxu0 0.0
        %2733 = vmatprep.subr.mxu0 0.0
        %2734 = vmatpush1.msra.mxu0 0.0
        %2735 = vmatprep.subr.mxu0 0.0
        %2736 = vmatpush1.msra.mxu0 0.0
        %2737 = vmatprep.subr.mxu0 0.0
        %2738 = vmatpush1.msra.mxu0 0.0
        %2739 = vmatprep.subr.mxu0 0.0
        %2740 = vmatpush1.msra.mxu0 0.0
        %2741 = vmatprep.subr.mxu0 0.0
        %2742 = vmatpush1.msra.mxu0 0.0
        %2743 = vmatprep.subr.mxu0 0.0
        %2744 = vmatpush1.msra.mxu0 0.0
        %2745 = vmatprep.subr.mxu0 0.0
        %2746 = vmatpush1.msra.mxu0 0.0
        %2747 = vmatprep.subr.mxu0 0.0
        %2748 = vmatpush1.msra.mxu0 0.0
        %2749 = vmatprep.subr.mxu0 0.0
        %2750 = vmatpush1.msra.mxu0 0.0
        %2751 = vmatprep.subr.mxu0 0.0
        %2752 = vmatpush1.msra.mxu0 0.0
        %2753 = vmatprep.subr.mxu0 0.0
        %2754 = vmatpush1.msra.mxu0 0.0
        %2755 = vmatprep.subr.mxu0 0.0
        %2756 = vmatpush1.msra.mxu0 0.0
        %2757 = vmatprep.subr.mxu0 0.0
        %2758 = vmatpush1.msra.mxu0 0.0
        %2759 = vmatprep.subr.mxu0 0.0
        %2760 = vmatpush1.msra.mxu0 0.0
        %2761 = vmatprep.subr.mxu0 0.0
        %2762 = vmatpush1.msra.mxu0 0.0
        %2763 = vmatprep.subr.mxu0 0.0
        %2764 = vmatpush1.msra.mxu0 0.0
        %2765 = vmatprep.subr.mxu0 0.0
        %2766 = vmatpush1.msra.mxu0 0.0
        %2767 = vmatprep.subr.mxu0 0.0
        %2768 = vmatpush1.msra.mxu0 0.0
        %2769 = vmatprep.subr.mxu0 0.0
        %2770 = vmatpush1.msra.mxu0 0.0
        %2771 = vmatprep.subr.mxu0 0.0
        %2772 = vmatpush1.msra.mxu0 0.0
        %2773 = vmatprep.subr.mxu0 0.0
        %2774 = vmatpush1.msra.mxu0 0.0
        %2775 = vmatprep.subr.mxu0 0.0
        %2776 = vmatpush1.msra.mxu0 0.0
        %2777 = vmatprep.subr.mxu0 0.0
        %2778 = vmatpush1.msra.mxu0 0.0
        %2779 = vmatprep.subr.mxu0 0.0
        %2780 = vmatpush1.msra.mxu0 0.0
        %2781 = vmatprep.mubr.f32.mxu0 0.0
        %2782 = vmatmul.mubr.f32.gmra.mrb[0].mxu0 %v2715
        %v2783 = vpop.f32.mrb[0].mxu0
        %v2784 = vadd.f32 0.0, %v2783
        %v2785 = vpop.f32.mrb[0].mxu0
        %v2786 = vadd.f32 0.0, %v2785
        %2787 = vdwg.mxu0
        %v2788 = vadd.f32 %v2702, %v2784
        %v2789 = vadd.f32 %v2703, %v2786
        %2790 = vrot.lane.b32.xlu0 %v2189, 112
        %v2791 = vpop.permute.xlu0 %2790
        %2792 = vrot.lane.b32.xlu0 %v2190, 112
        %v2793 = vpop.permute.xlu0 %2792
        %v2794 = vsel %vm1147, %v2791, %v2793
        %v2797 = vsel %vm1147, %v2793, 0.0
        %s2798 = scalar_lea.vmem %s9, 56
        %v2799 = vld [vmem:[%s2798] sm:$0xff]
        %v2801 = vsel %vm566, %v2799, 0
        %2803 = vmatprep.subr.mxu0 %v2797
        %2804 = vmatpush1.msra.mxu0 %v2794
        %2805 = vmatprep.subr.mxu0 0.0
        %2806 = vmatpush1.msra.mxu0 0.0
        %2807 = vmatprep.subr.mxu0 0.0
        %2808 = vmatpush1.msra.mxu0 0.0
        %2809 = vmatprep.subr.mxu0 0.0
        %2810 = vmatpush1.msra.mxu0 0.0
        %2811 = vmatprep.subr.mxu0 0.0
        %2812 = vmatpush1.msra.mxu0 0.0
        %2813 = vmatprep.subr.mxu0 0.0
        %2814 = vmatpush1.msra.mxu0 0.0
        %2815 = vmatprep.subr.mxu0 0.0
        %2816 = vmatpush1.msra.mxu0 0.0
        %2817 = vmatprep.subr.mxu0 0.0
        %2818 = vmatpush1.msra.mxu0 0.0
        %2819 = vmatprep.subr.mxu0 0.0
        %2820 = vmatpush1.msra.mxu0 0.0
        %2821 = vmatprep.subr.mxu0 0.0
        %2822 = vmatpush1.msra.mxu0 0.0
        %2823 = vmatprep.subr.mxu0 0.0
        %2824 = vmatpush1.msra.mxu0 0.0
        %2825 = vmatprep.subr.mxu0 0.0
        %2826 = vmatpush1.msra.mxu0 0.0
        %2827 = vmatprep.subr.mxu0 0.0
        %2828 = vmatpush1.msra.mxu0 0.0
        %2829 = vmatprep.subr.mxu0 0.0
        %2830 = vmatpush1.msra.mxu0 0.0
        %2831 = vmatprep.subr.mxu0 0.0
        %2832 = vmatpush1.msra.mxu0 0.0
        %2833 = vmatprep.subr.mxu0 0.0
        %2834 = vmatpush1.msra.mxu0 0.0
        %2835 = vmatprep.subr.mxu0 0.0
        %2836 = vmatpush1.msra.mxu0 0.0
        %2837 = vmatprep.subr.mxu0 0.0
        %2838 = vmatpush1.msra.mxu0 0.0
        %2839 = vmatprep.subr.mxu0 0.0
        %2840 = vmatpush1.msra.mxu0 0.0
        %2841 = vmatprep.subr.mxu0 0.0
        %2842 = vmatpush1.msra.mxu0 0.0
        %2843 = vmatprep.subr.mxu0 0.0
        %2844 = vmatpush1.msra.mxu0 0.0
        %2845 = vmatprep.subr.mxu0 0.0
        %2846 = vmatpush1.msra.mxu0 0.0
        %2847 = vmatprep.subr.mxu0 0.0
        %2848 = vmatpush1.msra.mxu0 0.0
        %2849 = vmatprep.subr.mxu0 0.0
        %2850 = vmatpush1.msra.mxu0 0.0
        %2851 = vmatprep.subr.mxu0 0.0
        %2852 = vmatpush1.msra.mxu0 0.0
        %2853 = vmatprep.subr.mxu0 0.0
        %2854 = vmatpush1.msra.mxu0 0.0
        %2855 = vmatprep.subr.mxu0 0.0
        %2856 = vmatpush1.msra.mxu0 0.0
        %2857 = vmatprep.subr.mxu0 0.0
        %2858 = vmatpush1.msra.mxu0 0.0
        %2859 = vmatprep.subr.mxu0 0.0
        %2860 = vmatpush1.msra.mxu0 0.0
        %2861 = vmatprep.subr.mxu0 0.0
        %2862 = vmatpush1.msra.mxu0 0.0
        %2863 = vmatprep.subr.mxu0 0.0
        %2864 = vmatpush1.msra.mxu0 0.0
        %2865 = vmatprep.subr.mxu0 0.0
        %2866 = vmatpush1.msra.mxu0 0.0
        %2867 = vmatprep.mubr.f32.mxu0 0.0
        %2868 = vmatmul.mubr.f32.gmra.mrb[0].mxu0 %v2801
        %v2869 = vpop.f32.mrb[0].mxu0
        %v2870 = vadd.f32 0.0, %v2869
        %v2871 = vpop.f32.mrb[0].mxu0
        %v2872 = vadd.f32 0.0, %v2871
        %2873 = vdwg.mxu0
        %v2874 = vadd.f32 %v2788, %v2870
        %v2875 = vadd.f32 %v2789, %v2872
        %2876 = vrot.lane.b32.xlu0 %v2193, 111
        %v2877 = vpop.permute.xlu0 %2876
        %2878 = vrot.lane.b32.xlu0 %v2194, 111
        %v2879 = vpop.permute.xlu0 %2878
        %v2880 = vsel %vm1234, %v2877, %v2879
        %v2883 = vsel %vm1234, %v2879, 0.0
        %s2884 = scalar_lea.vmem %s9, 64
        %v2885 = vld [vmem:[%s2884] sm:$0xff]
        %v2887 = vsel %vm566, %v2885, 0
        %2889 = vmatprep.subr.mxu0 %v2883
        %2890 = vmatpush1.msra.mxu0 %v2880
        %2891 = vmatprep.subr.mxu0 0.0
        %2892 = vmatpush1.msra.mxu0 0.0
        %2893 = vmatprep.subr.mxu0 0.0
        %2894 = vmatpush1.msra.mxu0 0.0
        %2895 = vmatprep.subr.mxu0 0.0
        %2896 = vmatpush1.msra.mxu0 0.0
        %2897 = vmatprep.subr.mxu0 0.0
        %2898 = vmatpush1.msra.mxu0 0.0
        %2899 = vmatprep.subr.mxu0 0.0
        %2900 = vmatpush1.msra.mxu0 0.0
        %2901 = vmatprep.subr.mxu0 0.0
        %2902 = vmatpush1.msra.mxu0 0.0
        %2903 = vmatprep.subr.mxu0 0.0
        %2904 = vmatpush1.msra.mxu0 0.0
        %2905 = vmatprep.subr.mxu0 0.0
        %2906 = vmatpush1.msra.mxu0 0.0
        %2907 = vmatprep.subr.mxu0 0.0
        %2908 = vmatpush1.msra.mxu0 0.0
        %2909 = vmatprep.subr.mxu0 0.0
        %2910 = vmatpush1.msra.mxu0 0.0
        %2911 = vmatprep.subr.mxu0 0.0
        %2912 = vmatpush1.msra.mxu0 0.0
        %2913 = vmatprep.subr.mxu0 0.0
        %2914 = vmatpush1.msra.mxu0 0.0
        %2915 = vmatprep.subr.mxu0 0.0
        %2916 = vmatpush1.msra.mxu0 0.0
        %2917 = vmatprep.subr.mxu0 0.0
        %2918 = vmatpush1.msra.mxu0 0.0
        %2919 = vmatprep.subr.mxu0 0.0
        %2920 = vmatpush1.msra.mxu0 0.0
        %2921 = vmatprep.subr.mxu0 0.0
        %2922 = vmatpush1.msra.mxu0 0.0
        %2923 = vmatprep.subr.mxu0 0.0
        %2924 = vmatpush1.msra.mxu0 0.0
        %2925 = vmatprep.subr.mxu0 0.0
        %2926 = vmatpush1.msra.mxu0 0.0
        %2927 = vmatprep.subr.mxu0 0.0
        %2928 = vmatpush1.msra.mxu0 0.0
        %2929 = vmatprep.subr.mxu0 0.0
        %2930 = vmatpush1.msra.mxu0 0.0
        %2931 = vmatprep.subr.mxu0 0.0
        %2932 = vmatpush1.msra.mxu0 0.0
        %2933 = vmatprep.subr.mxu0 0.0
        %2934 = vmatpush1.msra.mxu0 0.0
        %2935 = vmatprep.subr.mxu0 0.0
        %2936 = vmatpush1.msra.mxu0 0.0
        %2937 = vmatprep.subr.mxu0 0.0
        %2938 = vmatpush1.msra.mxu0 0.0
        %2939 = vmatprep.subr.mxu0 0.0
        %2940 = vmatpush1.msra.mxu0 0.0
        %2941 = vmatprep.subr.mxu0 0.0
        %2942 = vmatpush1.msra.mxu0 0.0
        %2943 = vmatprep.subr.mxu0 0.0
        %2944 = vmatpush1.msra.mxu0 0.0
        %2945 = vmatprep.subr.mxu0 0.0
        %2946 = vmatpush1.msra.mxu0 0.0
        %2947 = vmatprep.subr.mxu0 0.0
        %2948 = vmatpush1.msra.mxu0 0.0
        %2949 = vmatprep.subr.mxu0 0.0
        %2950 = vmatpush1.msra.mxu0 0.0
        %2951 = vmatprep.subr.mxu0 0.0
        %2952 = vmatpush1.msra.mxu0 0.0
        %2953 = vmatprep.mubr.f32.mxu0 0.0
        %2954 = vmatmul.mubr.f32.gmra.mrb[0].mxu0 %v2887
        %v2955 = vpop.f32.mrb[0].mxu0
        %v2956 = vadd.f32 0.0, %v2955
        %v2957 = vpop.f32.mrb[0].mxu0
        %v2958 = vadd.f32 0.0, %v2957
        %2959 = vdwg.mxu0
        %v2960 = vadd.f32 %v2874, %v2956
        %v2961 = vadd.f32 %v2875, %v2958
        %v2962 = vld [vmem:[%s10] sm:$0xff]
        %2964 = vset.pattern.permute.xlu0 0
        %2965 = vperm.xlu0 %2964, %v2962
        %v2966 = vpop.permute.xlu0 %2965
        %v2968 = vadd.f32 %v2960, %v2966
        %v2969 = vadd.f32 %v2961, %v2966
        %v2970 = vmax.f32 %v2968, 0.0
        %v2971 = vmax.f32 %v2969, 0.0
        %v2972 = vld [vmem:[%s11] sm:$0xff]
        %v2973 = vld [vmem:[%s12] sm:$0xff]
        %2975 = vset.pattern.permute.xlu0 0
        %2976 = vperm.xlu0 %2975, %v2973
        %v2977 = vpop.permute.xlu0 %2976
        %v2980 = vsel %vm566, %v2972, 0
        %2982 = vmatprep.subr.mxu0 %v2971
        %2983 = vmatpush1.msra.mxu0 %v2970
        %2984 = vmatprep.subr.mxu0 0.0
        %2985 = vmatpush1.msra.mxu0 0.0
        %2986 = vmatprep.subr.mxu0 0.0
        %2987 = vmatpush1.msra.mxu0 0.0
        %2988 = vmatprep.subr.mxu0 0.0
        %2989 = vmatpush1.msra.mxu0 0.0
        %2990 = vmatprep.subr.mxu0 0.0
        %2991 = vmatpush1.msra.mxu0 0.0
        %2992 = vmatprep.subr.mxu0 0.0
        %2993 = vmatpush1.msra.mxu0 0.0
        %2994 = vmatprep.subr.mxu0 0.0
        %2995 = vmatpush1.msra.mxu0 0.0
        %2996 = vmatprep.subr.mxu0 0.0
        %2997 = vmatpush1.msra.mxu0 0.0
        %2998 = vmatprep.subr.mxu0 0.0
        %2999 = vmatpush1.msra.mxu0 0.0
        %3000 = vmatprep.subr.mxu0 0.0
        %3001 = vmatpush1.msra.mxu0 0.0
        %3002 = vmatprep.subr.mxu0 0.0
        %3003 = vmatpush1.msra.mxu0 0.0
        %3004 = vmatprep.subr.mxu0 0.0
        %3005 = vmatpush1.msra.mxu0 0.0
        %3006 = vmatprep.subr.mxu0 0.0
        %3007 = vmatpush1.msra.mxu0 0.0
        %3008 = vmatprep.subr.mxu0 0.0
        %3009 = vmatpush1.msra.mxu0 0.0
        %3010 = vmatprep.subr.mxu0 0.0
        %3011 = vmatpush1.msra.mxu0 0.0
        %3012 = vmatprep.subr.mxu0 0.0
        %3013 = vmatpush1.msra.mxu0 0.0
        %3014 = vmatprep.subr.mxu0 0.0
        %3015 = vmatpush1.msra.mxu0 0.0
        %3016 = vmatprep.subr.mxu0 0.0
        %3017 = vmatpush1.msra.mxu0 0.0
        %3018 = vmatprep.subr.mxu0 0.0
        %3019 = vmatpush1.msra.mxu0 0.0
        %3020 = vmatprep.subr.mxu0 0.0
        %3021 = vmatpush1.msra.mxu0 0.0
        %3022 = vmatprep.subr.mxu0 0.0
        %3023 = vmatpush1.msra.mxu0 0.0
        %3024 = vmatprep.subr.mxu0 0.0
        %3025 = vmatpush1.msra.mxu0 0.0
        %3026 = vmatprep.subr.mxu0 0.0
        %3027 = vmatpush1.msra.mxu0 0.0
        %3028 = vmatprep.subr.mxu0 0.0
        %3029 = vmatpush1.msra.mxu0 0.0
        %3030 = vmatprep.subr.mxu0 0.0
        %3031 = vmatpush1.msra.mxu0 0.0
        %3032 = vmatprep.subr.mxu0 0.0
        %3033 = vmatpush1.msra.mxu0 0.0
        %3034 = vmatprep.subr.mxu0 0.0
        %3035 = vmatpush1.msra.mxu0 0.0
        %3036 = vmatprep.subr.mxu0 0.0
        %3037 = vmatpush1.msra.mxu0 0.0
        %3038 = vmatprep.subr.mxu0 0.0
        %3039 = vmatpush1.msra.mxu0 0.0
        %3040 = vmatprep.subr.mxu0 0.0
        %3041 = vmatpush1.msra.mxu0 0.0
        %3042 = vmatprep.subr.mxu0 0.0
        %3043 = vmatpush1.msra.mxu0 0.0
        %3044 = vmatprep.subr.mxu0 0.0
        %3045 = vmatpush1.msra.mxu0 0.0
        %3046 = vmatprep.mubr.f32.mxu0 0.0
        %3047 = vmatmul.mubr.f32.gmra.mrb[0].mxu0 %v2980
        %v3048 = vpop.f32.mrb[0].mxu0
        %v3049 = vadd.f32 %v2977, %v3048
        %v3050 = vpop.f32.mrb[0].mxu0
        %v3051 = vadd.f32 %v2977, %v3050
        %3052 = vdwg.mxu0
        %v3053 = vmax.f32 %v3049, 0.0
        %v3054 = vmax.f32 %v3051, 0.0
        %v3055 = vld [vmem:[%s13] sm:$0xff]
        %v3056 = vld [vmem:[%s14] sm:$0xff]
        %3058 = vset.pattern.permute.xlu0 0
        %3059 = vperm.xlu0 %3058, %v3056
        %v3060 = vpop.permute.xlu0 %3059
        %v3063 = vsel %vm566, %v3055, 0
        %3065 = vmatprep.subr.mxu0 %v3054
        %3066 = vmatpush1.msra.mxu0 %v3053
        %3067 = vmatprep.subr.mxu0 0.0
        %3068 = vmatpush1.msra.mxu0 0.0
        %3069 = vmatprep.subr.mxu0 0.0
        %3070 = vmatpush1.msra.mxu0 0.0
        %3071 = vmatprep.subr.mxu0 0.0
        %3072 = vmatpush1.msra.mxu0 0.0
        %3073 = vmatprep.subr.mxu0 0.0
        %3074 = vmatpush1.msra.mxu0 0.0
        %3075 = vmatprep.subr.mxu0 0.0
        %3076 = vmatpush1.msra.mxu0 0.0
        %3077 = vmatprep.subr.mxu0 0.0
        %3078 = vmatpush1.msra.mxu0 0.0
        %3079 = vmatprep.subr.mxu0 0.0
        %3080 = vmatpush1.msra.mxu0 0.0
        %3081 = vmatprep.subr.mxu0 0.0
        %3082 = vmatpush1.msra.mxu0 0.0
        %3083 = vmatprep.subr.mxu0 0.0
        %3084 = vmatpush1.msra.mxu0 0.0
        %3085 = vmatprep.subr.mxu0 0.0
        %3086 = vmatpush1.msra.mxu0 0.0
        %3087 = vmatprep.subr.mxu0 0.0
        %3088 = vmatpush1.msra.mxu0 0.0
        %3089 = vmatprep.subr.mxu0 0.0
        %3090 = vmatpush1.msra.mxu0 0.0
        %3091 = vmatprep.subr.mxu0 0.0
        %3092 = vmatpush1.msra.mxu0 0.0
        %3093 = vmatprep.subr.mxu0 0.0
        %3094 = vmatpush1.msra.mxu0 0.0
        %3095 = vmatprep.subr.mxu0 0.0
        %3096 = vmatpush1.msra.mxu0 0.0
        %3097 = vmatprep.subr.mxu0 0.0
        %3098 = vmatpush1.msra.mxu0 0.0
        %3099 = vmatprep.subr.mxu0 0.0
        %3100 = vmatpush1.msra.mxu0 0.0
        %3101 = vmatprep.subr.mxu0 0.0
        %3102 = vmatpush1.msra.mxu0 0.0
        %3103 = vmatprep.subr.mxu0 0.0
        %3104 = vmatpush1.msra.mxu0 0.0
        %3105 = vmatprep.subr.mxu0 0.0
        %3106 = vmatpush1.msra.mxu0 0.0
        %3107 = vmatprep.subr.mxu0 0.0
        %3108 = vmatpush1.msra.mxu0 0.0
        %3109 = vmatprep.subr.mxu0 0.0
        %3110 = vmatpush1.msra.mxu0 0.0
        %3111 = vmatprep.subr.mxu0 0.0
        %3112 = vmatpush1.msra.mxu0 0.0
        %3113 = vmatprep.subr.mxu0 0.0
        %3114 = vmatpush1.msra.mxu0 0.0
        %3115 = vmatprep.subr.mxu0 0.0
        %3116 = vmatpush1.msra.mxu0 0.0
        %3117 = vmatprep.subr.mxu0 0.0
        %3118 = vmatpush1.msra.mxu0 0.0
        %3119 = vmatprep.subr.mxu0 0.0
        %3120 = vmatpush1.msra.mxu0 0.0
        %3121 = vmatprep.subr.mxu0 0.0
        %3122 = vmatpush1.msra.mxu0 0.0
        %3123 = vmatprep.subr.mxu0 0.0
        %3124 = vmatpush1.msra.mxu0 0.0
        %3125 = vmatprep.subr.mxu0 0.0
        %3126 = vmatpush1.msra.mxu0 0.0
        %3127 = vmatprep.subr.mxu0 0.0
        %3128 = vmatpush1.msra.mxu0 0.0
        %3129 = vmatprep.mubr.f32.mxu0 0.0
        %3130 = vmatmul.mubr.f32.gmra.mrb[0].mxu0 %v3063
        %v3131 = vpop.f32.mrb[0].mxu0
        %v3132 = vadd.f32 %v3060, %v3131
        %v3133 = vpop.f32.mrb[0].mxu0
        %v3134 = vadd.f32 %v3060, %v3133
        %3135 = vdwg.mxu0
        %v3136 = vld [vmem:[%s509] sm:$0x3]
        %vm3137 = vcmp.ne.f32.partialorder %v3136, 0.0
        %v3138 = vsel %vm3137, 1, 0
        %v3139 = vlaneseq
        %v3140 = vshrl.u32 %v3139, 7
        %v3141 = vsub.s32 0, %v3140
        %v3142 = vrot.slane %v3138, %v3141
        %v3143 = vlaneseq
        %v3144 = vshrl.u32 %v3143, 7
        %v3145 = vsub.s32 1, %v3144
        %v3146 = vrot.slane %v3138, %v3145
        %vm3147 = vcmp.eq.s32.totalorder %v3142, 1
        %vm3148 = vcmp.eq.s32.totalorder %v3146, 1
        %v3149 = vsel %vm3147, %v3132, -1e+08
        %v3150 = vsel %vm3148, %v3134, -1e+08
        %3151 = vst [vmem:[%s500] sm:$0xff] %v3149
        %3152 = vst [vmem:[%s500 + $0x8] sm:$0xff] %v3150
        %s3153 = sand.u32 %s362, 1
        %s3154 = scalar_lea.sflag [#allocation3], %s3153
        %s3155 = sand.u32 %s362, 1
        %s3156 = smul.addr %s3155, 16
        %s3157 = scalar_lea.vmem [#allocation2], %s3156
        // Predicated region
        $region81: #{tpu_custom_call.1} parent=79 // pred_check
          %p3158 = pneg %p372
        $region82: #{tpu_custom_call.1} parent=79 // pred_check_branch
          %3160 = sbr.rel (%p3158) target = $region84
        $region83: #{tpu_custom_call.1} parent=79 // pred_region
          %s3162 = ssub.s32 256, 256
          %3163 = vsyncadd %s3154, %s3162
          %s3164 = smul.addr %s29, 2
          %s3165 = smul.addr %s3164, 128
          %s3166 = scalar_lea.hbm %s15, %s3165
          %s3168 = sshll.u32 %s3157, 4
          %s3169 = int_to_ptr.vmem [resolvable:$true] %s3168
          %3171 = dma.vmem_to_hbm [thread:$0]  %s3169, 256, %s3166, %s3154
        $region84: #{tpu_custom_call.1} parent=79 // pred_fallthru
          _
      $region80: #{tpu_custom_call.1} parent=5 // pred_fallthru
        _
      %p3172 = scmp.le.s32.totalorder 2, %s24
      // Predicated region
      $region85: #{tpu_custom_call.1} parent=5 // pred_check
        %p3173 = pneg %p3172
      $region86: #{tpu_custom_call.1} parent=5 // pred_check_branch
        %3175 = sbr.rel (%p3173) target = $region88
      $region87: #{tpu_custom_call.1} parent=5 // pred_region
        %s3176 = ssub.s32 %s24, 2
        // Predicated region
        $region89: #{tpu_custom_call.1} parent=87 // pred_check
          %p3177 = pneg %p378
        $region90: #{tpu_custom_call.1} parent=87 // pred_check_branch
          %3179 = sbr.rel (%p3177) target = $region92
        $region91: #{tpu_custom_call.1} parent=87 // pred_region
          %s3180 = sand.u32 %s363, 1
          %s3181 = scalar_lea.sflag [#allocation3], %s3180
          %s3182 = sand.u32 %s363, 1
          %s3183 = smul.addr %s3182, 16
          %s3184 = scalar_lea.vmem [#allocation2], %s3183
          %3185 = dma.done %s3181, 256
        $region92: #{tpu_custom_call.1} parent=87 // pred_fallthru
          _
      $region88: #{tpu_custom_call.1} parent=5 // pred_fallthru
        _
    $region6: #{tpu_custom_call.1} parent=1 // loop_footer
      %s28 = sadd.s32 1, %s24
    $region7: #{tpu_custom_call.1} parent=1 // loop_footer_branch
      %23 = sbr.rel target = $region3
    $region8: #{tpu_custom_call.1} parent=1 // loop_exit
      _
    %3186 = vsyncpa [#allocation3], 1
    %s3187 = scalar_lea.sflag [#allocation3], 1
    %3188 = vsyncpa %s3187, 1

</llo_original>
